<compile_context>
chip_gen: v7x
topology: tpu7x:2x2x1
jax: 0.10.0
libtpu: 0.0.40
codegen_flags: <defaults>
</compile_context>

<pallas_src>
import functools
import numpy as np
import jax
import jax.numpy as jnp
from jax import lax
from jax.experimental import pallas as pl
from jax.experimental.pallas import tpu as pltpu


# ----------------------------- tiling helpers --------------------------------

def _pair_tile(P, C, itemsize, budget_bytes=1 << 20):
    """Lane tile along the flattened pair axis: a multiple of 128 dividing P
    (largest under a per-block VMEM byte budget), or the whole axis."""
    if P % 128 != 0:
        return P
    max_tp = max(128, (budget_bytes // max(C * itemsize, 1)) // 128 * 128)
    t = min(P, max_tp)
    while P % t != 0:
        t -= 128
    return t


def _row_tile(N, D, itemsize, budget_bytes=4 << 20):
    """Row (i) tile for the pooling kernel: multiple of 128 dividing N (so the
    lane-dense output block stays legal), or the whole axis for small graphs."""
    if N % 128 != 0:
        return N
    max_ti = max(128, (budget_bytes // max(D * N * itemsize, 1)) // 128 * 128)
    t = min(N, max_ti)
    while N % t != 0:
        t -= 128
    return t


# ----------------------------- Pallas kernels --------------------------------

def _mlp_cf_kernel(x_ref, w1_ref, b1_ref, w2_ref, b2_ref, m_ref, o_ref):
    """Channels-first 2-layer MLP over the channel axis, masked per pair.
    x: [1,Cin,T]; w1: [H,Cin]; b1: [H,1]; w2: [Cout,H]; b2: [Cout,1];
    m: [1,1,T]; o: [1,Cout,T]."""
    x = x_ref[0]
    h = jnp.dot(w1_ref[...], x, preferred_element_type=jnp.float32) + b1_ref[...]
    h = jnp.maximum(h, 0.0).astype(w2_ref.dtype)
    y = jnp.dot(w2_ref[...], h, preferred_element_type=jnp.float32) + b2_ref[...]
    o_ref[0] = (y * m_ref[0]).astype(o_ref.dtype)


def _dual_mlp_cf_kernel(x_ref,
                        w1a_ref, b1a_ref, w2a_ref, b2a_ref,
                        w1b_ref, b1b_ref, w2b_ref, b2b_ref,
                        m_ref, oa_ref, ob_ref):
    """mlp1 and mlp2 of a PPGN residual block fused: one HBM read of X, two outputs."""
    x = x_ref[0]
    m = m_ref[0]
    ha = jnp.maximum(jnp.dot(w1a_ref[...], x, preferred_element_type=jnp.float32)
                     + b1a_ref[...], 0.0).astype(w2a_ref.dtype)
    ya = jnp.dot(w2a_ref[...], ha, preferred_element_type=jnp.float32) + b2a_ref[...]
    oa_ref[0] = (ya * m).astype(oa_ref.dtype)
    hb = jnp.maximum(jnp.dot(w1b_ref[...], x, preferred_element_type=jnp.float32)
                     + b1b_ref[...], 0.0).astype(w2b_ref.dtype)
    yb = jnp.dot(w2b_ref[...], hb, preferred_element_type=jnp.float32) + b2b_ref[...]
    ob_ref[0] = (yb * m).astype(ob_ref.dtype)


def _concat_mlp_cf_kernel(x_ref, u_ref, w1x_ref, w1u_ref, b1_ref, w2_ref, b2_ref,
                          m_ref, o_ref):
    """mlp3 with concat([X, mult]) fused away: W1 is pre-split into the X half and
    the mult half, so the [B, 2H, N*N] concat tensor never hits HBM."""
    h = (jnp.dot(w1x_ref[...], x_ref[0], preferred_element_type=jnp.float32)
         + jnp.dot(w1u_ref[...], u_ref[0], preferred_element_type=jnp.float32)
         + b1_ref[...])
    h = jnp.maximum(h, 0.0).astype(w2_ref.dtype)
    y = jnp.dot(w2_ref[...], h, preferred_element_type=jnp.float32) + b2_ref[...]
    o_ref[0] = (y * m_ref[0]).astype(o_ref.dtype)


def _cw_matmul_kernel(a_ref, b_ref, o_ref):
    """Per-channel N x N matmul for a group of G channels (batched on the MXU)."""
    o_ref[0] = jnp.einsum('gik,gkj->gij', a_ref[0], b_ref[0],
                          preferred_element_type=jnp.float32).astype(o_ref.dtype)


def _pool_project_cf_kernel(x_ref, m2_ref, wdt_ref, wot_ref, bp_ref, o_ref):
    """Masked diag / off-diag mean pooling fused with pe_project (channels-first).
    x: [1,D,TI,N] (already masked by mask2d); m2: [1,TI,N]; wdt/wot: [Dout,D];
    bp: [Dout,1]; o: [1,Dout,TI] (lane-dense over the row tile)."""
    ti = x_ref.shape[2]
    n = x_ref.shape[3]
    i0 = pl.program_id(1) * ti
    x = x_ref[0].astype(jnp.float32)              # [D, TI, N]
    m2 = m2_ref[0].astype(jnp.float32)            # [TI, N]
    rows = lax.broadcasted_iota(jnp.int32, (ti, n), 0) + i0
    cols = lax.broadcasted_iota(jnp.int32, (ti, n), 1)
    is_diag = rows == cols
    # x is pre-masked by mask2d, so a plain lane reduce equals sum_j x * mask2d.
    row_sum = jnp.sum(x, axis=-1)                                   # [D, TI]
    diag = jnp.sum(jnp.where(is_diag[None], x, 0.0), axis=-1)       # [D, TI]
    diag_m = jnp.sum(jnp.where(is_diag, m2, 0.0)[None], axis=-1)    # [1, TI]
    count = jnp.sum(m2[None], axis=-1) - diag_m                     # [1, TI]
    # TODO(synk): off-diag denominator convention assumed = (#valid neighbours - 1), clamped >= 1.
    mean_off = (row_sum - diag * diag_m) / jnp.maximum(count, 1.0)
    out = (jnp.dot(wdt_ref[...], diag, preferred_element_type=jnp.float32)
           + jnp.dot(wot_ref[...], mean_off, preferred_element_type=jnp.float32)
           + bp_ref[...])
    o_ref[0] = out.astype(o_ref.dtype)


# ------------------------------ kernel wrappers -------------------------------

def masked_mlp_cf(x, mflat, w1t, b1c, w2t, b2c):
    """x: [B,Cin,P]; mflat: [B,1,P] -> [B,Cout,P] = mask * MLP(x) (channels-first)."""
    B, Cin, P = x.shape
    H = w1t.shape[0]
    Cout = w2t.shape[0]
    TP = _pair_tile(P, max(Cin, H, Cout), x.dtype.itemsize)
    const = lambda a: pl.BlockSpec(a.shape, lambda b, t: (0, 0))
    act = lambda C: pl.BlockSpec((1, C, TP), lambda b, t: (b, 0, t))
    return pl.pallas_call(
        _mlp_cf_kernel,
        out_shape=jax.ShapeDtypeStruct((B, Cout, P), x.dtype),
        grid=(B, P // TP),
        in_specs=[act(Cin), const(w1t), const(b1c), const(w2t), const(b2c),
                  pl.BlockSpec((1, 1, TP), lambda b, t: (b, 0, t))],
        out_specs=act(Cout),
        compiler_params=pltpu.CompilerParams(
            dimension_semantics=("parallel", "parallel")),
    )(x, w1t, b1c, w2t, b2c, mflat)


def dual_masked_mlp_cf(x, mflat, cf_a, cf_b):
    """Fused mlp1+mlp2: one read of X, two masked outputs [B,H,P] each."""
    B, Cin, P = x.shape
    w1a, b1a, w2a, b2a = cf_a
    w1b, b1b, w2b, b2b = cf_b
    H1, H2 = w2a.shape[0], w2b.shape[0]
    Cmax = max(Cin, w1a.shape[0], w1b.shape[0], H1, H2)
    TP = _pair_tile(P, Cmax, x.dtype.itemsize)
    const = lambda a: pl.BlockSpec(a.shape, lambda b, t: (0, 0))
    act = lambda C: pl.BlockSpec((1, C, TP), lambda b, t: (b, 0, t))
    return pl.pallas_call(
        _dual_mlp_cf_kernel,
        out_shape=(jax.ShapeDtypeStruct((B, H1, P), x.dtype),
                   jax.ShapeDtypeStruct((B, H2, P), x.dtype)),
        grid=(B, P // TP),
        in_specs=[act(Cin),
                  const(w1a), const(b1a), const(w2a), const(b2a),
                  const(w1b), const(b1b), const(w2b), const(b2b),
                  pl.BlockSpec((1, 1, TP), lambda b, t: (b, 0, t))],
        out_specs=(act(H1), act(H2)),
        compiler_params=pltpu.CompilerParams(
            dimension_semantics=("parallel", "parallel")),
    )(x, w1a, b1a, w2a, b2a, w1b, b1b, w2b, b2b, mflat)


def concat_masked_mlp_cf(x, u, mflat, w1xt, w1ut, b1c, w2t, b2c):
    """mlp3 over the (virtual) concat of X and mult, channels-first."""
    B, H, P = x.shape
    Hu = u.shape[1]
    Hh = w1xt.shape[0]
    Cout = w2t.shape[0]
    TP = _pair_tile(P, max(H, Hu, Hh, Cout), x.dtype.itemsize)
    const = lambda a: pl.BlockSpec(a.shape, lambda b, t: (0, 0))
    act = lambda C: pl.BlockSpec((1, C, TP), lambda b, t: (b, 0, t))
    return pl.pallas_call(
        _concat_mlp_cf_kernel,
        out_shape=jax.ShapeDtypeStruct((B, Cout, P), x.dtype),
        grid=(B, P // TP),
        in_specs=[act(H), act(Hu),
                  const(w1xt), const(w1ut), const(b1c), const(w2t), const(b2c),
                  pl.BlockSpec((1, 1, TP), lambda b, t: (b, 0, t))],
        out_specs=act(Cout),
        compiler_params=pltpu.CompilerParams(
            dimension_semantics=("parallel", "parallel")),
    )(x, u, w1xt, w1ut, b1c, w2t, b2c, mflat)


def channelwise_matmul_cf(m1, m2, N):
    """m1, m2: [B,H,N*N] channels-first -> einsum('bhik,bhkj->bhij') flattened back.
    No HBM transposes: the channels-first layout is already [B,H,N,N]."""
    B, H, P = m1.shape
    a4 = m1.reshape(B, H, N, N)
    b4 = m2.reshape(B, H, N, N)
    if H <= 32:
        G = H
    else:
        G = next((g for g in (32, 24, 16, 8) if H % g == 0), H)
    blk = pl.BlockSpec((1, G, N, N), lambda b, g: (b, g, 0, 0))
    out = pl.pallas_call(
        _cw_matmul_kernel,
        out_shape=jax.ShapeDtypeStruct((B, H, N, N), m1.dtype),
        grid=(B, H // G),
        in_specs=[blk, blk],
        out_specs=blk,
        compiler_params=pltpu.CompilerParams(
            dimension_semantics=("parallel", "parallel")),
    )(a4, b4)
    return out.reshape(B, H, P)


def pool_and_project_cf(x_flat, mask2d, wdt, wot, bpc, N):
    """x_flat: [B,D,N*N] final masked pair features; mask2d: [B,N,N].
    Returns [B,Dout,N] (channels-first, f32)."""
    B, D, P = x_flat.shape
    Dout = wdt.shape[0]
    x4 = x_flat.reshape(B, D, N, N)
    TI = _row_tile(N, D, x_flat.dtype.itemsize)
    const = lambda a: pl.BlockSpec(a.shape, lambda b, i: (0, 0))
    return pl.pallas_call(
        _pool_project_cf_kernel,
        out_shape=jax.ShapeDtypeStruct((B, Dout, N), jnp.float32),
        grid=(B, N // TI),
        in_specs=[pl.BlockSpec((1, D, TI, N), lambda b, i: (b, 0, i, 0)),
                  pl.BlockSpec((1, TI, N), lambda b, i: (b, i, 0)),
                  const(wdt), const(wot), const(bpc)],
        out_specs=pl.BlockSpec((1, Dout, TI), lambda b, i: (b, 0, i)),
        compiler_params=pltpu.CompilerParams(
            dimension_semantics=("parallel", "parallel")),
    )(x4, mask2d, wdt, wot, bpc)


# ------------------------------ model forward --------------------------------

def _cf_mlp_params(p, act_dtype):
    """Stored [in,out] weights -> channels-first [out,in]; biases as columns (f32)."""
    return (p["w1"].T.astype(act_dtype), p["b1"].T,
            p["w2"].T.astype(act_dtype), p["b2"].T)


def ppgn_phi_forward(params, W_pad, mask, act_dtype=jnp.float32):
    """W_pad: [B,N,N,M] padded spectral tensors (as the PyTorch module builds them);
    mask: [B,N] float in {0,1}.  Returns per-node PE before the final valid-node
    gather: [B, N, out_dims] (f32)."""
    B, N, _, M = W_pad.shape
    P = N * N

    # One-time flip of the (small, M-channel) input to the channels-first layout.
    x = jnp.transpose(W_pad, (0, 3, 1, 2)).reshape(B, M, P).astype(act_dtype)
    mask2d = (mask[:, :, None] * mask[:, None, :]).astype(act_dtype)   # [B, N, N]
    mflat = mask2d.reshape(B, 1, P)

    cf = lambda p: _cf_mlp_params(p, act_dtype)

    # MaskedPPGN
    w1t, b1c, w2t, b2c = cf(params["init"])
    X = masked_mlp_cf(x, mflat, w1t, b1c, w2t, b2c)                    # [B, H, P]
    H = X.shape[1]
    for lp in params["rb"]:
        m1, m2 = dual_masked_mlp_cf(X, mflat, cf(lp["mlp1"]), cf(lp["mlp2"]))
        mult = channelwise_matmul_cf(m1, m2, N)
        w1t3 = lp["mlp3"]["w1"].T.astype(act_dtype)                    # [Hh, 2H]
        X = concat_masked_mlp_cf(X, mult, mflat,
                                 w1t3[:, :H], w1t3[:, H:],
                                 lp["mlp3"]["b1"].T,
                                 lp["mlp3"]["w2"].T.astype(act_dtype),
                                 lp["mlp3"]["b2"].T)
    w1t, b1c, w2t, b2c = cf(params["final"])
    X = masked_mlp_cf(X, mflat, w1t, b1c, w2t, b2c)                    # [B, out, P]
    # TODO(synk): the final pair-MLP is kept as its own lane-dense pass instead of
    # being fused into the pooling kernel, to avoid an in-kernel 3D matmul/reshape.

    # mask2d_diag_offdiag_meanpool + pe_project (fused, channels-first output)
    D = X.shape[1]
    wdt = params["proj_w"][:D, :].T            # [Dout, D] (diag half)
    wot = params["proj_w"][D:, :].T            # [Dout, D] (off-diag half)
    bpc = params["proj_b"].T                   # [Dout, 1]
    pe_cf = pool_and_project_cf(X, mask2d, wdt, wot, bpc, N)           # [B, Dout, N]
    return jnp.transpose(pe_cf, (0, 2, 1))                             # [B, N, Dout]


# ------------------------------ parameter init --------------------------------

def _init_linear(key, din, dout):
    kw, kb = jax.random.split(key)
    w = jax.random.normal(kw, (din, dout), jnp.float32) / np.sqrt(din)
    b = 0.01 * jax.random.normal(kb, (1, dout), jnp.float32)
    return w.astype(jnp.float32), b.astype(jnp.float32)


def _init_mlp(key, din, dhid, dout):
    k1, k2 = jax.random.split(key)
    w1, b1 = _init_linear(k1, din, dhid)
    w2, b2 = _init_linear(k2, dhid, dout)
    return {"w1": w1, "b1": b1, "w2": w2, "b2": b2}


def make_params(key, n_layers, in_dims, hidden_dims, out_dims):
    keys = iter(jax.random.split(key, 3 + 3 * n_layers))
    params = {"init": _init_mlp(next(keys), in_dims, hidden_dims, hidden_dims), "rb": []}
    for _ in range(n_layers):
        params["rb"].append({
            "mlp1": _init_mlp(next(keys), hidden_dims, hidden_dims, hidden_dims),
            "mlp2": _init_mlp(next(keys), hidden_dims, hidden_dims, hidden_dims),
            "mlp3": _init_mlp(next(keys), 2 * hidden_dims, hidden_dims, hidden_dims),
        })
    params["final"] = _init_mlp(next(keys), hidden_dims, hidden_dims, out_dims)
    params["proj_w"], params["proj_b"] = _init_linear(next(keys), 2 * out_dims, out_dims)
    return params


# ------------------------------ pure-JAX reference ----------------------------

def reference_forward(params, W_pad, mask):
    mask2d = mask[:, :, None] * mask[:, None, :]

    def mlp(x, p):
        h = jnp.maximum(jnp.einsum('...i,ij->...j', x, p["w1"]) + p["b1"][0], 0.0)
        y = jnp.einsum('...i,ij->...j', h, p["w2"]) + p["b2"][0]
        return y * mask2d[..., None]

    X = mlp(W_pad, params["init"])
    for lp in params["rb"]:
        m1 = mlp(X, lp["mlp1"])
        m2 = mlp(X, lp["mlp2"])
        mult = jnp.einsum('bikh,bkjh->bijh', m1, m2)
        X = mlp(jnp.concatenate([X, mult], axis=-1), lp["mlp3"])
    X = mlp(X, params["final"])
    diag = jnp.diagonal(X, axis1=1, axis2=2).transpose(0, 2, 1)
    diag_m = jnp.diagonal(mask2d, axis1=1, axis2=2)
    row_sum = jnp.einsum('bijd,bij->bid', X, mask2d)
    off_sum = row_sum - diag * diag_m[..., None]
    count = mask2d.sum(axis=2) - diag_m
    mean_off = off_sum / jnp.maximum(count, 1.0)[..., None]
    feat = jnp.concatenate([diag, mean_off], axis=-1)
    return feat @ params["proj_w"] + params["proj_b"][0]


# ------------------------------------ main ------------------------------------

if __name__ == "__main__":
    key = jax.random.PRNGKey(0)
    n_layers, in_dims, hidden_dims, out_dims = 2, 4, 16, 8
    sizes = [6, 8]                      # two graphs in the batch
    n_max = max(sizes)
    B = len(sizes)

    k_params, k_data = jax.random.split(key)
    params = make_params(k_params, n_layers, in_dims, hidden_dims, out_dims)

    # Padded W tensor and node mask (the padding loop of the PyTorch forward; glue).
    W_pad = jnp.zeros((B, n_max, n_max, in_dims), jnp.float32)
    mask = jnp.zeros((B, n_max), jnp.float32)
    for b, n in enumerate(sizes):
        kb = jax.random.fold_in(k_data, b)
        Wb = jax.random.normal(kb, (n, n, in_dims), jnp.float32)
        Wb = 0.5 * (Wb + jnp.transpose(Wb, (1, 0, 2)))   # V psi(Lambda) V^T is symmetric
        W_pad = W_pad.at[b, :n, :n, :].set(Wb)
        mask = mask.at[b, :n].set(1.0)

    mask_flat = np.asarray(mask).reshape(-1).astype(bool)
    ref = np.asarray(reference_forward(params, W_pad, mask)).reshape(-1, out_dims)
    ref_valid = ref[mask_flat]

    # f32 activations: strict check against the pure-JAX reference.
    fwd32 = jax.jit(functools.partial(ppgn_phi_forward, act_dtype=jnp.float32))
    pe32 = jax.block_until_ready(fwd32(params, W_pad, mask))     # [B, n_max, out]
    pe32_valid = np.asarray(pe32).reshape(-1, out_dims)[mask_flat]
    assert pe32_valid.shape == (sum(sizes), out_dims)
    np.testing.assert_allclose(pe32_valid, ref_valid, rtol=2e-3, atol=2e-3)

    # bf16 activation storage (f32 accumulation): halves HBM traffic; loose check.
    fwd16 = jax.jit(functools.partial(ppgn_phi_forward, act_dtype=jnp.bfloat16))
    pe16 = jax.block_until_ready(fwd16(params, W_pad, mask))
    pe16_valid = np.asarray(pe16).reshape(-1, out_dims)[mask_flat]
    np.testing.assert_allclose(pe16_valid, ref_valid, rtol=1e-1, atol=1e-1)

    print("KERNEL_OK")
</pallas_src>

<mosaic_0001>
module attributes {stable_mosaic.version = 11 : i64} {
  func.func @_cw_matmul_kernel(%arg0: i32, %arg1: i32, %arg2: memref<1x16x8x8xf32, #tpu.memory_space<vmem>>, %arg3: memref<1x16x8x8xf32, #tpu.memory_space<vmem>>, %arg4: memref<1x16x8x8xf32, #tpu.memory_space<vmem>>) attributes {dimension_semantics = [#tpu.dimension_semantics<parallel>, #tpu.dimension_semantics<parallel>], iteration_bounds = array<i64: 2, 1>, scalar_prefetch = 0 : i64, scratch_operands = 0 : i64, tpu.core_type = #tpu.core_type<tc>, window_params = [{transform_indices = @transform_0, window_bounds = array<i64: 1, 16, 8, 8>}, {transform_indices = @transform_1, window_bounds = array<i64: 1, 16, 8, 8>}, {transform_indices = @transform_2, window_bounds = array<i64: 1, 16, 8, 8>}]} {
    %c0 = arith.constant 0 : index
    %c0_0 = arith.constant 0 : index
    %c0_1 = arith.constant 0 : index
    %c0_2 = arith.constant 0 : index
    %0 = vector.load %arg2[%c0, %c0_0, %c0_1, %c0_2] : memref<1x16x8x8xf32, #tpu.memory_space<vmem>>, vector<1x16x8x8xf32>
    %1 = vector.shape_cast %0 : vector<1x16x8x8xf32> to vector<16x8x8xf32>
    %c0_3 = arith.constant 0 : index
    %c0_4 = arith.constant 0 : index
    %c0_5 = arith.constant 0 : index
    %c0_6 = arith.constant 0 : index
    %2 = vector.load %arg3[%c0_3, %c0_4, %c0_5, %c0_6] : memref<1x16x8x8xf32, #tpu.memory_space<vmem>>, vector<1x16x8x8xf32>
    %3 = vector.shape_cast %2 : vector<1x16x8x8xf32> to vector<16x8x8xf32>
    "tpu.trace_start"() <{level = 10 : i32, message = "gik,gkj->gij"}> : () -> ()
    %cst = arith.constant dense<0.000000e+00> : vector<16x8x8xf32>
    %4 = tpu.matmul %1, %3, %cst {dimension_numbers = #tpu.dot_dimension_numbers<[2], [1], [1], [2], [0, 0, 0, 1, 1, 2], [0], [0]>} : vector<16x8x8xf32>, vector<16x8x8xf32>, vector<16x8x8xf32> -> vector<16x8x8xf32>
    "tpu.trace_stop"() : () -> ()
    %c0_7 = arith.constant 0 : index
    %c0_8 = arith.constant 0 : index
    %c0_9 = arith.constant 0 : index
    %c0_10 = arith.constant 0 : index
    %5 = vector.load %arg4[%c0_7, %c0_8, %c0_9, %c0_10] : memref<1x16x8x8xf32, #tpu.memory_space<vmem>>, vector<1x16x8x8xf32>
    %6 = vector.shape_cast %5 : vector<1x16x8x8xf32> to vector<16x8x8xf32>
    %7 = vector.shape_cast %4 : vector<16x8x8xf32> to vector<1x16x8x8xf32>
    tpu.vector_store %arg4[%c0_7, %c0_8, %c0_9, %c0_10], %7 {strides = array<i32>} : memref<1x16x8x8xf32, #tpu.memory_space<vmem>>, vector<1x16x8x8xf32>,
    return
  }
  func.func @transform_0(%arg0: i32, %arg1: i32) -> (i32, i32, i32, i32) {
    %c0_i32 = arith.constant 0 : i32
    %c0_i32_0 = arith.constant 0 : i32
    %c0_i32_1 = arith.constant 0 : i32
    return %arg0, %arg1, %c0_i32, %c0_i32_0 : i32, i32, i32, i32
  }
  func.func @transform_1(%arg0: i32, %arg1: i32) -> (i32, i32, i32, i32) {
    %c0_i32 = arith.constant 0 : i32
    %c0_i32_0 = arith.constant 0 : i32
    %c0_i32_1 = arith.constant 0 : i32
    return %arg0, %arg1, %c0_i32, %c0_i32_0 : i32, i32, i32, i32
  }
  func.func @transform_2(%arg0: i32, %arg1: i32) -> (i32, i32, i32, i32) {
    %c0_i32 = arith.constant 0 : i32
    %c0_i32_0 = arith.constant 0 : i32
    %c0_i32_1 = arith.constant 0 : i32
    return %arg0, %arg1, %c0_i32, %c0_i32_0 : i32, i32, i32, i32
  }
}

module attributes {stable_mosaic.version = 11 : i64} {
  func.func @_mlp_cf_kernel(%arg0: i32, %arg1: i32, %arg2: memref<1x4x64xf32, #tpu.memory_space<vmem>>, %arg3: memref<16x4xf32, #tpu.memory_space<vmem>>, %arg4: memref<16x1xf32, #tpu.memory_space<vmem>>, %arg5: memref<16x16xf32, #tpu.memory_space<vmem>>, %arg6: memref<16x1xf32, #tpu.memory_space<vmem>>, %arg7: memref<1x1x64xf32, #tpu.memory_space<vmem>>, %arg8: memref<1x16x64xf32, #tpu.memory_space<vmem>>) attributes {dimension_semantics = [#tpu.dimension_semantics<parallel>, #tpu.dimension_semantics<parallel>], iteration_bounds = array<i64: 2, 1>, scalar_prefetch = 0 : i64, scratch_operands = 0 : i64, tpu.core_type = #tpu.core_type<tc>, window_params = [{transform_indices = @transform_0, window_bounds = array<i64: 1, 4, 64>}, {pipeline_mode = #tpu.pipeline_mode<synchronous>, transform_indices = @transform_1, window_bounds = array<i64: 16, 4>}, {pipeline_mode = #tpu.pipeline_mode<synchronous>, transform_indices = @transform_2, window_bounds = array<i64: 16, 1>}, {pipeline_mode = #tpu.pipeline_mode<synchronous>, transform_indices = @transform_3, window_bounds = array<i64: 16, 16>}, {pipeline_mode = #tpu.pipeline_mode<synchronous>, transform_indices = @transform_4, window_bounds = array<i64: 16, 1>}, {transform_indices = @transform_5, window_bounds = array<i64: 1, 1, 64>}, {transform_indices = @transform_6, window_bounds = array<i64: 1, 16, 64>}]} {
    %c0 = arith.constant 0 : index
    %c0_0 = arith.constant 0 : index
    %c0_1 = arith.constant 0 : index
    %0 = vector.load %arg2[%c0, %c0_0, %c0_1] : memref<1x4x64xf32, #tpu.memory_space<vmem>>, vector<1x4x64xf32>
    %1 = vector.shape_cast %0 : vector<1x4x64xf32> to vector<4x64xf32>
    %c0_2 = arith.constant 0 : index
    %c0_3 = arith.constant 0 : index
    %2 = vector.load %arg3[%c0_2, %c0_3] : memref<16x4xf32, #tpu.memory_space<vmem>>, vector<16x4xf32>
    %cst = arith.constant dense<0.000000e+00> : vector<16x64xf32>
    %3 = tpu.matmul %2, %1, %cst {dimension_numbers = #tpu.dot_dimension_numbers<[1], [0], [0], [1], [0, 0, 1, 1], [], []>} : vector<16x4xf32>, vector<4x64xf32>, vector<16x64xf32> -> vector<16x64xf32>
    %c0_4 = arith.constant 0 : index
    %c0_5 = arith.constant 0 : index
    %4 = vector.load %arg4[%c0_4, %c0_5] : memref<16x1xf32, #tpu.memory_space<vmem>>, vector<16x1xf32>
    %5 = vector.broadcast %4 : vector<16x1xf32> to vector<16x64xf32>
    %6 = arith.addf %3, %5 : vector<16x64xf32>
    %cst_6 = arith.constant 0.000000e+00 : f32
    %7 = vector.broadcast %cst_6 : f32 to vector<16x64xf32>
    %8 = arith.maximumf %6, %7 : vector<16x64xf32>
    %c0_7 = arith.constant 0 : index
    %c0_8 = arith.constant 0 : index
    %9 = vector.load %arg5[%c0_7, %c0_8] : memref<16x16xf32, #tpu.memory_space<vmem>>, vector<16x16xf32>
    %cst_9 = arith.constant dense<0.000000e+00> : vector<16x64xf32>
    %10 = tpu.matmul %9, %8, %cst_9 {dimension_numbers = #tpu.dot_dimension_numbers<[1], [0], [0], [1], [0, 0, 1, 1], [], []>} : vector<16x16xf32>, vector<16x64xf32>, vector<16x64xf32> -> vector<16x64xf32>
    %c0_10 = arith.constant 0 : index
    %c0_11 = arith.constant 0 : index
    %11 = vector.load %arg6[%c0_10, %c0_11] : memref<16x1xf32, #tpu.memory_space<vmem>>, vector<16x1xf32>
    %12 = vector.broadcast %11 : vector<16x1xf32> to vector<16x64xf32>
    %13 = arith.addf %10, %12 : vector<16x64xf32>
    %c0_12 = arith.constant 0 : index
    %c0_13 = arith.constant 0 : index
    %c0_14 = arith.constant 0 : index
    %14 = vector.load %arg7[%c0_12, %c0_13, %c0_14] : memref<1x1x64xf32, #tpu.memory_space<vmem>>, vector<1x1x64xf32>
    %15 = vector.shape_cast %14 : vector<1x1x64xf32> to vector<1x64xf32>
    %16 = vector.broadcast %15 : vector<1x64xf32> to vector<16x64xf32>
    %17 = arith.mulf %13, %16 : vector<16x64xf32>
    %c0_15 = arith.constant 0 : index
    %c0_16 = arith.constant 0 : index
    %c0_17 = arith.constant 0 : index
    %18 = vector.load %arg8[%c0_15, %c0_16, %c0_17] : memref<1x16x64xf32, #tpu.memory_space<vmem>>, vector<1x16x64xf32>
    %19 = vector.shape_cast %18 : vector<1x16x64xf32> to vector<16x64xf32>
    %20 = vector.shape_cast %17 : vector<16x64xf32> to vector<1x16x64xf32>
    tpu.vector_store %arg8[%c0_15, %c0_16, %c0_17], %20 {strides = array<i32>} : memref<1x16x64xf32, #tpu.memory_space<vmem>>, vector<1x16x64xf32>,
    return
  }
  func.func @transform_0(%arg0: i32, %arg1: i32) -> (i32, i32, i32) {
    %c0_i32 = arith.constant 0 : i32
    %c0_i32_0 = arith.constant 0 : i32
    return %arg0, %c0_i32, %arg1 : i32, i32, i32
  }
  func.func @transform_1(%arg0: i32, %arg1: i32) -> (i32, i32) {
    %c0_i32 = arith.constant 0 : i32
    %c0_i32_0 = arith.constant 0 : i32
    %c0_i32_1 = arith.constant 0 : i32
    return %c0_i32, %c0_i32_0 : i32, i32
  }
  func.func @transform_2(%arg0: i32, %arg1: i32) -> (i32, i32) {
    %c0_i32 = arith.constant 0 : i32
    %c0_i32_0 = arith.constant 0 : i32
    %c0_i32_1 = arith.constant 0 : i32
    return %c0_i32, %c0_i32_0 : i32, i32
  }
  func.func @transform_3(%arg0: i32, %arg1: i32) -> (i32, i32) {
    %c0_i32 = arith.constant 0 : i32
    %c0_i32_0 = arith.constant 0 : i32
    %c0_i32_1 = arith.constant 0 : i32
    return %c0_i32, %c0_i32_0 : i32, i32
  }
  func.func @transform_4(%arg0: i32, %arg1: i32) -> (i32, i32) {
    %c0_i32 = arith.constant 0 : i32
    %c0_i32_0 = arith.constant 0 : i32
    %c0_i32_1 = arith.constant 0 : i32
    return %c0_i32, %c0_i32_0 : i32, i32
  }
  func.func @transform_5(%arg0: i32, %arg1: i32) -> (i32, i32, i32) {
    %c0_i32 = arith.constant 0 : i32
    %c0_i32_0 = arith.constant 0 : i32
    return %arg0, %c0_i32, %arg1 : i32, i32, i32
  }
  func.func @transform_6(%arg0: i32, %arg1: i32) -> (i32, i32, i32) {
    %c0_i32 = arith.constant 0 : i32
    %c0_i32_0 = arith.constant 0 : i32
    return %arg0, %c0_i32, %arg1 : i32, i32, i32
  }
}

module attributes {stable_mosaic.version = 11 : i64} {
  func.func @_dual_mlp_cf_kernel(%arg0: i32, %arg1: i32, %arg2: memref<1x16x64xf32, #tpu.memory_space<vmem>>, %arg3: memref<16x16xf32, #tpu.memory_space<vmem>>, %arg4: memref<16x1xf32, #tpu.memory_space<vmem>>, %arg5: memref<16x16xf32, #tpu.memory_space<vmem>>, %arg6: memref<16x1xf32, #tpu.memory_space<vmem>>, %arg7: memref<16x16xf32, #tpu.memory_space<vmem>>, %arg8: memref<16x1xf32, #tpu.memory_space<vmem>>, %arg9: memref<16x16xf32, #tpu.memory_space<vmem>>, %arg10: memref<16x1xf32, #tpu.memory_space<vmem>>, %arg11: memref<1x1x64xf32, #tpu.memory_space<vmem>>, %arg12: memref<1x16x64xf32, #tpu.memory_space<vmem>>, %arg13: memref<1x16x64xf32, #tpu.memory_space<vmem>>) attributes {dimension_semantics = [#tpu.dimension_semantics<parallel>, #tpu.dimension_semantics<parallel>], iteration_bounds = array<i64: 2, 1>, scalar_prefetch = 0 : i64, scratch_operands = 0 : i64, tpu.core_type = #tpu.core_type<tc>, window_params = [{transform_indices = @transform_0, window_bounds = array<i64: 1, 16, 64>}, {pipeline_mode = #tpu.pipeline_mode<synchronous>, transform_indices = @transform_1, window_bounds = array<i64: 16, 16>}, {pipeline_mode = #tpu.pipeline_mode<synchronous>, transform_indices = @transform_2, window_bounds = array<i64: 16, 1>}, {pipeline_mode = #tpu.pipeline_mode<synchronous>, transform_indices = @transform_3, window_bounds = array<i64: 16, 16>}, {pipeline_mode = #tpu.pipeline_mode<synchronous>, transform_indices = @transform_4, window_bounds = array<i64: 16, 1>}, {pipeline_mode = #tpu.pipeline_mode<synchronous>, transform_indices = @transform_5, window_bounds = array<i64: 16, 16>}, {pipeline_mode = #tpu.pipeline_mode<synchronous>, transform_indices = @transform_6, window_bounds = array<i64: 16, 1>}, {pipeline_mode = #tpu.pipeline_mode<synchronous>, transform_indices = @transform_7, window_bounds = array<i64: 16, 16>}, {pipeline_mode = #tpu.pipeline_mode<synchronous>, transform_indices = @transform_8, window_bounds = array<i64: 16, 1>}, {transform_indices = @transform_9, window_bounds = array<i64: 1, 1, 64>}, {transform_indices = @transform_10, window_bounds = array<i64: 1, 16, 64>}, {transform_indices = @transform_11, window_bounds = array<i64: 1, 16, 64>}]} {
    %c0 = arith.constant 0 : index
    %c0_0 = arith.constant 0 : index
    %c0_1 = arith.constant 0 : index
    %0 = vector.load %arg2[%c0, %c0_0, %c0_1] : memref<1x16x64xf32, #tpu.memory_space<vmem>>, vector<1x16x64xf32>
    %1 = vector.shape_cast %0 : vector<1x16x64xf32> to vector<16x64xf32>
    %c0_2 = arith.constant 0 : index
    %c0_3 = arith.constant 0 : index
    %c0_4 = arith.constant 0 : index
    %2 = vector.load %arg11[%c0_2, %c0_3, %c0_4] : memref<1x1x64xf32, #tpu.memory_space<vmem>>, vector<1x1x64xf32>
    %3 = vector.shape_cast %2 : vector<1x1x64xf32> to vector<1x64xf32>
    %c0_5 = arith.constant 0 : index
    %c0_6 = arith.constant 0 : index
    %4 = vector.load %arg3[%c0_5, %c0_6] : memref<16x16xf32, #tpu.memory_space<vmem>>, vector<16x16xf32>
    %cst = arith.constant dense<0.000000e+00> : vector<16x64xf32>
    %5 = tpu.matmul %4, %1, %cst {dimension_numbers = #tpu.dot_dimension_numbers<[1], [0], [0], [1], [0, 0, 1, 1], [], []>} : vector<16x16xf32>, vector<16x64xf32>, vector<16x64xf32> -> vector<16x64xf32>
    %c0_7 = arith.constant 0 : index
    %c0_8 = arith.constant 0 : index
    %6 = vector.load %arg4[%c0_7, %c0_8] : memref<16x1xf32, #tpu.memory_space<vmem>>, vector<16x1xf32>
    %7 = vector.broadcast %6 : vector<16x1xf32> to vector<16x64xf32>
    %8 = arith.addf %5, %7 : vector<16x64xf32>
    %cst_9 = arith.constant 0.000000e+00 : f32
    %9 = vector.broadcast %cst_9 : f32 to vector<16x64xf32>
    %10 = arith.maximumf %8, %9 : vector<16x64xf32>
    %c0_10 = arith.constant 0 : index
    %c0_11 = arith.constant 0 : index
    %11 = vector.load %arg5[%c0_10, %c0_11] : memref<16x16xf32, #tpu.memory_space<vmem>>, vector<16x16xf32>
    %cst_12 = arith.constant dense<0.000000e+00> : vector<16x64xf32>
    %12 = tpu.matmul %11, %10, %cst_12 {dimension_numbers = #tpu.dot_dimension_numbers<[1], [0], [0], [1], [0, 0, 1, 1], [], []>} : vector<16x16xf32>, vector<16x64xf32>, vector<16x64xf32> -> vector<16x64xf32>
    %c0_13 = arith.constant 0 : index
    %c0_14 = arith.constant 0 : index
    %13 = vector.load %arg6[%c0_13, %c0_14] : memref<16x1xf32, #tpu.memory_space<vmem>>, vector<16x1xf32>
    %14 = vector.broadcast %13 : vector<16x1xf32> to vector<16x64xf32>
    %15 = arith.addf %12, %14 : vector<16x64xf32>
    %16 = vector.broadcast %3 : vector<1x64xf32> to vector<16x64xf32>
    %17 = arith.mulf %15, %16 : vector<16x64xf32>
    %c0_15 = arith.constant 0 : index
    %c0_16 = arith.constant 0 : index
    %c0_17 = arith.constant 0 : index
    %18 = vector.load %arg12[%c0_15, %c0_16, %c0_17] : memref<1x16x64xf32, #tpu.memory_space<vmem>>, vector<1x16x64xf32>
    %19 = vector.shape_cast %18 : vector<1x16x64xf32> to vector<16x64xf32>
    %20 = vector.shape_cast %17 : vector<16x64xf32> to vector<1x16x64xf32>
    tpu.vector_store %arg12[%c0_15, %c0_16, %c0_17], %20 {strides = array<i32>} : memref<1x16x64xf32, #tpu.memory_space<vmem>>, vector<1x16x64xf32>,
    %c0_18 = arith.constant 0 : index
    %c0_19 = arith.constant 0 : index
    %21 = vector.load %arg7[%c0_18, %c0_19] : memref<16x16xf32, #tpu.memory_space<vmem>>, vector<16x16xf32>
    %cst_20 = arith.constant dense<0.000000e+00> : vector<16x64xf32>
    %22 = tpu.matmul %21, %1, %cst_20 {dimension_numbers = #tpu.dot_dimension_numbers<[1], [0], [0], [1], [0, 0, 1, 1], [], []>} : vector<16x16xf32>, vector<16x64xf32>, vector<16x64xf32> -> vector<16x64xf32>
    %c0_21 = arith.constant 0 : index
    %c0_22 = arith.constant 0 : index
    %23 = vector.load %arg8[%c0_21, %c0_22] : memref<16x1xf32, #tpu.memory_space<vmem>>, vector<16x1xf32>
    %24 = vector.broadcast %23 : vector<16x1xf32> to vector<16x64xf32>
    %25 = arith.addf %22, %24 : vector<16x64xf32>
    %cst_23 = arith.constant 0.000000e+00 : f32
    %26 = vector.broadcast %cst_23 : f32 to vector<16x64xf32>
    %27 = arith.maximumf %25, %26 : vector<16x64xf32>
    %c0_24 = arith.constant 0 : index
    %c0_25 = arith.constant 0 : index
    %28 = vector.load %arg9[%c0_24, %c0_25] : memref<16x16xf32, #tpu.memory_space<vmem>>, vector<16x16xf32>
    %cst_26 = arith.constant dense<0.000000e+00> : vector<16x64xf32>
    %29 = tpu.matmul %28, %27, %cst_26 {dimension_numbers = #tpu.dot_dimension_numbers<[1], [0], [0], [1], [0, 0, 1, 1], [], []>} : vector<16x16xf32>, vector<16x64xf32>, vector<16x64xf32> -> vector<16x64xf32>
    %c0_27 = arith.constant 0 : index
    %c0_28 = arith.constant 0 : index
    %30 = vector.load %arg10[%c0_27, %c0_28] : memref<16x1xf32, #tpu.memory_space<vmem>>, vector<16x1xf32>
    %31 = vector.broadcast %30 : vector<16x1xf32> to vector<16x64xf32>
    %32 = arith.addf %29, %31 : vector<16x64xf32>
    %33 = vector.broadcast %3 : vector<1x64xf32> to vector<16x64xf32>
    %34 = arith.mulf %32, %33 : vector<16x64xf32>
    %c0_29 = arith.constant 0 : index
    %c0_30 = arith.constant 0 : index
    %c0_31 = arith.constant 0 : index
    %35 = vector.load %arg13[%c0_29, %c0_30, %c0_31] : memref<1x16x64xf32, #tpu.memory_space<vmem>>, vector<1x16x64xf32>
    %36 = vector.shape_cast %35 : vector<1x16x64xf32> to vector<16x64xf32>
    %37 = vector.shape_cast %34 : vector<16x64xf32> to vector<1x16x64xf32>
    tpu.vector_store %arg13[%c0_29, %c0_30, %c0_31], %37 {strides = array<i32>} : memref<1x16x64xf32, #tpu.memory_space<vmem>>, vector<1x16x64xf32>,
    return
  }
  func.func @transform_0(%arg0: i32, %arg1: i32) -> (i32, i32, i32) {
    %c0_i32 = arith.constant 0 : i32
    %c0_i32_0 = arith.constant 0 : i32
    return %arg0, %c0_i32, %arg1 : i32, i32, i32
  }
  func.func @transform_1(%arg0: i32, %arg1: i32) -> (i32, i32) {
    %c0_i32 = arith.constant 0 : i32
    %c0_i32_0 = arith.constant 0 : i32
    %c0_i32_1 = arith.constant 0 : i32
    return %c0_i32, %c0_i32_0 : i32, i32
  }
  func.func @transform_2(%arg0: i32, %arg1: i32) -> (i32, i32) {
    %c0_i32 = arith.constant 0 : i32
    %c0_i32_0 = arith.constant 0 : i32
    %c0_i32_1 = arith.constant 0 : i32
    return %c0_i32, %c0_i32_0 : i32, i32
  }
  func.func @transform_3(%arg0: i32, %arg1: i32) -> (i32, i32) {
    %c0_i32 = arith.constant 0 : i32
    %c0_i32_0 = arith.constant 0 : i32
    %c0_i32_1 = arith.constant 0 : i32
    return %c0_i32, %c0_i32_0 : i32, i32
  }
  func.func @transform_4(%arg0: i32, %arg1: i32) -> (i32, i32) {
    %c0_i32 = arith.constant 0 : i32
    %c0_i32_0 = arith.constant 0 : i32
    %c0_i32_1 = arith.constant 0 : i32
    return %c0_i32, %c0_i32_0 : i32, i32
  }
  func.func @transform_5(%arg0: i32, %arg1: i32) -> (i32, i32) {
    %c0_i32 = arith.constant 0 : i32
    %c0_i32_0 = arith.constant 0 : i32
    %c0_i32_1 = arith.constant 0 : i32
    return %c0_i32, %c0_i32_0 : i32, i32
  }
  func.func @transform_6(%arg0: i32, %arg1: i32) -> (i32, i32) {
    %c0_i32 = arith.constant 0 : i32
    %c0_i32_0 = arith.constant 0 : i32
    %c0_i32_1 = arith.constant 0 : i32
    return %c0_i32, %c0_i32_0 : i32, i32
  }
  func.func @transform_7(%arg0: i32, %arg1: i32) -> (i32, i32) {
    %c0_i32 = arith.constant 0 : i32
    %c0_i32_0 = arith.constant 0 : i32
    %c0_i32_1 = arith.constant 0 : i32
    return %c0_i32, %c0_i32_0 : i32, i32
  }
  func.func @transform_8(%arg0: i32, %arg1: i32) -> (i32, i32) {
    %c0_i32 = arith.constant 0 : i32
    %c0_i32_0 = arith.constant 0 : i32
    %c0_i32_1 = arith.constant 0 : i32
    return %c0_i32, %c0_i32_0 : i32, i32
  }
  func.func @transform_9(%arg0: i32, %arg1: i32) -> (i32, i32, i32) {
    %c0_i32 = arith.constant 0 : i32
    %c0_i32_0 = arith.constant 0 : i32
    return %arg0, %c0_i32, %arg1 : i32, i32, i32
  }
  func.func @transform_10(%arg0: i32, %arg1: i32) -> (i32, i32, i32) {
    %c0_i32 = arith.constant 0 : i32
    %c0_i32_0 = arith.constant 0 : i32
    return %arg0, %c0_i32, %arg1 : i32, i32, i32
  }
  func.func @transform_11(%arg0: i32, %arg1: i32) -> (i32, i32, i32) {
    %c0_i32 = arith.constant 0 : i32
    %c0_i32_0 = arith.constant 0 : i32
    return %arg0, %c0_i32, %arg1 : i32, i32, i32
  }
}

module attributes {stable_mosaic.version = 11 : i64} {
  func.func @_concat_mlp_cf_kernel(%arg0: i32, %arg1: i32, %arg2: memref<1x16x64xf32, #tpu.memory_space<vmem>>, %arg3: memref<1x16x64xf32, #tpu.memory_space<vmem>>, %arg4: memref<16x16xf32, #tpu.memory_space<vmem>>, %arg5: memref<16x16xf32, #tpu.memory_space<vmem>>, %arg6: memref<16x1xf32, #tpu.memory_space<vmem>>, %arg7: memref<16x16xf32, #tpu.memory_space<vmem>>, %arg8: memref<16x1xf32, #tpu.memory_space<vmem>>, %arg9: memref<1x1x64xf32, #tpu.memory_space<vmem>>, %arg10: memref<1x16x64xf32, #tpu.memory_space<vmem>>) attributes {dimension_semantics = [#tpu.dimension_semantics<parallel>, #tpu.dimension_semantics<parallel>], iteration_bounds = array<i64: 2, 1>, scalar_prefetch = 0 : i64, scratch_operands = 0 : i64, tpu.core_type = #tpu.core_type<tc>, window_params = [{transform_indices = @transform_0, window_bounds = array<i64: 1, 16, 64>}, {transform_indices = @transform_1, window_bounds = array<i64: 1, 16, 64>}, {pipeline_mode = #tpu.pipeline_mode<synchronous>, transform_indices = @transform_2, window_bounds = array<i64: 16, 16>}, {pipeline_mode = #tpu.pipeline_mode<synchronous>, transform_indices = @transform_3, window_bounds = array<i64: 16, 16>}, {pipeline_mode = #tpu.pipeline_mode<synchronous>, transform_indices = @transform_4, window_bounds = array<i64: 16, 1>}, {pipeline_mode = #tpu.pipeline_mode<synchronous>, transform_indices = @transform_5, window_bounds = array<i64: 16, 16>}, {pipeline_mode = #tpu.pipeline_mode<synchronous>, transform_indices = @transform_6, window_bounds = array<i64: 16, 1>}, {transform_indices = @transform_7, window_bounds = array<i64: 1, 1, 64>}, {transform_indices = @transform_8, window_bounds = array<i64: 1, 16, 64>}]} {
    %c0 = arith.constant 0 : index
    %c0_0 = arith.constant 0 : index
    %0 = vector.load %arg4[%c0, %c0_0] : memref<16x16xf32, #tpu.memory_space<vmem>>, vector<16x16xf32>
    %c0_1 = arith.constant 0 : index
    %c0_2 = arith.constant 0 : index
    %c0_3 = arith.constant 0 : index
    %1 = vector.load %arg2[%c0_1, %c0_2, %c0_3] : memref<1x16x64xf32, #tpu.memory_space<vmem>>, vector<1x16x64xf32>
    %2 = vector.shape_cast %1 : vector<1x16x64xf32> to vector<16x64xf32>
    %cst = arith.constant dense<0.000000e+00> : vector<16x64xf32>
    %3 = tpu.matmul %0, %2, %cst {dimension_numbers = #tpu.dot_dimension_numbers<[1], [0], [0], [1], [0, 0, 1, 1], [], []>} : vector<16x16xf32>, vector<16x64xf32>, vector<16x64xf32> -> vector<16x64xf32>
    %c0_4 = arith.constant 0 : index
    %c0_5 = arith.constant 0 : index
    %4 = vector.load %arg5[%c0_4, %c0_5] : memref<16x16xf32, #tpu.memory_space<vmem>>, vector<16x16xf32>
    %c0_6 = arith.constant 0 : index
    %c0_7 = arith.constant 0 : index
    %c0_8 = arith.constant 0 : index
    %5 = vector.load %arg3[%c0_6, %c0_7, %c0_8] : memref<1x16x64xf32, #tpu.memory_space<vmem>>, vector<1x16x64xf32>
    %6 = vector.shape_cast %5 : vector<1x16x64xf32> to vector<16x64xf32>
    %cst_9 = arith.constant dense<0.000000e+00> : vector<16x64xf32>
    %7 = tpu.matmul %4, %6, %cst_9 {dimension_numbers = #tpu.dot_dimension_numbers<[1], [0], [0], [1], [0, 0, 1, 1], [], []>} : vector<16x16xf32>, vector<16x64xf32>, vector<16x64xf32> -> vector<16x64xf32>
    %8 = arith.addf %3, %7 : vector<16x64xf32>
    %c0_10 = arith.constant 0 : index
    %c0_11 = arith.constant 0 : index
    %9 = vector.load %arg6[%c0_10, %c0_11] : memref<16x1xf32, #tpu.memory_space<vmem>>, vector<16x1xf32>
    %10 = vector.broadcast %9 : vector<16x1xf32> to vector<16x64xf32>
    %11 = arith.addf %8, %10 : vector<16x64xf32>
    %cst_12 = arith.constant 0.000000e+00 : f32
    %12 = vector.broadcast %cst_12 : f32 to vector<16x64xf32>
    %13 = arith.maximumf %11, %12 : vector<16x64xf32>
    %c0_13 = arith.constant 0 : index
    %c0_14 = arith.constant 0 : index
    %14 = vector.load %arg7[%c0_13, %c0_14] : memref<16x16xf32, #tpu.memory_space<vmem>>, vector<16x16xf32>
    %cst_15 = arith.constant dense<0.000000e+00> : vector<16x64xf32>
    %15 = tpu.matmul %14, %13, %cst_15 {dimension_numbers = #tpu.dot_dimension_numbers<[1], [0], [0], [1], [0, 0, 1, 1], [], []>} : vector<16x16xf32>, vector<16x64xf32>, vector<16x64xf32> -> vector<16x64xf32>
    %c0_16 = arith.constant 0 : index
    %c0_17 = arith.constant 0 : index
    %16 = vector.load %arg8[%c0_16, %c0_17] : memref<16x1xf32, #tpu.memory_space<vmem>>, vector<16x1xf32>
    %17 = vector.broadcast %16 : vector<16x1xf32> to vector<16x64xf32>
    %18 = arith.addf %15, %17 : vector<16x64xf32>
    %c0_18 = arith.constant 0 : index
    %c0_19 = arith.constant 0 : index
    %c0_20 = arith.constant 0 : index
    %19 = vector.load %arg9[%c0_18, %c0_19, %c0_20] : memref<1x1x64xf32, #tpu.memory_space<vmem>>, vector<1x1x64xf32>
    %20 = vector.shape_cast %19 : vector<1x1x64xf32> to vector<1x64xf32>
    %21 = vector.broadcast %20 : vector<1x64xf32> to vector<16x64xf32>
    %22 = arith.mulf %18, %21 : vector<16x64xf32>
    %c0_21 = arith.constant 0 : index
    %c0_22 = arith.constant 0 : index
    %c0_23 = arith.constant 0 : index
    %23 = vector.load %arg10[%c0_21, %c0_22, %c0_23] : memref<1x16x64xf32, #tpu.memory_space<vmem>>, vector<1x16x64xf32>
    %24 = vector.shape_cast %23 : vector<1x16x64xf32> to vector<16x64xf32>
    %25 = vector.shape_cast %22 : vector<16x64xf32> to vector<1x16x64xf32>
    tpu.vector_store %arg10[%c0_21, %c0_22, %c0_23], %25 {strides = array<i32>} : memref<1x16x64xf32, #tpu.memory_space<vmem>>, vector<1x16x64xf32>,
    return
  }
  func.func @transform_0(%arg0: i32, %arg1: i32) -> (i32, i32, i32) {
    %c0_i32 = arith.constant 0 : i32
    %c0_i32_0 = arith.constant 0 : i32
    return %arg0, %c0_i32, %arg1 : i32, i32, i32
  }
  func.func @transform_1(%arg0: i32, %arg1: i32) -> (i32, i32, i32) {
    %c0_i32 = arith.constant 0 : i32
    %c0_i32_0 = arith.constant 0 : i32
    return %arg0, %c0_i32, %arg1 : i32, i32, i32
  }
  func.func @transform_2(%arg0: i32, %arg1: i32) -> (i32, i32) {
    %c0_i32 = arith.constant 0 : i32
    %c0_i32_0 = arith.constant 0 : i32
    %c0_i32_1 = arith.constant 0 : i32
    return %c0_i32, %c0_i32_0 : i32, i32
  }
  func.func @transform_3(%arg0: i32, %arg1: i32) -> (i32, i32) {
    %c0_i32 = arith.constant 0 : i32
    %c0_i32_0 = arith.constant 0 : i32
    %c0_i32_1 = arith.constant 0 : i32
    return %c0_i32, %c0_i32_0 : i32, i32
  }
  func.func @transform_4(%arg0: i32, %arg1: i32) -> (i32, i32) {
    %c0_i32 = arith.constant 0 : i32
    %c0_i32_0 = arith.constant 0 : i32
    %c0_i32_1 = arith.constant 0 : i32
    return %c0_i32, %c0_i32_0 : i32, i32
  }
  func.func @transform_5(%arg0: i32, %arg1: i32) -> (i32, i32) {
    %c0_i32 = arith.constant 0 : i32
    %c0_i32_0 = arith.constant 0 : i32
    %c0_i32_1 = arith.constant 0 : i32
    return %c0_i32, %c0_i32_0 : i32, i32
  }
  func.func @transform_6(%arg0: i32, %arg1: i32) -> (i32, i32) {
    %c0_i32 = arith.constant 0 : i32
    %c0_i32_0 = arith.constant 0 : i32
    %c0_i32_1 = arith.constant 0 : i32
    return %c0_i32, %c0_i32_0 : i32, i32
  }
  func.func @transform_7(%arg0: i32, %arg1: i32) -> (i32, i32, i32) {
    %c0_i32 = arith.constant 0 : i32
    %c0_i32_0 = arith.constant 0 : i32
    return %arg0, %c0_i32, %arg1 : i32, i32, i32
  }
  func.func @transform_8(%arg0: i32, %arg1: i32) -> (i32, i32, i32) {
    %c0_i32 = arith.constant 0 : i32
    %c0_i32_0 = arith.constant 0 : i32
    return %arg0, %c0_i32, %arg1 : i32, i32, i32
  }
}

module attributes {stable_mosaic.version = 11 : i64} {
  func.func @_mlp_cf_kernel(%arg0: i32, %arg1: i32, %arg2: memref<1x16x64xf32, #tpu.memory_space<vmem>>, %arg3: memref<16x16xf32, #tpu.memory_space<vmem>>, %arg4: memref<16x1xf32, #tpu.memory_space<vmem>>, %arg5: memref<8x16xf32, #tpu.memory_space<vmem>>, %arg6: memref<8x1xf32, #tpu.memory_space<vmem>>, %arg7: memref<1x1x64xf32, #tpu.memory_space<vmem>>, %arg8: memref<1x8x64xf32, #tpu.memory_space<vmem>>) attributes {dimension_semantics = [#tpu.dimension_semantics<parallel>, #tpu.dimension_semantics<parallel>], iteration_bounds = array<i64: 2, 1>, scalar_prefetch = 0 : i64, scratch_operands = 0 : i64, tpu.core_type = #tpu.core_type<tc>, window_params = [{transform_indices = @transform_0, window_bounds = array<i64: 1, 16, 64>}, {pipeline_mode = #tpu.pipeline_mode<synchronous>, transform_indices = @transform_1, window_bounds = array<i64: 16, 16>}, {pipeline_mode = #tpu.pipeline_mode<synchronous>, transform_indices = @transform_2, window_bounds = array<i64: 16, 1>}, {pipeline_mode = #tpu.pipeline_mode<synchronous>, transform_indices = @transform_3, window_bounds = array<i64: 8, 16>}, {pipeline_mode = #tpu.pipeline_mode<synchronous>, transform_indices = @transform_4, window_bounds = array<i64: 8, 1>}, {transform_indices = @transform_5, window_bounds = array<i64: 1, 1, 64>}, {transform_indices = @transform_6, window_bounds = array<i64: 1, 8, 64>}]} {
    %c0 = arith.constant 0 : index
    %c0_0 = arith.constant 0 : index
    %c0_1 = arith.constant 0 : index
    %0 = vector.load %arg2[%c0, %c0_0, %c0_1] : memref<1x16x64xf32, #tpu.memory_space<vmem>>, vector<1x16x64xf32>
    %1 = vector.shape_cast %0 : vector<1x16x64xf32> to vector<16x64xf32>
    %c0_2 = arith.constant 0 : index
    %c0_3 = arith.constant 0 : index
    %2 = vector.load %arg3[%c0_2, %c0_3] : memref<16x16xf32, #tpu.memory_space<vmem>>, vector<16x16xf32>
    %cst = arith.constant dense<0.000000e+00> : vector<16x64xf32>
    %3 = tpu.matmul %2, %1, %cst {dimension_numbers = #tpu.dot_dimension_numbers<[1], [0], [0], [1], [0, 0, 1, 1], [], []>} : vector<16x16xf32>, vector<16x64xf32>, vector<16x64xf32> -> vector<16x64xf32>
    %c0_4 = arith.constant 0 : index
    %c0_5 = arith.constant 0 : index
    %4 = vector.load %arg4[%c0_4, %c0_5] : memref<16x1xf32, #tpu.memory_space<vmem>>, vector<16x1xf32>
    %5 = vector.broadcast %4 : vector<16x1xf32> to vector<16x64xf32>
    %6 = arith.addf %3, %5 : vector<16x64xf32>
    %cst_6 = arith.constant 0.000000e+00 : f32
    %7 = vector.broadcast %cst_6 : f32 to vector<16x64xf32>
    %8 = arith.maximumf %6, %7 : vector<16x64xf32>
    %c0_7 = arith.constant 0 : index
    %c0_8 = arith.constant 0 : index
    %9 = vector.load %arg5[%c0_7, %c0_8] : memref<8x16xf32, #tpu.memory_space<vmem>>, vector<8x16xf32>
    %cst_9 = arith.constant dense<0.000000e+00> : vector<8x64xf32>
    %10 = tpu.matmul %9, %8, %cst_9 {dimension_numbers = #tpu.dot_dimension_numbers<[1], [0], [0], [1], [0, 0, 1, 1], [], []>} : vector<8x16xf32>, vector<16x64xf32>, vector<8x64xf32> -> vector<8x64xf32>
    %c0_10 = arith.constant 0 : index
    %c0_11 = arith.constant 0 : index
    %11 = vector.load %arg6[%c0_10, %c0_11] : memref<8x1xf32, #tpu.memory_space<vmem>>, vector<8x1xf32>
    %12 = vector.broadcast %11 : vector<8x1xf32> to vector<8x64xf32>
    %13 = arith.addf %10, %12 : vector<8x64xf32>
    %c0_12 = arith.constant 0 : index
    %c0_13 = arith.constant 0 : index
    %c0_14 = arith.constant 0 : index
    %14 = vector.load %arg7[%c0_12, %c0_13, %c0_14] : memref<1x1x64xf32, #tpu.memory_space<vmem>>, vector<1x1x64xf32>
    %15 = vector.shape_cast %14 : vector<1x1x64xf32> to vector<1x64xf32>
    %16 = vector.broadcast %15 : vector<1x64xf32> to vector<8x64xf32>
    %17 = arith.mulf %13, %16 : vector<8x64xf32>
    %c0_15 = arith.constant 0 : index
    %c0_16 = arith.constant 0 : index
    %c0_17 = arith.constant 0 : index
    %18 = vector.load %arg8[%c0_15, %c0_16, %c0_17] : memref<1x8x64xf32, #tpu.memory_space<vmem>>, vector<1x8x64xf32>
    %19 = vector.shape_cast %18 : vector<1x8x64xf32> to vector<8x64xf32>
    %20 = vector.shape_cast %17 : vector<8x64xf32> to vector<1x8x64xf32>
    tpu.vector_store %arg8[%c0_15, %c0_16, %c0_17], %20 {strides = array<i32>} : memref<1x8x64xf32, #tpu.memory_space<vmem>>, vector<1x8x64xf32>,
    return
  }
  func.func @transform_0(%arg0: i32, %arg1: i32) -> (i32, i32, i32) {
    %c0_i32 = arith.constant 0 : i32
    %c0_i32_0 = arith.constant 0 : i32
    return %arg0, %c0_i32, %arg1 : i32, i32, i32
  }
  func.func @transform_1(%arg0: i32, %arg1: i32) -> (i32, i32) {
    %c0_i32 = arith.constant 0 : i32
    %c0_i32_0 = arith.constant 0 : i32
    %c0_i32_1 = arith.constant 0 : i32
    return %c0_i32, %c0_i32_0 : i32, i32
  }
  func.func @transform_2(%arg0: i32, %arg1: i32) -> (i32, i32) {
    %c0_i32 = arith.constant 0 : i32
    %c0_i32_0 = arith.constant 0 : i32
    %c0_i32_1 = arith.constant 0 : i32
    return %c0_i32, %c0_i32_0 : i32, i32
  }
  func.func @transform_3(%arg0: i32, %arg1: i32) -> (i32, i32) {
    %c0_i32 = arith.constant 0 : i32
    %c0_i32_0 = arith.constant 0 : i32
    %c0_i32_1 = arith.constant 0 : i32
    return %c0_i32, %c0_i32_0 : i32, i32
  }
  func.func @transform_4(%arg0: i32, %arg1: i32) -> (i32, i32) {
    %c0_i32 = arith.constant 0 : i32
    %c0_i32_0 = arith.constant 0 : i32
    %c0_i32_1 = arith.constant 0 : i32
    return %c0_i32, %c0_i32_0 : i32, i32
  }
  func.func @transform_5(%arg0: i32, %arg1: i32) -> (i32, i32, i32) {
    %c0_i32 = arith.constant 0 : i32
    %c0_i32_0 = arith.constant 0 : i32
    return %arg0, %c0_i32, %arg1 : i32, i32, i32
  }
  func.func @transform_6(%arg0: i32, %arg1: i32) -> (i32, i32, i32) {
    %c0_i32 = arith.constant 0 : i32
    %c0_i32_0 = arith.constant 0 : i32
    return %arg0, %c0_i32, %arg1 : i32, i32, i32
  }
}

module attributes {stable_mosaic.version = 11 : i64} {
  func.func @_pool_project_cf_kernel(%arg0: i32, %arg1: i32, %arg2: memref<1x8x8x8xf32, #tpu.memory_space<vmem>>, %arg3: memref<1x8x8xf32, #tpu.memory_space<vmem>>, %arg4: memref<8x8xf32, #tpu.memory_space<vmem>>, %arg5: memref<8x8xf32, #tpu.memory_space<vmem>>, %arg6: memref<8x1xf32, #tpu.memory_space<vmem>>, %arg7: memref<1x8x8xf32, #tpu.memory_space<vmem>>) attributes {dimension_semantics = [#tpu.dimension_semantics<parallel>, #tpu.dimension_semantics<parallel>], iteration_bounds = array<i64: 2, 1>, scalar_prefetch = 0 : i64, scratch_operands = 0 : i64, tpu.core_type = #tpu.core_type<tc>, window_params = [{transform_indices = @transform_0, window_bounds = array<i64: 1, 8, 8, 8>}, {transform_indices = @transform_1, window_bounds = array<i64: 1, 8, 8>}, {pipeline_mode = #tpu.pipeline_mode<synchronous>, transform_indices = @transform_2, window_bounds = array<i64: 8, 8>}, {pipeline_mode = #tpu.pipeline_mode<synchronous>, transform_indices = @transform_3, window_bounds = array<i64: 8, 8>}, {pipeline_mode = #tpu.pipeline_mode<synchronous>, transform_indices = @transform_4, window_bounds = array<i64: 8, 1>}, {transform_indices = @transform_5, window_bounds = array<i64: 1, 8, 8>}]} {
    %c8_i32 = arith.constant 8 : i32
    %0 = arith.muli %arg1, %c8_i32 : i32
    %c0 = arith.constant 0 : index
    %c0_0 = arith.constant 0 : index
    %c0_1 = arith.constant 0 : index
    %c0_2 = arith.constant 0 : index
    %1 = vector.load %arg2[%c0, %c0_0, %c0_1, %c0_2] : memref<1x8x8x8xf32, #tpu.memory_space<vmem>>, vector<1x8x8x8xf32>
    %2 = vector.shape_cast %1 : vector<1x8x8x8xf32> to vector<8x8x8xf32>
    %c0_3 = arith.constant 0 : index
    %c0_4 = arith.constant 0 : index
    %c0_5 = arith.constant 0 : index
    %3 = vector.load %arg3[%c0_3, %c0_4, %c0_5] : memref<1x8x8xf32, #tpu.memory_space<vmem>>, vector<1x8x8xf32>
    %4 = vector.shape_cast %3 : vector<1x8x8xf32> to vector<8x8xf32>
    %5 = tpu.iota {dimensions = array<i32: 0>} : vector<8x8xi32>
    %6 = vector.broadcast %0 : i32 to vector<8x8xi32>
    %7 = arith.addi %5, %6 : vector<8x8xi32>
    %8 = tpu.iota {dimensions = array<i32: 1>} : vector<8x8xi32>
    %9 = arith.cmpi eq, %7, %8 : vector<8x8xi32>
    %cst = arith.constant dense<0.000000e+00> : vector<8x8xf32>
    %10 = vector.multi_reduction <add>, %2, %cst [2] : vector<8x8x8xf32> to vector<8x8xf32>
    %11 = vector.shape_cast %9 : vector<8x8xi1> to vector<1x8x8xi1>
    %cst_6 = arith.constant 0.000000e+00 : f32
    %12 = vector.shape_cast %11 : vector<1x8x8xi1> to vector<1x8x8xi1>
    %13 = vector.broadcast %12 : vector<1x8x8xi1> to vector<8x8x8xi1>
    %14 = vector.broadcast %cst_6 : f32 to vector<8x8x8xf32>
    %15 = arith.select %13, %2, %14 : vector<8x8x8xi1>, vector<8x8x8xf32>
    %cst_7 = arith.constant dense<0.000000e+00> : vector<8x8xf32>
    %16 = vector.multi_reduction <add>, %15, %cst_7 [2] : vector<8x8x8xf32> to vector<8x8xf32>
    %cst_8 = arith.constant 0.000000e+00 : f32
    %17 = vector.broadcast %cst_8 : f32 to vector<8x8xf32>
    %18 = arith.select %9, %4, %17 : vector<8x8xi1>, vector<8x8xf32>
    %19 = vector.shape_cast %18 : vector<8x8xf32> to vector<1x8x8xf32>
    %cst_9 = arith.constant dense<0.000000e+00> : vector<1x8xf32>
    %20 = vector.multi_reduction <add>, %19, %cst_9 [2] : vector<1x8x8xf32> to vector<1x8xf32>
    %21 = vector.shape_cast %4 : vector<8x8xf32> to vector<1x8x8xf32>
    %cst_10 = arith.constant dense<0.000000e+00> : vector<1x8xf32>
    %22 = vector.multi_reduction <add>, %21, %cst_10 [2] : vector<1x8x8xf32> to vector<1x8xf32>
    %23 = arith.subf %22, %20 : vector<1x8xf32>
    %24 = vector.broadcast %20 : vector<1x8xf32> to vector<8x8xf32>
    %25 = arith.mulf %16, %24 : vector<8x8xf32>
    %26 = arith.subf %10, %25 : vector<8x8xf32>
    %cst_11 = arith.constant 1.000000e+00 : f32
    %27 = vector.broadcast %cst_11 : f32 to vector<1x8xf32>
    %28 = arith.maximumf %23, %27 : vector<1x8xf32>
    %29 = vector.broadcast %28 : vector<1x8xf32> to vector<8x8xf32>
    %30 = arith.divf %26, %29 : vector<8x8xf32>
    %c0_12 = arith.constant 0 : index
    %c0_13 = arith.constant 0 : index
    %31 = vector.load %arg4[%c0_12, %c0_13] : memref<8x8xf32, #tpu.memory_space<vmem>>, vector<8x8xf32>
    %cst_14 = arith.constant dense<0.000000e+00> : vector<8x8xf32>
    %32 = tpu.matmul %31, %16, %cst_14 {dimension_numbers = #tpu.dot_dimension_numbers<[1], [0], [0], [1], [0, 0, 1, 1], [], []>} : vector<8x8xf32>, vector<8x8xf32>, vector<8x8xf32> -> vector<8x8xf32>
    %c0_15 = arith.constant 0 : index
    %c0_16 = arith.constant 0 : index
    %33 = vector.load %arg5[%c0_15, %c0_16] : memref<8x8xf32, #tpu.memory_space<vmem>>, vector<8x8xf32>
    %cst_17 = arith.constant dense<0.000000e+00> : vector<8x8xf32>
    %34 = tpu.matmul %33, %30, %cst_17 {dimension_numbers = #tpu.dot_dimension_numbers<[1], [0], [0], [1], [0, 0, 1, 1], [], []>} : vector<8x8xf32>, vector<8x8xf32>, vector<8x8xf32> -> vector<8x8xf32>
    %35 = arith.addf %32, %34 : vector<8x8xf32>
    %c0_18 = arith.constant 0 : index
    %c0_19 = arith.constant 0 : index
    %36 = vector.load %arg6[%c0_18, %c0_19] : memref<8x1xf32, #tpu.memory_space<vmem>>, vector<8x1xf32>
    %37 = vector.broadcast %36 : vector<8x1xf32> to vector<8x8xf32>
    %38 = arith.addf %35, %37 : vector<8x8xf32>
    %c0_20 = arith.constant 0 : index
    %c0_21 = arith.constant 0 : index
    %c0_22 = arith.constant 0 : index
    %39 = vector.load %arg7[%c0_20, %c0_21, %c0_22] : memref<1x8x8xf32, #tpu.memory_space<vmem>>, vector<1x8x8xf32>
    %40 = vector.shape_cast %39 : vector<1x8x8xf32> to vector<8x8xf32>
    %41 = vector.shape_cast %38 : vector<8x8xf32> to vector<1x8x8xf32>
    tpu.vector_store %arg7[%c0_20, %c0_21, %c0_22], %41 {strides = array<i32>} : memref<1x8x8xf32, #tpu.memory_space<vmem>>, vector<1x8x8xf32>,
    return
  }
  func.func @transform_0(%arg0: i32, %arg1: i32) -> (i32, i32, i32, i32) {
    %c0_i32 = arith.constant 0 : i32
    %c0_i32_0 = arith.constant 0 : i32
    %c0_i32_1 = arith.constant 0 : i32
    return %arg0, %c0_i32, %arg1, %c0_i32_0 : i32, i32, i32, i32
  }
  func.func @transform_1(%arg0: i32, %arg1: i32) -> (i32, i32, i32) {
    %c0_i32 = arith.constant 0 : i32
    %c0_i32_0 = arith.constant 0 : i32
    return %arg0, %arg1, %c0_i32 : i32, i32, i32
  }
  func.func @transform_2(%arg0: i32, %arg1: i32) -> (i32, i32) {
    %c0_i32 = arith.constant 0 : i32
    %c0_i32_0 = arith.constant 0 : i32
    %c0_i32_1 = arith.constant 0 : i32
    return %c0_i32, %c0_i32_0 : i32, i32
  }
  func.func @transform_3(%arg0: i32, %arg1: i32) -> (i32, i32) {
    %c0_i32 = arith.constant 0 : i32
    %c0_i32_0 = arith.constant 0 : i32
    %c0_i32_1 = arith.constant 0 : i32
    return %c0_i32, %c0_i32_0 : i32, i32
  }
  func.func @transform_4(%arg0: i32, %arg1: i32) -> (i32, i32) {
    %c0_i32 = arith.constant 0 : i32
    %c0_i32_0 = arith.constant 0 : i32
    %c0_i32_1 = arith.constant 0 : i32
    return %c0_i32, %c0_i32_0 : i32, i32
  }
  func.func @transform_5(%arg0: i32, %arg1: i32) -> (i32, i32, i32) {
    %c0_i32 = arith.constant 0 : i32
    %c0_i32_0 = arith.constant 0 : i32
    return %arg0, %c0_i32, %arg1 : i32, i32, i32
  }
}

</mosaic_0001>

<llo_original>
// kernel: ppgn_phi_forward.9
$region0: #{ppgn_phi_forward.9}
  #allocation0 [shape = 'u32[]', space=smem, size = 0x4, offset = 0x4, fixed_abs, tag = 'smem constant byte address 0x4 - core index']
  #allocation1 [shape = 'u32[144,128]{1,0:T(1,128)}', space=vmem, size = 0x12000, scoped, tag = 'internal scratch']
  %s0 = inlined_call_operand.vmem [shape: f32[2,4,64], index: 0, kind: input, shape index: {}]
  %s1 = inlined_call_operand.vmem [shape: f32[16,4], index: 1, kind: input, shape index: {}]
  %s2 = inlined_call_operand.vmem [shape: f32[16,1], index: 2, kind: input, shape index: {}]
  %s3 = inlined_call_operand.vmem [shape: f32[16,16], index: 3, kind: input, shape index: {}]
  %s4 = inlined_call_operand.vmem [shape: f32[16,1], index: 4, kind: input, shape index: {}]
  %s5 = inlined_call_operand.vmem [shape: f32[2,1,64], index: 5, kind: input, shape index: {}]
  %s6 = inlined_call_operand.vmem [shape: f32[2,16,64], index: 6, kind: output, shape index: {}]
  %s7 = sld [smem:[#allocation0]]
  $region57: #{ppgn_phi_forward.9} parent=0
    _
  %s9 = ssub.s32 1, %s7
  %s10 = scalar_select 0, %s9, %s7
  loop: start=0, step=1, limit=4
  $region2: #{ppgn_phi_forward.9} parent=0 // loop_pre_header
    _
  $region3: #{ppgn_phi_forward.9} parent=0 // loop_header
    %s12 = sphi 0, %s16
    %p13 = scmp.ge.s32.totalorder %s12, 4
    %s19 = sphi 0, %s31
    %s20 = sphi 0, %s27
    %s21 = sphi 0, %s19
    %s22 = sphi 0, %s20
    %s23 = sphi 0, %s21
    %s24 = sphi 0, %s22
    %s36 = sphi 0, %s38
    %s39 = sphi 0, %s36
    %s40 = sphi 0, %s39
    %s56 = sphi 0, %s40
    %s60 = sphi 0, %s60
    %s62 = sphi 0, %s60
    %s63 = sphi 0, %s62
    %s77 = sphi 0, %s63
    %s81 = sphi 0, %s81
    %s83 = sphi 0, %s81
    %s84 = sphi 0, %s83
    %s98 = sphi 0, %s84
    %s102 = sphi 0, %s102
    %s104 = sphi 0, %s102
    %s105 = sphi 0, %s104
    %s119 = sphi 0, %s105
    %s123 = sphi 0, %s123
    %s125 = sphi 0, %s123
    %s126 = sphi 0, %s125
    %s140 = sphi 0, %s126
    %s148 = sphi 0, %s150
    %s151 = sphi 0, %s148
    %s152 = sphi 0, %s151
    %s168 = sphi 0, %s152
    %s176 = sphi 0, %s178
    %s179 = sphi 0, %s176
    %s180 = sphi 0, %s179
    %s196 = sphi 0, %s180
  $region4: #{ppgn_phi_forward.9} parent=0 // loop_header_branch
    %15 = sbr.rel (%p13) target = $region8
  $region5: #{ppgn_phi_forward.9} parent=0 // loop_body
    %s17 = ssub.s32 %s12, 1
    %s18 = ssub.s32 %s12, 2
    %s25 = sadd.s32 1, %s20
    %p26 = scmp.ge.s32.totalorder %s25, 1
    %s27 = scalar_select %p26, 0, %s25
    %s28 = sadd.s32 1, %s19
    %s29 = scalar_select %p26, %s28, %s19
    %p30 = scmp.ge.s32.totalorder %s29, 2
    %s31 = scalar_select %p30, 0, %s29
    %s32 = ssub.s32 %s19, %s31
    %s33 = ssub.s32 %s20, %s27
    %s34 = sor.u32 %s32, %s33
    %p35 = scmp.eq.s32.totalorder %s34, 0
    %s37 = sadd.s32 %s36, 1
    %s38 = scalar_select %p35, %s36, %s37
    %p41 = pneg %p35
    %p42 = scmp.eq.s32.totalorder %s12, 1
    %p43 = por %p41, %p42
    %p44 = scmp.ne.s32.totalorder %s36, %s39
    %p45 = scmp.eq.s32.totalorder %s12, 0
    %p46 = por %p44, %p45
    %p47 = scmp.ne.s32.totalorder %s36, %s39
    %p48 = scmp.eq.s32.totalorder %s17, 1
    %p49 = por %p47, %p48
    %p50 = scmp.ne.s32.totalorder %s39, %s40
    %p51 = scmp.eq.s32.totalorder %s17, 0
    %p52 = por %p50, %p51
    %p53 = scmp.ne.s32.totalorder %s39, %s40
    %p54 = scmp.eq.s32.totalorder %s18, 1
    %p55 = por %p53, %p54
    %p57 = scmp.ne.s32.totalorder %s40, %s56
    %p58 = scmp.eq.s32.totalorder %s18, 0
    %p59 = por %p57, %p58
    %s61 = sadd.s32 %s60, 1
    %p64 = scmp.eq.s32.totalorder %s12, 1
    %p65 = scmp.ne.s32.totalorder %s60, %s62
    %p66 = scmp.eq.s32.totalorder %s12, 0
    %p67 = por %p65, %p66
    %p68 = scmp.ne.s32.totalorder %s60, %s62
    %p69 = scmp.eq.s32.totalorder %s17, 1
    %p70 = por %p68, %p69
    %p71 = scmp.ne.s32.totalorder %s62, %s63
    %p72 = scmp.eq.s32.totalorder %s17, 0
    %p73 = por %p71, %p72
    %p74 = scmp.ne.s32.totalorder %s62, %s63
    %p75 = scmp.eq.s32.totalorder %s18, 1
    %p76 = por %p74, %p75
    %p78 = scmp.ne.s32.totalorder %s63, %s77
    %p79 = scmp.eq.s32.totalorder %s18, 0
    %p80 = por %p78, %p79
    %s82 = sadd.s32 %s81, 1
    %p85 = scmp.eq.s32.totalorder %s12, 1
    %p86 = scmp.ne.s32.totalorder %s81, %s83
    %p87 = scmp.eq.s32.totalorder %s12, 0
    %p88 = por %p86, %p87
    %p89 = scmp.ne.s32.totalorder %s81, %s83
    %p90 = scmp.eq.s32.totalorder %s17, 1
    %p91 = por %p89, %p90
    %p92 = scmp.ne.s32.totalorder %s83, %s84
    %p93 = scmp.eq.s32.totalorder %s17, 0
    %p94 = por %p92, %p93
    %p95 = scmp.ne.s32.totalorder %s83, %s84
    %p96 = scmp.eq.s32.totalorder %s18, 1
    %p97 = por %p95, %p96
    %p99 = scmp.ne.s32.totalorder %s84, %s98
    %p100 = scmp.eq.s32.totalorder %s18, 0
    %p101 = por %p99, %p100
    %s103 = sadd.s32 %s102, 1
    %p106 = scmp.eq.s32.totalorder %s12, 1
    %p107 = scmp.ne.s32.totalorder %s102, %s104
    %p108 = scmp.eq.s32.totalorder %s12, 0
    %p109 = por %p107, %p108
    %p110 = scmp.ne.s32.totalorder %s102, %s104
    %p111 = scmp.eq.s32.totalorder %s17, 1
    %p112 = por %p110, %p111
    %p113 = scmp.ne.s32.totalorder %s104, %s105
    %p114 = scmp.eq.s32.totalorder %s17, 0
    %p115 = por %p113, %p114
    %p116 = scmp.ne.s32.totalorder %s104, %s105
    %p117 = scmp.eq.s32.totalorder %s18, 1
    %p118 = por %p116, %p117
    %p120 = scmp.ne.s32.totalorder %s105, %s119
    %p121 = scmp.eq.s32.totalorder %s18, 0
    %p122 = por %p120, %p121
    %s124 = sadd.s32 %s123, 1
    %p127 = scmp.eq.s32.totalorder %s12, 1
    %p128 = scmp.ne.s32.totalorder %s123, %s125
    %p129 = scmp.eq.s32.totalorder %s12, 0
    %p130 = por %p128, %p129
    %p131 = scmp.ne.s32.totalorder %s123, %s125
    %p132 = scmp.eq.s32.totalorder %s17, 1
    %p133 = por %p131, %p132
    %p134 = scmp.ne.s32.totalorder %s125, %s126
    %p135 = scmp.eq.s32.totalorder %s17, 0
    %p136 = por %p134, %p135
    %p137 = scmp.ne.s32.totalorder %s125, %s126
    %p138 = scmp.eq.s32.totalorder %s18, 1
    %p139 = por %p137, %p138
    %p141 = scmp.ne.s32.totalorder %s126, %s140
    %p142 = scmp.eq.s32.totalorder %s18, 0
    %p143 = por %p141, %p142
    %s144 = ssub.s32 %s19, %s31
    %s145 = ssub.s32 %s20, %s27
    %s146 = sor.u32 %s144, %s145
    %p147 = scmp.eq.s32.totalorder %s146, 0
    %s149 = sadd.s32 %s148, 1
    %s150 = scalar_select %p147, %s148, %s149
    %p153 = pneg %p147
    %p154 = scmp.eq.s32.totalorder %s12, 1
    %p155 = por %p153, %p154
    %p156 = scmp.ne.s32.totalorder %s148, %s151
    %p157 = scmp.eq.s32.totalorder %s12, 0
    %p158 = por %p156, %p157
    %p159 = scmp.ne.s32.totalorder %s148, %s151
    %p160 = scmp.eq.s32.totalorder %s17, 1
    %p161 = por %p159, %p160
    %p162 = scmp.ne.s32.totalorder %s151, %s152
    %p163 = scmp.eq.s32.totalorder %s17, 0
    %p164 = por %p162, %p163
    %p165 = scmp.ne.s32.totalorder %s151, %s152
    %p166 = scmp.eq.s32.totalorder %s18, 1
    %p167 = por %p165, %p166
    %p169 = scmp.ne.s32.totalorder %s152, %s168
    %p170 = scmp.eq.s32.totalorder %s18, 0
    %p171 = por %p169, %p170
    %s172 = ssub.s32 %s19, %s31
    %s173 = ssub.s32 %s20, %s27
    %s174 = sor.u32 %s172, %s173
    %p175 = scmp.eq.s32.totalorder %s174, 0
    %s177 = sadd.s32 %s176, 1
    %s178 = scalar_select %p175, %s176, %s177
    %p181 = pneg %p175
    %p182 = scmp.eq.s32.totalorder %s12, 1
    %p183 = por %p181, %p182
    %p184 = scmp.ne.s32.totalorder %s176, %s179
    %p185 = scmp.eq.s32.totalorder %s12, 0
    %p186 = por %p184, %p185
    %p187 = scmp.ne.s32.totalorder %s176, %s179
    %p188 = scmp.eq.s32.totalorder %s17, 1
    %p189 = por %p187, %p188
    %p190 = scmp.ne.s32.totalorder %s179, %s180
    %p191 = scmp.eq.s32.totalorder %s17, 0
    %p192 = por %p190, %p191
    %p193 = scmp.ne.s32.totalorder %s179, %s180
    %p194 = scmp.eq.s32.totalorder %s18, 1
    %p195 = por %p193, %p194
    %p197 = scmp.ne.s32.totalorder %s180, %s196
    %p198 = scmp.eq.s32.totalorder %s18, 0
    %p199 = por %p197, %p198
    %p200 = scmp.le.s32.totalorder 1, %s12
    %p201 = scmp.lt.s32.totalorder %s12, 3
    %p202 = pnand %p200, %p201
    %p203 = pneg %p202
    // Predicated region
    $region9: #{ppgn_phi_forward.9} parent=5 // pred_check
      _
    $region10: #{ppgn_phi_forward.9} parent=5 // pred_check_branch
      %205 = sbr.rel (%p202) target = $region12
    $region11: #{ppgn_phi_forward.9} parent=5 // pred_region
      %s206 = ssub.s32 %s12, 1
      // Predicated region
      $region13: #{ppgn_phi_forward.9} parent=11 // pred_check
        %p207 = pneg %p73
      $region14: #{ppgn_phi_forward.9} parent=11 // pred_check_branch
        %209 = sbr.rel (%p207) target = $region16
      $region15: #{ppgn_phi_forward.9} parent=11 // pred_region
        _
      $region16: #{ppgn_phi_forward.9} parent=11 // pred_fallthru
        _
      // Predicated region
      $region17: #{ppgn_phi_forward.9} parent=11 // pred_check
        %p210 = pneg %p94
      $region18: #{ppgn_phi_forward.9} parent=11 // pred_check_branch
        %212 = sbr.rel (%p210) target = $region20
      $region19: #{ppgn_phi_forward.9} parent=11 // pred_region
        _
      $region20: #{ppgn_phi_forward.9} parent=11 // pred_fallthru
        _
      // Predicated region
      $region21: #{ppgn_phi_forward.9} parent=11 // pred_check
        %p213 = pneg %p115
      $region22: #{ppgn_phi_forward.9} parent=11 // pred_check_branch
        %215 = sbr.rel (%p213) target = $region24
      $region23: #{ppgn_phi_forward.9} parent=11 // pred_region
        _
      $region24: #{ppgn_phi_forward.9} parent=11 // pred_fallthru
        _
      // Predicated region
      $region25: #{ppgn_phi_forward.9} parent=11 // pred_check
        %p216 = pneg %p136
      $region26: #{ppgn_phi_forward.9} parent=11 // pred_check_branch
        %218 = sbr.rel (%p216) target = $region28
      $region27: #{ppgn_phi_forward.9} parent=11 // pred_region
        _
      $region28: #{ppgn_phi_forward.9} parent=11 // pred_fallthru
        _
    $region12: #{ppgn_phi_forward.9} parent=5 // pred_fallthru
      _
    %p219 = scmp.lt.s32.totalorder %s12, 2
    // Predicated region
    $region29: #{ppgn_phi_forward.9} parent=5 // pred_check
      %p220 = pneg %p219
    $region30: #{ppgn_phi_forward.9} parent=5 // pred_check_branch
      %222 = sbr.rel (%p220) target = $region32
    $region31: #{ppgn_phi_forward.9} parent=5 // pred_region
      // Predicated region
      $region33: #{ppgn_phi_forward.9} parent=31 // pred_check
        %p223 = pneg %p46
      $region34: #{ppgn_phi_forward.9} parent=31 // pred_check_branch
        %225 = sbr.rel (%p223) target = $region36
      $region35: #{ppgn_phi_forward.9} parent=31 // pred_region
        %p226 = scmp.lt.s32.totalorder %s19, 1
        %s227 = scalar_select %p226, %s19, 1
        %p228 = scmp.lt.s32.totalorder %s20, 0
        %s229 = scalar_select %p228, %s20, 0
        %s230 = sadd.s32 %s229, %s227
        %s231 = smul.addr %s230, 4
        %s232 = scalar_lea.vmem %s0, %s231
      $region36: #{ppgn_phi_forward.9} parent=31 // pred_fallthru
        _
      // Predicated region
      $region37: #{ppgn_phi_forward.9} parent=31 // pred_check
        %p233 = pneg %p158
      $region38: #{ppgn_phi_forward.9} parent=31 // pred_check_branch
        %235 = sbr.rel (%p233) target = $region40
      $region39: #{ppgn_phi_forward.9} parent=31 // pred_region
        %p236 = scmp.lt.s32.totalorder %s19, 1
        %s237 = scalar_select %p236, %s19, 1
        %p238 = scmp.lt.s32.totalorder %s20, 0
        %s239 = scalar_select %p238, %s20, 0
        %s240 = sadd.s32 %s239, %s237
        %s241 = scalar_lea.vmem %s5, %s240
      $region40: #{ppgn_phi_forward.9} parent=31 // pred_fallthru
        _
    $region32: #{ppgn_phi_forward.9} parent=5 // pred_fallthru
      _
    %p242 = scmp.le.s32.totalorder 1, %s12
    %p243 = scmp.lt.s32.totalorder %s12, 3
    %p244 = pnand %p242, %p243
    %p245 = pneg %p244
    // Predicated region
    $region41: #{ppgn_phi_forward.9} parent=5 // pred_check
      _
    $region42: #{ppgn_phi_forward.9} parent=5 // pred_check_branch
      %247 = sbr.rel (%p244) target = $region44
    $region43: #{ppgn_phi_forward.9} parent=5 // pred_region
      %s248 = ssub.s32 %s12, 1
      %p249 = scmp.lt.s32.totalorder %s21, 1
      %s250 = scalar_select %p249, %s21, 1
      %p251 = scmp.lt.s32.totalorder %s22, 0
      %s252 = scalar_select %p251, %s22, 0
      %s253 = sadd.s32 %s252, %s250
      %s254 = smul.addr %s253, 4
      %s255 = scalar_lea.vmem %s0, %s254
      %p256 = pneg %p52
      %p257 = pneg %p49
      %p258 = pneg %p73
      %p259 = pneg %p70
      %p260 = pneg %p94
      %p261 = pneg %p91
      %p262 = pneg %p115
      %p263 = pneg %p112
      %p264 = pneg %p136
      %p265 = pneg %p133
      %p266 = scmp.lt.s32.totalorder %s21, 1
      %s267 = scalar_select %p266, %s21, 1
      %p268 = scmp.lt.s32.totalorder %s22, 0
      %s269 = scalar_select %p268, %s22, 0
      %s270 = sadd.s32 %s269, %s267
      %s271 = scalar_lea.vmem %s5, %s270
      %p272 = pneg %p164
      %p273 = pneg %p161
      %p274 = pneg %p192
      %p275 = pneg %p189
      %p276 = scmp.lt.s32.totalorder %s21, 1
      %s277 = scalar_select %p276, %s21, 1
      %p278 = scmp.lt.s32.totalorder %s22, 0
      %s279 = scalar_select %p278, %s22, 0
      %s280 = smul.addr %s277, 2
      %s281 = sadd.s32 %s279, %s280
      %s282 = smul.addr %s281, 8
      %s283 = scalar_lea.vmem %s6, %s282
      %p284 = scmp.lt.s32.totalorder %s21, 1
      %s285 = scalar_select %p284, %s21, 1
      %p286 = scmp.lt.s32.totalorder %s22, 0
      %s287 = scalar_select %p286, %s22, 0
      %s288 = sadd.s32 %s287, %s285
      %s289 = smul.addr %s288, 4
      %s290 = scalar_lea.vmem %s0, %s289
      %p291 = scmp.lt.s32.totalorder %s21, 1
      %s292 = scalar_select %p291, %s21, 1
      %p293 = scmp.lt.s32.totalorder %s22, 0
      %s294 = scalar_select %p293, %s22, 0
      %s295 = sadd.s32 %s294, %s292
      %s296 = scalar_lea.vmem %s5, %s295
      %p297 = scmp.lt.s32.totalorder %s21, 1
      %s298 = scalar_select %p297, %s21, 1
      %p299 = scmp.lt.s32.totalorder %s22, 0
      %s300 = scalar_select %p299, %s22, 0
      %s301 = smul.addr %s298, 2
      %s302 = sadd.s32 %s300, %s301
      %s303 = smul.addr %s302, 8
      %s304 = scalar_lea.vmem %s6, %s303
      %v305 = vld [vmem:[%s290] sm:$0xf]
      %v306 = vld [vmem:[%s1] sm:$0xff]
      %v307 = vld [vmem:[%s1 + $0x8] sm:$0xff]
      %v308 = vld [vmem:[%s2] sm:$0xff]
      %v309 = vld [vmem:[%s2 + $0x8] sm:$0xff]
      %311 = vset.pattern.permute.xlu0 0
      %312 = vperm.xlu0 %311, %v308
      %v313 = vpop.permute.xlu0 %312
      %316 = vset.pattern.permute.xlu0 0
      %317 = vperm.xlu0 %316, %v309
      %v318 = vpop.permute.xlu0 %317
      %vm320 = vcmask 31744
      %v322 = vsel %vm320, %v306, 0
      %v325 = vsel %vm320, %v307, 0
      %vm327 = vcmask 1043456
      %v329 = vsel %vm327, %v305, 0
      %331 = vmatprep.subr.mxu0 0.0
      %332 = vmatpush1.msra.mxu0 %v329
      %333 = vmatprep.subr.mxu0 0.0
      %334 = vmatpush1.msra.mxu0 0.0
      %335 = vmatprep.subr.mxu0 0.0
      %336 = vmatpush1.msra.mxu0 0.0
      %337 = vmatprep.subr.mxu0 0.0
      %338 = vmatpush1.msra.mxu0 0.0
      %339 = vmatprep.subr.mxu0 0.0
      %340 = vmatpush1.msra.mxu0 0.0
      %341 = vmatprep.subr.mxu0 0.0
      %342 = vmatpush1.msra.mxu0 0.0
      %343 = vmatprep.subr.mxu0 0.0
      %344 = vmatpush1.msra.mxu0 0.0
      %345 = vmatprep.subr.mxu0 0.0
      %346 = vmatpush1.msra.mxu0 0.0
      %347 = vmatprep.subr.mxu0 0.0
      %348 = vmatpush1.msra.mxu0 0.0
      %349 = vmatprep.subr.mxu0 0.0
      %350 = vmatpush1.msra.mxu0 0.0
      %351 = vmatprep.subr.mxu0 0.0
      %352 = vmatpush1.msra.mxu0 0.0
      %353 = vmatprep.subr.mxu0 0.0
      %354 = vmatpush1.msra.mxu0 0.0
      %355 = vmatprep.subr.mxu0 0.0
      %356 = vmatpush1.msra.mxu0 0.0
      %357 = vmatprep.subr.mxu0 0.0
      %358 = vmatpush1.msra.mxu0 0.0
      %359 = vmatprep.subr.mxu0 0.0
      %360 = vmatpush1.msra.mxu0 0.0
      %361 = vmatprep.subr.mxu0 0.0
      %362 = vmatpush1.msra.mxu0 0.0
      %363 = vmatprep.subr.mxu0 0.0
      %364 = vmatpush1.msra.mxu0 0.0
      %365 = vmatprep.subr.mxu0 0.0
      %366 = vmatpush1.msra.mxu0 0.0
      %367 = vmatprep.subr.mxu0 0.0
      %368 = vmatpush1.msra.mxu0 0.0
      %369 = vmatprep.subr.mxu0 0.0
      %370 = vmatpush1.msra.mxu0 0.0
      %371 = vmatprep.subr.mxu0 0.0
      %372 = vmatpush1.msra.mxu0 0.0
      %373 = vmatprep.subr.mxu0 0.0
      %374 = vmatpush1.msra.mxu0 0.0
      %375 = vmatprep.subr.mxu0 0.0
      %376 = vmatpush1.msra.mxu0 0.0
      %377 = vmatprep.subr.mxu0 0.0
      %378 = vmatpush1.msra.mxu0 0.0
      %379 = vmatprep.subr.mxu0 0.0
      %380 = vmatpush1.msra.mxu0 0.0
      %381 = vmatprep.subr.mxu0 0.0
      %382 = vmatpush1.msra.mxu0 0.0
      %383 = vmatprep.subr.mxu0 0.0
      %384 = vmatpush1.msra.mxu0 0.0
      %385 = vmatprep.subr.mxu0 0.0
      %386 = vmatpush1.msra.mxu0 0.0
      %387 = vmatprep.subr.mxu0 0.0
      %388 = vmatpush1.msra.mxu0 0.0
      %389 = vmatprep.subr.mxu0 0.0
      %390 = vmatpush1.msra.mxu0 0.0
      %391 = vmatprep.subr.mxu0 0.0
      %392 = vmatpush1.msra.mxu0 0.0
      %393 = vmatprep.subr.mxu0 0.0
      %394 = vmatpush1.msra.mxu0 0.0
      %395 = vmatprep.mubr.f32.mxu0 0.0
      %396 = vmatmul.mubr.f32.gmra.mrb[0].mxu0 %v322
      %v397 = vpop.f32.mrb[0].mxu0
      %v398 = vadd.f32 %v313, %v397
      %v399 = vpop.f32.mrb[0].mxu0
      %400 = vmatprep.mubr.f32.mxu0 0.0
      %401 = vmatmul.mubr.f32.gmra.mrb[0].mxu0 %v325
      %v402 = vpop.f32.mrb[0].mxu0
      %v403 = vadd.f32 %v318, %v402
      %v404 = vpop.f32.mrb[0].mxu0
      %405 = vdwg.mxu0
      %v406 = vmax.f32 %v398, 0.0
      %v407 = vmax.f32 %v403, 0.0
      %v408 = vld [vmem:[%s3] sm:$0xff]
      %v409 = vld [vmem:[%s3 + $0x8] sm:$0xff]
      %v410 = vld [vmem:[%s4] sm:$0xff]
      %v411 = vld [vmem:[%s4 + $0x8] sm:$0xff]
      %413 = vset.pattern.permute.xlu0 0
      %414 = vperm.xlu0 %413, %v410
      %v415 = vpop.permute.xlu0 %414
      %418 = vset.pattern.permute.xlu0 0
      %419 = vperm.xlu0 %418, %v411
      %v420 = vpop.permute.xlu0 %419
      %vm422 = vcmask 130048
      %v424 = vsel %vm422, %v408, 0
      %v427 = vsel %vm422, %v409, 0
      %429 = vmatprep.subr.mxu0 0.0
      %430 = vmatpush1.msra.mxu0 %v406
      %431 = vmatprep.subr.mxu0 0.0
      %432 = vmatpush1.msra.mxu0 %v407
      %433 = vmatprep.subr.mxu0 0.0
      %434 = vmatpush1.msra.mxu0 0.0
      %435 = vmatprep.subr.mxu0 0.0
      %436 = vmatpush1.msra.mxu0 0.0
      %437 = vmatprep.subr.mxu0 0.0
      %438 = vmatpush1.msra.mxu0 0.0
      %439 = vmatprep.subr.mxu0 0.0
      %440 = vmatpush1.msra.mxu0 0.0
      %441 = vmatprep.subr.mxu0 0.0
      %442 = vmatpush1.msra.mxu0 0.0
      %443 = vmatprep.subr.mxu0 0.0
      %444 = vmatpush1.msra.mxu0 0.0
      %445 = vmatprep.subr.mxu0 0.0
      %446 = vmatpush1.msra.mxu0 0.0
      %447 = vmatprep.subr.mxu0 0.0
      %448 = vmatpush1.msra.mxu0 0.0
      %449 = vmatprep.subr.mxu0 0.0
      %450 = vmatpush1.msra.mxu0 0.0
      %451 = vmatprep.subr.mxu0 0.0
      %452 = vmatpush1.msra.mxu0 0.0
      %453 = vmatprep.subr.mxu0 0.0
      %454 = vmatpush1.msra.mxu0 0.0
      %455 = vmatprep.subr.mxu0 0.0
      %456 = vmatpush1.msra.mxu0 0.0
      %457 = vmatprep.subr.mxu0 0.0
      %458 = vmatpush1.msra.mxu0 0.0
      %459 = vmatprep.subr.mxu0 0.0
      %460 = vmatpush1.msra.mxu0 0.0
      %461 = vmatprep.subr.mxu0 0.0
      %462 = vmatpush1.msra.mxu0 0.0
      %463 = vmatprep.subr.mxu0 0.0
      %464 = vmatpush1.msra.mxu0 0.0
      %465 = vmatprep.subr.mxu0 0.0
      %466 = vmatpush1.msra.mxu0 0.0
      %467 = vmatprep.subr.mxu0 0.0
      %468 = vmatpush1.msra.mxu0 0.0
      %469 = vmatprep.subr.mxu0 0.0
      %470 = vmatpush1.msra.mxu0 0.0
      %471 = vmatprep.subr.mxu0 0.0
      %472 = vmatpush1.msra.mxu0 0.0
      %473 = vmatprep.subr.mxu0 0.0
      %474 = vmatpush1.msra.mxu0 0.0
      %475 = vmatprep.subr.mxu0 0.0
      %476 = vmatpush1.msra.mxu0 0.0
      %477 = vmatprep.subr.mxu0 0.0
      %478 = vmatpush1.msra.mxu0 0.0
      %479 = vmatprep.subr.mxu0 0.0
      %480 = vmatpush1.msra.mxu0 0.0
      %481 = vmatprep.subr.mxu0 0.0
      %482 = vmatpush1.msra.mxu0 0.0
      %483 = vmatprep.subr.mxu0 0.0
      %484 = vmatpush1.msra.mxu0 0.0
      %485 = vmatprep.subr.mxu0 0.0
      %486 = vmatpush1.msra.mxu0 0.0
      %487 = vmatprep.subr.mxu0 0.0
      %488 = vmatpush1.msra.mxu0 0.0
      %489 = vmatprep.subr.mxu0 0.0
      %490 = vmatpush1.msra.mxu0 0.0
      %491 = vmatprep.subr.mxu0 0.0
      %492 = vmatpush1.msra.mxu0 0.0
      %493 = vmatprep.mubr.f32.mxu0 0.0
      %494 = vmatmul.mubr.f32.gmra.mrb[0].mxu0 %v424
      %v495 = vpop.f32.mrb[0].mxu0
      %v496 = vadd.f32 %v415, %v495
      %v497 = vpop.f32.mrb[0].mxu0
      %498 = vmatprep.mubr.f32.mxu0 0.0
      %499 = vmatmul.mubr.f32.gmra.mrb[0].mxu0 %v427
      %v500 = vpop.f32.mrb[0].mxu0
      %v501 = vadd.f32 %v420, %v500
      %v502 = vpop.f32.mrb[0].mxu0
      %503 = vdwg.mxu0
      %v504 = vld [vmem:[%s296] sm:$0x1]
      %v506 = vlaneseq
      %v507 = vshrl.u32 %v506, 7
      %v508 = vsub.s32 0, %v507
      %v509 = vrot.slane %v504, %v508
      %v511 = vmul.f32 %v496, %v509
      %v512 = vmul.f32 %v501, %v509
      %vm513 = vcmask 523264
      %514 = vst.msk [vmem:[%s304] sm:$0xff] %vm513, %v511
      %515 = vst.msk [vmem:[%s304 + $0x8] sm:$0xff] %vm513, %v512
      %p516 = scmp.lt.s32.totalorder %s21, 1
      %s517 = scalar_select %p516, %s21, 1
      %p518 = scmp.lt.s32.totalorder %s22, 0
      %s519 = scalar_select %p518, %s22, 0
      %s520 = smul.addr %s517, 2
      %s521 = sadd.s32 %s519, %s520
      %s522 = smul.addr %s521, 8
      %s523 = scalar_lea.vmem %s6, %s522
      // Predicated region
      $region45: #{ppgn_phi_forward.9} parent=43 // pred_check
        %p524 = pneg %p189
      $region46: #{ppgn_phi_forward.9} parent=43 // pred_check_branch
        %526 = sbr.rel (%p524) target = $region48
      $region47: #{ppgn_phi_forward.9} parent=43 // pred_region
        _
      $region48: #{ppgn_phi_forward.9} parent=43 // pred_fallthru
        _
    $region44: #{ppgn_phi_forward.9} parent=5 // pred_fallthru
      _
    %p527 = scmp.le.s32.totalorder 2, %s12
    // Predicated region
    $region49: #{ppgn_phi_forward.9} parent=5 // pred_check
      %p528 = pneg %p527
    $region50: #{ppgn_phi_forward.9} parent=5 // pred_check_branch
      %530 = sbr.rel (%p528) target = $region52
    $region51: #{ppgn_phi_forward.9} parent=5 // pred_region
      %s531 = ssub.s32 %s12, 2
      // Predicated region
      $region53: #{ppgn_phi_forward.9} parent=51 // pred_check
        %p532 = pneg %p195
      $region54: #{ppgn_phi_forward.9} parent=51 // pred_check_branch
        %534 = sbr.rel (%p532) target = $region56
      $region55: #{ppgn_phi_forward.9} parent=51 // pred_region
        %p535 = scmp.lt.s32.totalorder %s23, 1
        %s536 = scalar_select %p535, %s23, 1
        %p537 = scmp.lt.s32.totalorder %s24, 0
        %s538 = scalar_select %p537, %s24, 0
        %s539 = smul.addr %s536, 2
        %s540 = sadd.s32 %s538, %s539
        %s541 = smul.addr %s540, 8
        %s542 = scalar_lea.vmem %s6, %s541
      $region56: #{ppgn_phi_forward.9} parent=51 // pred_fallthru
        _
    $region52: #{ppgn_phi_forward.9} parent=5 // pred_fallthru
      _
  $region6: #{ppgn_phi_forward.9} parent=0 // loop_footer
    %s16 = sadd.s32 1, %s12
  $region7: #{ppgn_phi_forward.9} parent=0 // loop_footer_branch
    %11 = sbr.rel target = $region3
  $region8: #{ppgn_phi_forward.9} parent=0 // loop_exit
    _

// kernel: ppgn_phi_forward.10
$region0: #{ppgn_phi_forward.10}
  #allocation0 [shape = 'u32[]', space=smem, size = 0x4, offset = 0x4, fixed_abs, tag = 'smem constant byte address 0x4 - core index']
  #allocation1 [shape = 'u32[144,128]{1,0:T(1,128)}', space=vmem, size = 0x12000, scoped, tag = 'internal scratch']
  %s0 = inlined_call_operand.vmem [shape: f32[2,16,64], index: 0, kind: input, shape index: {}]
  %s1 = inlined_call_operand.vmem [shape: f32[16,16], index: 1, kind: input, shape index: {}]
  %s2 = inlined_call_operand.vmem [shape: f32[16,1], index: 2, kind: input, shape index: {}]
  %s3 = inlined_call_operand.vmem [shape: f32[16,16], index: 3, kind: input, shape index: {}]
  %s4 = inlined_call_operand.vmem [shape: f32[16,1], index: 4, kind: input, shape index: {}]
  %s5 = inlined_call_operand.vmem [shape: f32[16,16], index: 5, kind: input, shape index: {}]
  %s6 = inlined_call_operand.vmem [shape: f32[16,1], index: 6, kind: input, shape index: {}]
  %s7 = inlined_call_operand.vmem [shape: f32[16,16], index: 7, kind: input, shape index: {}]
  %s8 = inlined_call_operand.vmem [shape: f32[16,1], index: 8, kind: input, shape index: {}]
  %s9 = inlined_call_operand.vmem [shape: f32[2,1,64], index: 9, kind: input, shape index: {}]
  %s10 = inlined_call_operand.vmem [shape: f32[2,16,64], index: 10, kind: output, shape index: {0}]
  %s11 = inlined_call_operand.vmem [shape: f32[2,16,64], index: 11, kind: output, shape index: {1}]
  %12 = xla_tuple %s10, %s11
  %s13 = sld [smem:[#allocation0]]
  $region81: #{ppgn_phi_forward.10} parent=0
    _
  %s15 = ssub.s32 1, %s13
  %s16 = scalar_select 0, %s15, %s13
  loop: start=0, step=1, limit=4
  $region2: #{ppgn_phi_forward.10} parent=0 // loop_pre_header
    _
  $region3: #{ppgn_phi_forward.10} parent=0 // loop_header
    %s18 = sphi 0, %s22
    %p19 = scmp.ge.s32.totalorder %s18, 4
    %s25 = sphi 0, %s37
    %s26 = sphi 0, %s33
    %s27 = sphi 0, %s25
    %s28 = sphi 0, %s26
    %s29 = sphi 0, %s27
    %s30 = sphi 0, %s28
    %s42 = sphi 0, %s44
    %s45 = sphi 0, %s42
    %s46 = sphi 0, %s45
    %s62 = sphi 0, %s46
    %s66 = sphi 0, %s66
    %s68 = sphi 0, %s66
    %s69 = sphi 0, %s68
    %s83 = sphi 0, %s69
    %s87 = sphi 0, %s87
    %s89 = sphi 0, %s87
    %s90 = sphi 0, %s89
    %s104 = sphi 0, %s90
    %s108 = sphi 0, %s108
    %s110 = sphi 0, %s108
    %s111 = sphi 0, %s110
    %s125 = sphi 0, %s111
    %s129 = sphi 0, %s129
    %s131 = sphi 0, %s129
    %s132 = sphi 0, %s131
    %s146 = sphi 0, %s132
    %s150 = sphi 0, %s150
    %s152 = sphi 0, %s150
    %s153 = sphi 0, %s152
    %s167 = sphi 0, %s153
    %s171 = sphi 0, %s171
    %s173 = sphi 0, %s171
    %s174 = sphi 0, %s173
    %s188 = sphi 0, %s174
    %s192 = sphi 0, %s192
    %s194 = sphi 0, %s192
    %s195 = sphi 0, %s194
    %s209 = sphi 0, %s195
    %s213 = sphi 0, %s213
    %s215 = sphi 0, %s213
    %s216 = sphi 0, %s215
    %s230 = sphi 0, %s216
    %s238 = sphi 0, %s240
    %s241 = sphi 0, %s238
    %s242 = sphi 0, %s241
    %s258 = sphi 0, %s242
    %s266 = sphi 0, %s268
    %s269 = sphi 0, %s266
    %s270 = sphi 0, %s269
    %s286 = sphi 0, %s270
    %s294 = sphi 0, %s296
    %s297 = sphi 0, %s294
    %s298 = sphi 0, %s297
    %s314 = sphi 0, %s298
  $region4: #{ppgn_phi_forward.10} parent=0 // loop_header_branch
    %21 = sbr.rel (%p19) target = $region8
  $region5: #{ppgn_phi_forward.10} parent=0 // loop_body
    %s23 = ssub.s32 %s18, 1
    %s24 = ssub.s32 %s18, 2
    %s31 = sadd.s32 1, %s26
    %p32 = scmp.ge.s32.totalorder %s31, 1
    %s33 = scalar_select %p32, 0, %s31
    %s34 = sadd.s32 1, %s25
    %s35 = scalar_select %p32, %s34, %s25
    %p36 = scmp.ge.s32.totalorder %s35, 2
    %s37 = scalar_select %p36, 0, %s35
    %s38 = ssub.s32 %s25, %s37
    %s39 = ssub.s32 %s26, %s33
    %s40 = sor.u32 %s38, %s39
    %p41 = scmp.eq.s32.totalorder %s40, 0
    %s43 = sadd.s32 %s42, 1
    %s44 = scalar_select %p41, %s42, %s43
    %p47 = pneg %p41
    %p48 = scmp.eq.s32.totalorder %s18, 1
    %p49 = por %p47, %p48
    %p50 = scmp.ne.s32.totalorder %s42, %s45
    %p51 = scmp.eq.s32.totalorder %s18, 0
    %p52 = por %p50, %p51
    %p53 = scmp.ne.s32.totalorder %s42, %s45
    %p54 = scmp.eq.s32.totalorder %s23, 1
    %p55 = por %p53, %p54
    %p56 = scmp.ne.s32.totalorder %s45, %s46
    %p57 = scmp.eq.s32.totalorder %s23, 0
    %p58 = por %p56, %p57
    %p59 = scmp.ne.s32.totalorder %s45, %s46
    %p60 = scmp.eq.s32.totalorder %s24, 1
    %p61 = por %p59, %p60
    %p63 = scmp.ne.s32.totalorder %s46, %s62
    %p64 = scmp.eq.s32.totalorder %s24, 0
    %p65 = por %p63, %p64
    %s67 = sadd.s32 %s66, 1
    %p70 = scmp.eq.s32.totalorder %s18, 1
    %p71 = scmp.ne.s32.totalorder %s66, %s68
    %p72 = scmp.eq.s32.totalorder %s18, 0
    %p73 = por %p71, %p72
    %p74 = scmp.ne.s32.totalorder %s66, %s68
    %p75 = scmp.eq.s32.totalorder %s23, 1
    %p76 = por %p74, %p75
    %p77 = scmp.ne.s32.totalorder %s68, %s69
    %p78 = scmp.eq.s32.totalorder %s23, 0
    %p79 = por %p77, %p78
    %p80 = scmp.ne.s32.totalorder %s68, %s69
    %p81 = scmp.eq.s32.totalorder %s24, 1
    %p82 = por %p80, %p81
    %p84 = scmp.ne.s32.totalorder %s69, %s83
    %p85 = scmp.eq.s32.totalorder %s24, 0
    %p86 = por %p84, %p85
    %s88 = sadd.s32 %s87, 1
    %p91 = scmp.eq.s32.totalorder %s18, 1
    %p92 = scmp.ne.s32.totalorder %s87, %s89
    %p93 = scmp.eq.s32.totalorder %s18, 0
    %p94 = por %p92, %p93
    %p95 = scmp.ne.s32.totalorder %s87, %s89
    %p96 = scmp.eq.s32.totalorder %s23, 1
    %p97 = por %p95, %p96
    %p98 = scmp.ne.s32.totalorder %s89, %s90
    %p99 = scmp.eq.s32.totalorder %s23, 0
    %p100 = por %p98, %p99
    %p101 = scmp.ne.s32.totalorder %s89, %s90
    %p102 = scmp.eq.s32.totalorder %s24, 1
    %p103 = por %p101, %p102
    %p105 = scmp.ne.s32.totalorder %s90, %s104
    %p106 = scmp.eq.s32.totalorder %s24, 0
    %p107 = por %p105, %p106
    %s109 = sadd.s32 %s108, 1
    %p112 = scmp.eq.s32.totalorder %s18, 1
    %p113 = scmp.ne.s32.totalorder %s108, %s110
    %p114 = scmp.eq.s32.totalorder %s18, 0
    %p115 = por %p113, %p114
    %p116 = scmp.ne.s32.totalorder %s108, %s110
    %p117 = scmp.eq.s32.totalorder %s23, 1
    %p118 = por %p116, %p117
    %p119 = scmp.ne.s32.totalorder %s110, %s111
    %p120 = scmp.eq.s32.totalorder %s23, 0
    %p121 = por %p119, %p120
    %p122 = scmp.ne.s32.totalorder %s110, %s111
    %p123 = scmp.eq.s32.totalorder %s24, 1
    %p124 = por %p122, %p123
    %p126 = scmp.ne.s32.totalorder %s111, %s125
    %p127 = scmp.eq.s32.totalorder %s24, 0
    %p128 = por %p126, %p127
    %s130 = sadd.s32 %s129, 1
    %p133 = scmp.eq.s32.totalorder %s18, 1
    %p134 = scmp.ne.s32.totalorder %s129, %s131
    %p135 = scmp.eq.s32.totalorder %s18, 0
    %p136 = por %p134, %p135
    %p137 = scmp.ne.s32.totalorder %s129, %s131
    %p138 = scmp.eq.s32.totalorder %s23, 1
    %p139 = por %p137, %p138
    %p140 = scmp.ne.s32.totalorder %s131, %s132
    %p141 = scmp.eq.s32.totalorder %s23, 0
    %p142 = por %p140, %p141
    %p143 = scmp.ne.s32.totalorder %s131, %s132
    %p144 = scmp.eq.s32.totalorder %s24, 1
    %p145 = por %p143, %p144
    %p147 = scmp.ne.s32.totalorder %s132, %s146
    %p148 = scmp.eq.s32.totalorder %s24, 0
    %p149 = por %p147, %p148
    %s151 = sadd.s32 %s150, 1
    %p154 = scmp.eq.s32.totalorder %s18, 1
    %p155 = scmp.ne.s32.totalorder %s150, %s152
    %p156 = scmp.eq.s32.totalorder %s18, 0
    %p157 = por %p155, %p156
    %p158 = scmp.ne.s32.totalorder %s150, %s152
    %p159 = scmp.eq.s32.totalorder %s23, 1
    %p160 = por %p158, %p159
    %p161 = scmp.ne.s32.totalorder %s152, %s153
    %p162 = scmp.eq.s32.totalorder %s23, 0
    %p163 = por %p161, %p162
    %p164 = scmp.ne.s32.totalorder %s152, %s153
    %p165 = scmp.eq.s32.totalorder %s24, 1
    %p166 = por %p164, %p165
    %p168 = scmp.ne.s32.totalorder %s153, %s167
    %p169 = scmp.eq.s32.totalorder %s24, 0
    %p170 = por %p168, %p169
    %s172 = sadd.s32 %s171, 1
    %p175 = scmp.eq.s32.totalorder %s18, 1
    %p176 = scmp.ne.s32.totalorder %s171, %s173
    %p177 = scmp.eq.s32.totalorder %s18, 0
    %p178 = por %p176, %p177
    %p179 = scmp.ne.s32.totalorder %s171, %s173
    %p180 = scmp.eq.s32.totalorder %s23, 1
    %p181 = por %p179, %p180
    %p182 = scmp.ne.s32.totalorder %s173, %s174
    %p183 = scmp.eq.s32.totalorder %s23, 0
    %p184 = por %p182, %p183
    %p185 = scmp.ne.s32.totalorder %s173, %s174
    %p186 = scmp.eq.s32.totalorder %s24, 1
    %p187 = por %p185, %p186
    %p189 = scmp.ne.s32.totalorder %s174, %s188
    %p190 = scmp.eq.s32.totalorder %s24, 0
    %p191 = por %p189, %p190
    %s193 = sadd.s32 %s192, 1
    %p196 = scmp.eq.s32.totalorder %s18, 1
    %p197 = scmp.ne.s32.totalorder %s192, %s194
    %p198 = scmp.eq.s32.totalorder %s18, 0
    %p199 = por %p197, %p198
    %p200 = scmp.ne.s32.totalorder %s192, %s194
    %p201 = scmp.eq.s32.totalorder %s23, 1
    %p202 = por %p200, %p201
    %p203 = scmp.ne.s32.totalorder %s194, %s195
    %p204 = scmp.eq.s32.totalorder %s23, 0
    %p205 = por %p203, %p204
    %p206 = scmp.ne.s32.totalorder %s194, %s195
    %p207 = scmp.eq.s32.totalorder %s24, 1
    %p208 = por %p206, %p207
    %p210 = scmp.ne.s32.totalorder %s195, %s209
    %p211 = scmp.eq.s32.totalorder %s24, 0
    %p212 = por %p210, %p211
    %s214 = sadd.s32 %s213, 1
    %p217 = scmp.eq.s32.totalorder %s18, 1
    %p218 = scmp.ne.s32.totalorder %s213, %s215
    %p219 = scmp.eq.s32.totalorder %s18, 0
    %p220 = por %p218, %p219
    %p221 = scmp.ne.s32.totalorder %s213, %s215
    %p222 = scmp.eq.s32.totalorder %s23, 1
    %p223 = por %p221, %p222
    %p224 = scmp.ne.s32.totalorder %s215, %s216
    %p225 = scmp.eq.s32.totalorder %s23, 0
    %p226 = por %p224, %p225
    %p227 = scmp.ne.s32.totalorder %s215, %s216
    %p228 = scmp.eq.s32.totalorder %s24, 1
    %p229 = por %p227, %p228
    %p231 = scmp.ne.s32.totalorder %s216, %s230
    %p232 = scmp.eq.s32.totalorder %s24, 0
    %p233 = por %p231, %p232
    %s234 = ssub.s32 %s25, %s37
    %s235 = ssub.s32 %s26, %s33
    %s236 = sor.u32 %s234, %s235
    %p237 = scmp.eq.s32.totalorder %s236, 0
    %s239 = sadd.s32 %s238, 1
    %s240 = scalar_select %p237, %s238, %s239
    %p243 = pneg %p237
    %p244 = scmp.eq.s32.totalorder %s18, 1
    %p245 = por %p243, %p244
    %p246 = scmp.ne.s32.totalorder %s238, %s241
    %p247 = scmp.eq.s32.totalorder %s18, 0
    %p248 = por %p246, %p247
    %p249 = scmp.ne.s32.totalorder %s238, %s241
    %p250 = scmp.eq.s32.totalorder %s23, 1
    %p251 = por %p249, %p250
    %p252 = scmp.ne.s32.totalorder %s241, %s242
    %p253 = scmp.eq.s32.totalorder %s23, 0
    %p254 = por %p252, %p253
    %p255 = scmp.ne.s32.totalorder %s241, %s242
    %p256 = scmp.eq.s32.totalorder %s24, 1
    %p257 = por %p255, %p256
    %p259 = scmp.ne.s32.totalorder %s242, %s258
    %p260 = scmp.eq.s32.totalorder %s24, 0
    %p261 = por %p259, %p260
    %s262 = ssub.s32 %s25, %s37
    %s263 = ssub.s32 %s26, %s33
    %s264 = sor.u32 %s262, %s263
    %p265 = scmp.eq.s32.totalorder %s264, 0
    %s267 = sadd.s32 %s266, 1
    %s268 = scalar_select %p265, %s266, %s267
    %p271 = pneg %p265
    %p272 = scmp.eq.s32.totalorder %s18, 1
    %p273 = por %p271, %p272
    %p274 = scmp.ne.s32.totalorder %s266, %s269
    %p275 = scmp.eq.s32.totalorder %s18, 0
    %p276 = por %p274, %p275
    %p277 = scmp.ne.s32.totalorder %s266, %s269
    %p278 = scmp.eq.s32.totalorder %s23, 1
    %p279 = por %p277, %p278
    %p280 = scmp.ne.s32.totalorder %s269, %s270
    %p281 = scmp.eq.s32.totalorder %s23, 0
    %p282 = por %p280, %p281
    %p283 = scmp.ne.s32.totalorder %s269, %s270
    %p284 = scmp.eq.s32.totalorder %s24, 1
    %p285 = por %p283, %p284
    %p287 = scmp.ne.s32.totalorder %s270, %s286
    %p288 = scmp.eq.s32.totalorder %s24, 0
    %p289 = por %p287, %p288
    %s290 = ssub.s32 %s25, %s37
    %s291 = ssub.s32 %s26, %s33
    %s292 = sor.u32 %s290, %s291
    %p293 = scmp.eq.s32.totalorder %s292, 0
    %s295 = sadd.s32 %s294, 1
    %s296 = scalar_select %p293, %s294, %s295
    %p299 = pneg %p293
    %p300 = scmp.eq.s32.totalorder %s18, 1
    %p301 = por %p299, %p300
    %p302 = scmp.ne.s32.totalorder %s294, %s297
    %p303 = scmp.eq.s32.totalorder %s18, 0
    %p304 = por %p302, %p303
    %p305 = scmp.ne.s32.totalorder %s294, %s297
    %p306 = scmp.eq.s32.totalorder %s23, 1
    %p307 = por %p305, %p306
    %p308 = scmp.ne.s32.totalorder %s297, %s298
    %p309 = scmp.eq.s32.totalorder %s23, 0
    %p310 = por %p308, %p309
    %p311 = scmp.ne.s32.totalorder %s297, %s298
    %p312 = scmp.eq.s32.totalorder %s24, 1
    %p313 = por %p311, %p312
    %p315 = scmp.ne.s32.totalorder %s298, %s314
    %p316 = scmp.eq.s32.totalorder %s24, 0
    %p317 = por %p315, %p316
    %p318 = scmp.le.s32.totalorder 1, %s18
    %p319 = scmp.lt.s32.totalorder %s18, 3
    %p320 = pnand %p318, %p319
    %p321 = pneg %p320
    // Predicated region
    $region9: #{ppgn_phi_forward.10} parent=5 // pred_check
      _
    $region10: #{ppgn_phi_forward.10} parent=5 // pred_check_branch
      %323 = sbr.rel (%p320) target = $region12
    $region11: #{ppgn_phi_forward.10} parent=5 // pred_region
      %s324 = ssub.s32 %s18, 1
      // Predicated region
      $region13: #{ppgn_phi_forward.10} parent=11 // pred_check
        %p325 = pneg %p79
      $region14: #{ppgn_phi_forward.10} parent=11 // pred_check_branch
        %327 = sbr.rel (%p325) target = $region16
      $region15: #{ppgn_phi_forward.10} parent=11 // pred_region
        _
      $region16: #{ppgn_phi_forward.10} parent=11 // pred_fallthru
        _
      // Predicated region
      $region17: #{ppgn_phi_forward.10} parent=11 // pred_check
        %p328 = pneg %p100
      $region18: #{ppgn_phi_forward.10} parent=11 // pred_check_branch
        %330 = sbr.rel (%p328) target = $region20
      $region19: #{ppgn_phi_forward.10} parent=11 // pred_region
        _
      $region20: #{ppgn_phi_forward.10} parent=11 // pred_fallthru
        _
      // Predicated region
      $region21: #{ppgn_phi_forward.10} parent=11 // pred_check
        %p331 = pneg %p121
      $region22: #{ppgn_phi_forward.10} parent=11 // pred_check_branch
        %333 = sbr.rel (%p331) target = $region24
      $region23: #{ppgn_phi_forward.10} parent=11 // pred_region
        _
      $region24: #{ppgn_phi_forward.10} parent=11 // pred_fallthru
        _
      // Predicated region
      $region25: #{ppgn_phi_forward.10} parent=11 // pred_check
        %p334 = pneg %p142
      $region26: #{ppgn_phi_forward.10} parent=11 // pred_check_branch
        %336 = sbr.rel (%p334) target = $region28
      $region27: #{ppgn_phi_forward.10} parent=11 // pred_region
        _
      $region28: #{ppgn_phi_forward.10} parent=11 // pred_fallthru
        _
      // Predicated region
      $region29: #{ppgn_phi_forward.10} parent=11 // pred_check
        %p337 = pneg %p163
      $region30: #{ppgn_phi_forward.10} parent=11 // pred_check_branch
        %339 = sbr.rel (%p337) target = $region32
      $region31: #{ppgn_phi_forward.10} parent=11 // pred_region
        _
      $region32: #{ppgn_phi_forward.10} parent=11 // pred_fallthru
        _
      // Predicated region
      $region33: #{ppgn_phi_forward.10} parent=11 // pred_check
        %p340 = pneg %p184
      $region34: #{ppgn_phi_forward.10} parent=11 // pred_check_branch
        %342 = sbr.rel (%p340) target = $region36
      $region35: #{ppgn_phi_forward.10} parent=11 // pred_region
        _
      $region36: #{ppgn_phi_forward.10} parent=11 // pred_fallthru
        _
      // Predicated region
      $region37: #{ppgn_phi_forward.10} parent=11 // pred_check
        %p343 = pneg %p205
      $region38: #{ppgn_phi_forward.10} parent=11 // pred_check_branch
        %345 = sbr.rel (%p343) target = $region40
      $region39: #{ppgn_phi_forward.10} parent=11 // pred_region
        _
      $region40: #{ppgn_phi_forward.10} parent=11 // pred_fallthru
        _
      // Predicated region
      $region41: #{ppgn_phi_forward.10} parent=11 // pred_check
        %p346 = pneg %p226
      $region42: #{ppgn_phi_forward.10} parent=11 // pred_check_branch
        %348 = sbr.rel (%p346) target = $region44
      $region43: #{ppgn_phi_forward.10} parent=11 // pred_region
        _
      $region44: #{ppgn_phi_forward.10} parent=11 // pred_fallthru
        _
    $region12: #{ppgn_phi_forward.10} parent=5 // pred_fallthru
      _
    %p349 = scmp.lt.s32.totalorder %s18, 2
    // Predicated region
    $region45: #{ppgn_phi_forward.10} parent=5 // pred_check
      %p350 = pneg %p349
    $region46: #{ppgn_phi_forward.10} parent=5 // pred_check_branch
      %352 = sbr.rel (%p350) target = $region48
    $region47: #{ppgn_phi_forward.10} parent=5 // pred_region
      // Predicated region
      $region49: #{ppgn_phi_forward.10} parent=47 // pred_check
        %p353 = pneg %p52
      $region50: #{ppgn_phi_forward.10} parent=47 // pred_check_branch
        %355 = sbr.rel (%p353) target = $region52
      $region51: #{ppgn_phi_forward.10} parent=47 // pred_region
        %p356 = scmp.lt.s32.totalorder %s25, 1
        %s357 = scalar_select %p356, %s25, 1
        %p358 = scmp.lt.s32.totalorder %s26, 0
        %s359 = scalar_select %p358, %s26, 0
        %s360 = smul.addr %s357, 2
        %s361 = sadd.s32 %s359, %s360
        %s362 = smul.addr %s361, 8
        %s363 = scalar_lea.vmem %s0, %s362
      $region52: #{ppgn_phi_forward.10} parent=47 // pred_fallthru
        _
      // Predicated region
      $region53: #{ppgn_phi_forward.10} parent=47 // pred_check
        %p364 = pneg %p248
      $region54: #{ppgn_phi_forward.10} parent=47 // pred_check_branch
        %366 = sbr.rel (%p364) target = $region56
      $region55: #{ppgn_phi_forward.10} parent=47 // pred_region
        %p367 = scmp.lt.s32.totalorder %s25, 1
        %s368 = scalar_select %p367, %s25, 1
        %p369 = scmp.lt.s32.totalorder %s26, 0
        %s370 = scalar_select %p369, %s26, 0
        %s371 = sadd.s32 %s370, %s368
        %s372 = scalar_lea.vmem %s9, %s371
      $region56: #{ppgn_phi_forward.10} parent=47 // pred_fallthru
        _
    $region48: #{ppgn_phi_forward.10} parent=5 // pred_fallthru
      _
    %p373 = scmp.le.s32.totalorder 1, %s18
    %p374 = scmp.lt.s32.totalorder %s18, 3
    %p375 = pnand %p373, %p374
    %p376 = pneg %p375
    // Predicated region
    $region57: #{ppgn_phi_forward.10} parent=5 // pred_check
      _
    $region58: #{ppgn_phi_forward.10} parent=5 // pred_check_branch
      %378 = sbr.rel (%p375) target = $region60
    $region59: #{ppgn_phi_forward.10} parent=5 // pred_region
      %s379 = ssub.s32 %s18, 1
      %p380 = scmp.lt.s32.totalorder %s27, 1
      %s381 = scalar_select %p380, %s27, 1
      %p382 = scmp.lt.s32.totalorder %s28, 0
      %s383 = scalar_select %p382, %s28, 0
      %s384 = smul.addr %s381, 2
      %s385 = sadd.s32 %s383, %s384
      %s386 = smul.addr %s385, 8
      %s387 = scalar_lea.vmem %s0, %s386
      %p388 = pneg %p58
      %p389 = pneg %p55
      %p390 = pneg %p79
      %p391 = pneg %p76
      %p392 = pneg %p100
      %p393 = pneg %p97
      %p394 = pneg %p121
      %p395 = pneg %p118
      %p396 = pneg %p142
      %p397 = pneg %p139
      %p398 = pneg %p163
      %p399 = pneg %p160
      %p400 = pneg %p184
      %p401 = pneg %p181
      %p402 = pneg %p205
      %p403 = pneg %p202
      %p404 = pneg %p226
      %p405 = pneg %p223
      %p406 = scmp.lt.s32.totalorder %s27, 1
      %s407 = scalar_select %p406, %s27, 1
      %p408 = scmp.lt.s32.totalorder %s28, 0
      %s409 = scalar_select %p408, %s28, 0
      %s410 = sadd.s32 %s409, %s407
      %s411 = scalar_lea.vmem %s9, %s410
      %p412 = pneg %p254
      %p413 = pneg %p251
      %p414 = pneg %p282
      %p415 = pneg %p279
      %p416 = scmp.lt.s32.totalorder %s27, 1
      %s417 = scalar_select %p416, %s27, 1
      %p418 = scmp.lt.s32.totalorder %s28, 0
      %s419 = scalar_select %p418, %s28, 0
      %s420 = smul.addr %s417, 2
      %s421 = sadd.s32 %s419, %s420
      %s422 = smul.addr %s421, 8
      %s423 = scalar_lea.vmem %s10, %s422
      %p424 = pneg %p310
      %p425 = pneg %p307
      %p426 = scmp.lt.s32.totalorder %s27, 1
      %s427 = scalar_select %p426, %s27, 1
      %p428 = scmp.lt.s32.totalorder %s28, 0
      %s429 = scalar_select %p428, %s28, 0
      %s430 = smul.addr %s427, 2
      %s431 = sadd.s32 %s429, %s430
      %s432 = smul.addr %s431, 8
      %s433 = scalar_lea.vmem %s11, %s432
      %p434 = scmp.lt.s32.totalorder %s27, 1
      %s435 = scalar_select %p434, %s27, 1
      %p436 = scmp.lt.s32.totalorder %s28, 0
      %s437 = scalar_select %p436, %s28, 0
      %s438 = smul.addr %s435, 2
      %s439 = sadd.s32 %s437, %s438
      %s440 = smul.addr %s439, 8
      %s441 = scalar_lea.vmem %s0, %s440
      %p442 = scmp.lt.s32.totalorder %s27, 1
      %s443 = scalar_select %p442, %s27, 1
      %p444 = scmp.lt.s32.totalorder %s28, 0
      %s445 = scalar_select %p444, %s28, 0
      %s446 = sadd.s32 %s445, %s443
      %s447 = scalar_lea.vmem %s9, %s446
      %p448 = scmp.lt.s32.totalorder %s27, 1
      %s449 = scalar_select %p448, %s27, 1
      %p450 = scmp.lt.s32.totalorder %s28, 0
      %s451 = scalar_select %p450, %s28, 0
      %s452 = smul.addr %s449, 2
      %s453 = sadd.s32 %s451, %s452
      %s454 = smul.addr %s453, 8
      %s455 = scalar_lea.vmem %s10, %s454
      %p456 = scmp.lt.s32.totalorder %s27, 1
      %s457 = scalar_select %p456, %s27, 1
      %p458 = scmp.lt.s32.totalorder %s28, 0
      %s459 = scalar_select %p458, %s28, 0
      %s460 = smul.addr %s457, 2
      %s461 = sadd.s32 %s459, %s460
      %s462 = smul.addr %s461, 8
      %s463 = scalar_lea.vmem %s11, %s462
      %v464 = vld [vmem:[%s441] sm:$0xff]
      %v465 = vld [vmem:[%s441 + $0x8] sm:$0xff]
      %v466 = vld [vmem:[%s447] sm:$0x1]
      %v467 = vld [vmem:[%s1] sm:$0xff]
      %v468 = vld [vmem:[%s1 + $0x8] sm:$0xff]
      %v469 = vld [vmem:[%s2] sm:$0xff]
      %v470 = vld [vmem:[%s2 + $0x8] sm:$0xff]
      %472 = vset.pattern.permute.xlu0 0
      %473 = vperm.xlu0 %472, %v469
      %v474 = vpop.permute.xlu0 %473
      %477 = vset.pattern.permute.xlu0 0
      %478 = vperm.xlu0 %477, %v470
      %v479 = vpop.permute.xlu0 %478
      %vm481 = vcmask 130048
      %v483 = vsel %vm481, %v467, 0
      %v486 = vsel %vm481, %v468, 0
      %488 = vmatprep.subr.mxu0 0.0
      %489 = vmatpush1.msra.mxu0 %v464
      %490 = vmatprep.subr.mxu0 0.0
      %491 = vmatpush1.msra.mxu0 %v465
      %492 = vmatprep.subr.mxu0 0.0
      %493 = vmatpush1.msra.mxu0 0.0
      %494 = vmatprep.subr.mxu0 0.0
      %495 = vmatpush1.msra.mxu0 0.0
      %496 = vmatprep.subr.mxu0 0.0
      %497 = vmatpush1.msra.mxu0 0.0
      %498 = vmatprep.subr.mxu0 0.0
      %499 = vmatpush1.msra.mxu0 0.0
      %500 = vmatprep.subr.mxu0 0.0
      %501 = vmatpush1.msra.mxu0 0.0
      %502 = vmatprep.subr.mxu0 0.0
      %503 = vmatpush1.msra.mxu0 0.0
      %504 = vmatprep.subr.mxu0 0.0
      %505 = vmatpush1.msra.mxu0 0.0
      %506 = vmatprep.subr.mxu0 0.0
      %507 = vmatpush1.msra.mxu0 0.0
      %508 = vmatprep.subr.mxu0 0.0
      %509 = vmatpush1.msra.mxu0 0.0
      %510 = vmatprep.subr.mxu0 0.0
      %511 = vmatpush1.msra.mxu0 0.0
      %512 = vmatprep.subr.mxu0 0.0
      %513 = vmatpush1.msra.mxu0 0.0
      %514 = vmatprep.subr.mxu0 0.0
      %515 = vmatpush1.msra.mxu0 0.0
      %516 = vmatprep.subr.mxu0 0.0
      %517 = vmatpush1.msra.mxu0 0.0
      %518 = vmatprep.subr.mxu0 0.0
      %519 = vmatpush1.msra.mxu0 0.0
      %520 = vmatprep.subr.mxu0 0.0
      %521 = vmatpush1.msra.mxu0 0.0
      %522 = vmatprep.subr.mxu0 0.0
      %523 = vmatpush1.msra.mxu0 0.0
      %524 = vmatprep.subr.mxu0 0.0
      %525 = vmatpush1.msra.mxu0 0.0
      %526 = vmatprep.subr.mxu0 0.0
      %527 = vmatpush1.msra.mxu0 0.0
      %528 = vmatprep.subr.mxu0 0.0
      %529 = vmatpush1.msra.mxu0 0.0
      %530 = vmatprep.subr.mxu0 0.0
      %531 = vmatpush1.msra.mxu0 0.0
      %532 = vmatprep.subr.mxu0 0.0
      %533 = vmatpush1.msra.mxu0 0.0
      %534 = vmatprep.subr.mxu0 0.0
      %535 = vmatpush1.msra.mxu0 0.0
      %536 = vmatprep.subr.mxu0 0.0
      %537 = vmatpush1.msra.mxu0 0.0
      %538 = vmatprep.subr.mxu0 0.0
      %539 = vmatpush1.msra.mxu0 0.0
      %540 = vmatprep.subr.mxu0 0.0
      %541 = vmatpush1.msra.mxu0 0.0
      %542 = vmatprep.subr.mxu0 0.0
      %543 = vmatpush1.msra.mxu0 0.0
      %544 = vmatprep.subr.mxu0 0.0
      %545 = vmatpush1.msra.mxu0 0.0
      %546 = vmatprep.subr.mxu0 0.0
      %547 = vmatpush1.msra.mxu0 0.0
      %548 = vmatprep.subr.mxu0 0.0
      %549 = vmatpush1.msra.mxu0 0.0
      %550 = vmatprep.subr.mxu0 0.0
      %551 = vmatpush1.msra.mxu0 0.0
      %552 = vmatprep.mubr.f32.mxu0 0.0
      %553 = vmatmul.mubr.f32.gmra.mrb[0].mxu0 %v483
      %v554 = vpop.f32.mrb[0].mxu0
      %v555 = vadd.f32 %v474, %v554
      %v556 = vpop.f32.mrb[0].mxu0
      %557 = vmatprep.mubr.f32.mxu0 0.0
      %558 = vmatmul.mubr.f32.gmra.mrb[0].mxu0 %v486
      %v559 = vpop.f32.mrb[0].mxu0
      %v560 = vadd.f32 %v479, %v559
      %v561 = vpop.f32.mrb[0].mxu0
      %562 = vdwg.mxu0
      %v563 = vmax.f32 %v555, 0.0
      %v564 = vmax.f32 %v560, 0.0
      %v565 = vld [vmem:[%s3] sm:$0xff]
      %v566 = vld [vmem:[%s3 + $0x8] sm:$0xff]
      %v567 = vld [vmem:[%s4] sm:$0xff]
      %v568 = vld [vmem:[%s4 + $0x8] sm:$0xff]
      %570 = vset.pattern.permute.xlu0 0
      %571 = vperm.xlu0 %570, %v567
      %v572 = vpop.permute.xlu0 %571
      %575 = vset.pattern.permute.xlu0 0
      %576 = vperm.xlu0 %575, %v568
      %v577 = vpop.permute.xlu0 %576
      %v580 = vsel %vm481, %v565, 0
      %v583 = vsel %vm481, %v566, 0
      %585 = vmatprep.subr.mxu0 0.0
      %586 = vmatpush1.msra.mxu0 %v563
      %587 = vmatprep.subr.mxu0 0.0
      %588 = vmatpush1.msra.mxu0 %v564
      %589 = vmatprep.subr.mxu0 0.0
      %590 = vmatpush1.msra.mxu0 0.0
      %591 = vmatprep.subr.mxu0 0.0
      %592 = vmatpush1.msra.mxu0 0.0
      %593 = vmatprep.subr.mxu0 0.0
      %594 = vmatpush1.msra.mxu0 0.0
      %595 = vmatprep.subr.mxu0 0.0
      %596 = vmatpush1.msra.mxu0 0.0
      %597 = vmatprep.subr.mxu0 0.0
      %598 = vmatpush1.msra.mxu0 0.0
      %599 = vmatprep.subr.mxu0 0.0
      %600 = vmatpush1.msra.mxu0 0.0
      %601 = vmatprep.subr.mxu0 0.0
      %602 = vmatpush1.msra.mxu0 0.0
      %603 = vmatprep.subr.mxu0 0.0
      %604 = vmatpush1.msra.mxu0 0.0
      %605 = vmatprep.subr.mxu0 0.0
      %606 = vmatpush1.msra.mxu0 0.0
      %607 = vmatprep.subr.mxu0 0.0
      %608 = vmatpush1.msra.mxu0 0.0
      %609 = vmatprep.subr.mxu0 0.0
      %610 = vmatpush1.msra.mxu0 0.0
      %611 = vmatprep.subr.mxu0 0.0
      %612 = vmatpush1.msra.mxu0 0.0
      %613 = vmatprep.subr.mxu0 0.0
      %614 = vmatpush1.msra.mxu0 0.0
      %615 = vmatprep.subr.mxu0 0.0
      %616 = vmatpush1.msra.mxu0 0.0
      %617 = vmatprep.subr.mxu0 0.0
      %618 = vmatpush1.msra.mxu0 0.0
      %619 = vmatprep.subr.mxu0 0.0
      %620 = vmatpush1.msra.mxu0 0.0
      %621 = vmatprep.subr.mxu0 0.0
      %622 = vmatpush1.msra.mxu0 0.0
      %623 = vmatprep.subr.mxu0 0.0
      %624 = vmatpush1.msra.mxu0 0.0
      %625 = vmatprep.subr.mxu0 0.0
      %626 = vmatpush1.msra.mxu0 0.0
      %627 = vmatprep.subr.mxu0 0.0
      %628 = vmatpush1.msra.mxu0 0.0
      %629 = vmatprep.subr.mxu0 0.0
      %630 = vmatpush1.msra.mxu0 0.0
      %631 = vmatprep.subr.mxu0 0.0
      %632 = vmatpush1.msra.mxu0 0.0
      %633 = vmatprep.subr.mxu0 0.0
      %634 = vmatpush1.msra.mxu0 0.0
      %635 = vmatprep.subr.mxu0 0.0
      %636 = vmatpush1.msra.mxu0 0.0
      %637 = vmatprep.subr.mxu0 0.0
      %638 = vmatpush1.msra.mxu0 0.0
      %639 = vmatprep.subr.mxu0 0.0
      %640 = vmatpush1.msra.mxu0 0.0
      %641 = vmatprep.subr.mxu0 0.0
      %642 = vmatpush1.msra.mxu0 0.0
      %643 = vmatprep.subr.mxu0 0.0
      %644 = vmatpush1.msra.mxu0 0.0
      %645 = vmatprep.subr.mxu0 0.0
      %646 = vmatpush1.msra.mxu0 0.0
      %647 = vmatprep.subr.mxu0 0.0
      %648 = vmatpush1.msra.mxu0 0.0
      %649 = vmatprep.mubr.f32.mxu0 0.0
      %650 = vmatmul.mubr.f32.gmra.mrb[0].mxu0 %v580
      %v651 = vpop.f32.mrb[0].mxu0
      %v652 = vadd.f32 %v572, %v651
      %v653 = vpop.f32.mrb[0].mxu0
      %654 = vmatprep.mubr.f32.mxu0 0.0
      %655 = vmatmul.mubr.f32.gmra.mrb[0].mxu0 %v583
      %v656 = vpop.f32.mrb[0].mxu0
      %v657 = vadd.f32 %v577, %v656
      %v658 = vpop.f32.mrb[0].mxu0
      %659 = vdwg.mxu0
      %v661 = vlaneseq
      %v662 = vshrl.u32 %v661, 7
      %v663 = vsub.s32 0, %v662
      %v664 = vrot.slane %v466, %v663
      %v666 = vmul.f32 %v652, %v664
      %v667 = vmul.f32 %v657, %v664
      %vm668 = vcmask 523264
      %669 = vst.msk [vmem:[%s455] sm:$0xff] %vm668, %v666
      %670 = vst.msk [vmem:[%s455 + $0x8] sm:$0xff] %vm668, %v667
      %v671 = vld [vmem:[%s5] sm:$0xff]
      %v672 = vld [vmem:[%s5 + $0x8] sm:$0xff]
      %v673 = vld [vmem:[%s6] sm:$0xff]
      %v674 = vld [vmem:[%s6 + $0x8] sm:$0xff]
      %676 = vset.pattern.permute.xlu0 0
      %677 = vperm.xlu0 %676, %v673
      %v678 = vpop.permute.xlu0 %677
      %681 = vset.pattern.permute.xlu0 0
      %682 = vperm.xlu0 %681, %v674
      %v683 = vpop.permute.xlu0 %682
      %v686 = vsel %vm481, %v671, 0
      %v689 = vsel %vm481, %v672, 0
      %691 = vmatprep.subr.mxu0 0.0
      %692 = vmatpush1.msra.mxu0 %v464
      %693 = vmatprep.subr.mxu0 0.0
      %694 = vmatpush1.msra.mxu0 %v465
      %695 = vmatprep.subr.mxu0 0.0
      %696 = vmatpush1.msra.mxu0 0.0
      %697 = vmatprep.subr.mxu0 0.0
      %698 = vmatpush1.msra.mxu0 0.0
      %699 = vmatprep.subr.mxu0 0.0
      %700 = vmatpush1.msra.mxu0 0.0
      %701 = vmatprep.subr.mxu0 0.0
      %702 = vmatpush1.msra.mxu0 0.0
      %703 = vmatprep.subr.mxu0 0.0
      %704 = vmatpush1.msra.mxu0 0.0
      %705 = vmatprep.subr.mxu0 0.0
      %706 = vmatpush1.msra.mxu0 0.0
      %707 = vmatprep.subr.mxu0 0.0
      %708 = vmatpush1.msra.mxu0 0.0
      %709 = vmatprep.subr.mxu0 0.0
      %710 = vmatpush1.msra.mxu0 0.0
      %711 = vmatprep.subr.mxu0 0.0
      %712 = vmatpush1.msra.mxu0 0.0
      %713 = vmatprep.subr.mxu0 0.0
      %714 = vmatpush1.msra.mxu0 0.0
      %715 = vmatprep.subr.mxu0 0.0
      %716 = vmatpush1.msra.mxu0 0.0
      %717 = vmatprep.subr.mxu0 0.0
      %718 = vmatpush1.msra.mxu0 0.0
      %719 = vmatprep.subr.mxu0 0.0
      %720 = vmatpush1.msra.mxu0 0.0
      %721 = vmatprep.subr.mxu0 0.0
      %722 = vmatpush1.msra.mxu0 0.0
      %723 = vmatprep.subr.mxu0 0.0
      %724 = vmatpush1.msra.mxu0 0.0
      %725 = vmatprep.subr.mxu0 0.0
      %726 = vmatpush1.msra.mxu0 0.0
      %727 = vmatprep.subr.mxu0 0.0
      %728 = vmatpush1.msra.mxu0 0.0
      %729 = vmatprep.subr.mxu0 0.0
      %730 = vmatpush1.msra.mxu0 0.0
      %731 = vmatprep.subr.mxu0 0.0
      %732 = vmatpush1.msra.mxu0 0.0
      %733 = vmatprep.subr.mxu0 0.0
      %734 = vmatpush1.msra.mxu0 0.0
      %735 = vmatprep.subr.mxu0 0.0
      %736 = vmatpush1.msra.mxu0 0.0
      %737 = vmatprep.subr.mxu0 0.0
      %738 = vmatpush1.msra.mxu0 0.0
      %739 = vmatprep.subr.mxu0 0.0
      %740 = vmatpush1.msra.mxu0 0.0
      %741 = vmatprep.subr.mxu0 0.0
      %742 = vmatpush1.msra.mxu0 0.0
      %743 = vmatprep.subr.mxu0 0.0
      %744 = vmatpush1.msra.mxu0 0.0
      %745 = vmatprep.subr.mxu0 0.0
      %746 = vmatpush1.msra.mxu0 0.0
      %747 = vmatprep.subr.mxu0 0.0
      %748 = vmatpush1.msra.mxu0 0.0
      %749 = vmatprep.subr.mxu0 0.0
      %750 = vmatpush1.msra.mxu0 0.0
      %751 = vmatprep.subr.mxu0 0.0
      %752 = vmatpush1.msra.mxu0 0.0
      %753 = vmatprep.subr.mxu0 0.0
      %754 = vmatpush1.msra.mxu0 0.0
      %755 = vmatprep.mubr.f32.mxu0 0.0
      %756 = vmatmul.mubr.f32.gmra.mrb[0].mxu0 %v686
      %v757 = vpop.f32.mrb[0].mxu0
      %v758 = vadd.f32 %v678, %v757
      %v759 = vpop.f32.mrb[0].mxu0
      %760 = vmatprep.mubr.f32.mxu0 0.0
      %761 = vmatmul.mubr.f32.gmra.mrb[0].mxu0 %v689
      %v762 = vpop.f32.mrb[0].mxu0
      %v763 = vadd.f32 %v683, %v762
      %v764 = vpop.f32.mrb[0].mxu0
      %765 = vdwg.mxu0
      %v766 = vmax.f32 %v758, 0.0
      %v767 = vmax.f32 %v763, 0.0
      %v768 = vld [vmem:[%s7] sm:$0xff]
      %v769 = vld [vmem:[%s7 + $0x8] sm:$0xff]
      %v770 = vld [vmem:[%s8] sm:$0xff]
      %v771 = vld [vmem:[%s8 + $0x8] sm:$0xff]
      %773 = vset.pattern.permute.xlu0 0
      %774 = vperm.xlu0 %773, %v770
      %v775 = vpop.permute.xlu0 %774
      %778 = vset.pattern.permute.xlu0 0
      %779 = vperm.xlu0 %778, %v771
      %v780 = vpop.permute.xlu0 %779
      %v783 = vsel %vm481, %v768, 0
      %v786 = vsel %vm481, %v769, 0
      %788 = vmatprep.subr.mxu0 0.0
      %789 = vmatpush1.msra.mxu0 %v766
      %790 = vmatprep.subr.mxu0 0.0
      %791 = vmatpush1.msra.mxu0 %v767
      %792 = vmatprep.subr.mxu0 0.0
      %793 = vmatpush1.msra.mxu0 0.0
      %794 = vmatprep.subr.mxu0 0.0
      %795 = vmatpush1.msra.mxu0 0.0
      %796 = vmatprep.subr.mxu0 0.0
      %797 = vmatpush1.msra.mxu0 0.0
      %798 = vmatprep.subr.mxu0 0.0
      %799 = vmatpush1.msra.mxu0 0.0
      %800 = vmatprep.subr.mxu0 0.0
      %801 = vmatpush1.msra.mxu0 0.0
      %802 = vmatprep.subr.mxu0 0.0
      %803 = vmatpush1.msra.mxu0 0.0
      %804 = vmatprep.subr.mxu0 0.0
      %805 = vmatpush1.msra.mxu0 0.0
      %806 = vmatprep.subr.mxu0 0.0
      %807 = vmatpush1.msra.mxu0 0.0
      %808 = vmatprep.subr.mxu0 0.0
      %809 = vmatpush1.msra.mxu0 0.0
      %810 = vmatprep.subr.mxu0 0.0
      %811 = vmatpush1.msra.mxu0 0.0
      %812 = vmatprep.subr.mxu0 0.0
      %813 = vmatpush1.msra.mxu0 0.0
      %814 = vmatprep.subr.mxu0 0.0
      %815 = vmatpush1.msra.mxu0 0.0
      %816 = vmatprep.subr.mxu0 0.0
      %817 = vmatpush1.msra.mxu0 0.0
      %818 = vmatprep.subr.mxu0 0.0
      %819 = vmatpush1.msra.mxu0 0.0
      %820 = vmatprep.subr.mxu0 0.0
      %821 = vmatpush1.msra.mxu0 0.0
      %822 = vmatprep.subr.mxu0 0.0
      %823 = vmatpush1.msra.mxu0 0.0
      %824 = vmatprep.subr.mxu0 0.0
      %825 = vmatpush1.msra.mxu0 0.0
      %826 = vmatprep.subr.mxu0 0.0
      %827 = vmatpush1.msra.mxu0 0.0
      %828 = vmatprep.subr.mxu0 0.0
      %829 = vmatpush1.msra.mxu0 0.0
      %830 = vmatprep.subr.mxu0 0.0
      %831 = vmatpush1.msra.mxu0 0.0
      %832 = vmatprep.subr.mxu0 0.0
      %833 = vmatpush1.msra.mxu0 0.0
      %834 = vmatprep.subr.mxu0 0.0
      %835 = vmatpush1.msra.mxu0 0.0
      %836 = vmatprep.subr.mxu0 0.0
      %837 = vmatpush1.msra.mxu0 0.0
      %838 = vmatprep.subr.mxu0 0.0
      %839 = vmatpush1.msra.mxu0 0.0
      %840 = vmatprep.subr.mxu0 0.0
      %841 = vmatpush1.msra.mxu0 0.0
      %842 = vmatprep.subr.mxu0 0.0
      %843 = vmatpush1.msra.mxu0 0.0
      %844 = vmatprep.subr.mxu0 0.0
      %845 = vmatpush1.msra.mxu0 0.0
      %846 = vmatprep.subr.mxu0 0.0
      %847 = vmatpush1.msra.mxu0 0.0
      %848 = vmatprep.subr.mxu0 0.0
      %849 = vmatpush1.msra.mxu0 0.0
      %850 = vmatprep.subr.mxu0 0.0
      %851 = vmatpush1.msra.mxu0 0.0
      %852 = vmatprep.mubr.f32.mxu0 0.0
      %853 = vmatmul.mubr.f32.gmra.mrb[0].mxu0 %v783
      %v854 = vpop.f32.mrb[0].mxu0
      %v855 = vadd.f32 %v775, %v854
      %v856 = vpop.f32.mrb[0].mxu0
      %857 = vmatprep.mubr.f32.mxu0 0.0
      %858 = vmatmul.mubr.f32.gmra.mrb[0].mxu0 %v786
      %v859 = vpop.f32.mrb[0].mxu0
      %v860 = vadd.f32 %v780, %v859
      %v861 = vpop.f32.mrb[0].mxu0
      %862 = vdwg.mxu0
      %v863 = vmul.f32 %v855, %v664
      %v864 = vmul.f32 %v860, %v664
      %865 = vst.msk [vmem:[%s463] sm:$0xff] %vm668, %v863
      %866 = vst.msk [vmem:[%s463 + $0x8] sm:$0xff] %vm668, %v864
      %p867 = scmp.lt.s32.totalorder %s27, 1
      %s868 = scalar_select %p867, %s27, 1
      %p869 = scmp.lt.s32.totalorder %s28, 0
      %s870 = scalar_select %p869, %s28, 0
      %s871 = smul.addr %s868, 2
      %s872 = sadd.s32 %s870, %s871
      %s873 = smul.addr %s872, 8
      %s874 = scalar_lea.vmem %s10, %s873
      %p875 = scmp.lt.s32.totalorder %s27, 1
      %s876 = scalar_select %p875, %s27, 1
      %p877 = scmp.lt.s32.totalorder %s28, 0
      %s878 = scalar_select %p877, %s28, 0
      %s879 = smul.addr %s876, 2
      %s880 = sadd.s32 %s878, %s879
      %s881 = smul.addr %s880, 8
      %s882 = scalar_lea.vmem %s11, %s881
      // Predicated region
      $region61: #{ppgn_phi_forward.10} parent=59 // pred_check
        %p883 = pneg %p279
      $region62: #{ppgn_phi_forward.10} parent=59 // pred_check_branch
        %885 = sbr.rel (%p883) target = $region64
      $region63: #{ppgn_phi_forward.10} parent=59 // pred_region
        _
      $region64: #{ppgn_phi_forward.10} parent=59 // pred_fallthru
        _
      // Predicated region
      $region65: #{ppgn_phi_forward.10} parent=59 // pred_check
        %p886 = pneg %p307
      $region66: #{ppgn_phi_forward.10} parent=59 // pred_check_branch
        %888 = sbr.rel (%p886) target = $region68
      $region67: #{ppgn_phi_forward.10} parent=59 // pred_region
        _
      $region68: #{ppgn_phi_forward.10} parent=59 // pred_fallthru
        _
    $region60: #{ppgn_phi_forward.10} parent=5 // pred_fallthru
      _
    %p889 = scmp.le.s32.totalorder 2, %s18
    // Predicated region
    $region69: #{ppgn_phi_forward.10} parent=5 // pred_check
      %p890 = pneg %p889
    $region70: #{ppgn_phi_forward.10} parent=5 // pred_check_branch
      %892 = sbr.rel (%p890) target = $region72
    $region71: #{ppgn_phi_forward.10} parent=5 // pred_region
      %s893 = ssub.s32 %s18, 2
      // Predicated region
      $region73: #{ppgn_phi_forward.10} parent=71 // pred_check
        %p894 = pneg %p285
      $region74: #{ppgn_phi_forward.10} parent=71 // pred_check_branch
        %896 = sbr.rel (%p894) target = $region76
      $region75: #{ppgn_phi_forward.10} parent=71 // pred_region
        %p897 = scmp.lt.s32.totalorder %s29, 1
        %s898 = scalar_select %p897, %s29, 1
        %p899 = scmp.lt.s32.totalorder %s30, 0
        %s900 = scalar_select %p899, %s30, 0
        %s901 = smul.addr %s898, 2
        %s902 = sadd.s32 %s900, %s901
        %s903 = smul.addr %s902, 8
        %s904 = scalar_lea.vmem %s10, %s903
      $region76: #{ppgn_phi_forward.10} parent=71 // pred_fallthru
        _
      // Predicated region
      $region77: #{ppgn_phi_forward.10} parent=71 // pred_check
        %p905 = pneg %p313
      $region78: #{ppgn_phi_forward.10} parent=71 // pred_check_branch
        %907 = sbr.rel (%p905) target = $region80
      $region79: #{ppgn_phi_forward.10} parent=71 // pred_region
        %p908 = scmp.lt.s32.totalorder %s29, 1
        %s909 = scalar_select %p908, %s29, 1
        %p910 = scmp.lt.s32.totalorder %s30, 0
        %s911 = scalar_select %p910, %s30, 0
        %s912 = smul.addr %s909, 2
        %s913 = sadd.s32 %s911, %s912
        %s914 = smul.addr %s913, 8
        %s915 = scalar_lea.vmem %s11, %s914
      $region80: #{ppgn_phi_forward.10} parent=71 // pred_fallthru
        _
    $region72: #{ppgn_phi_forward.10} parent=5 // pred_fallthru
      _
  $region6: #{ppgn_phi_forward.10} parent=0 // loop_footer
    %s22 = sadd.s32 1, %s18
  $region7: #{ppgn_phi_forward.10} parent=0 // loop_footer_branch
    %17 = sbr.rel target = $region3
  $region8: #{ppgn_phi_forward.10} parent=0 // loop_exit
    _

// kernel: ppgn_phi_forward.12
$region0: #{ppgn_phi_forward.12}
  #allocation0 [shape = 'u32[]', space=smem, size = 0x4, offset = 0x4, fixed_abs, tag = 'smem constant byte address 0x4 - core index']
  #allocation1 [shape = 'u32[144,128]{1,0:T(1,128)}', space=vmem, size = 0x12000, scoped, tag = 'internal scratch']
  %s0 = inlined_call_operand.vmem [shape: f32[2,16,64], index: 0, kind: input, shape index: {}]
  %s1 = inlined_call_operand.vmem [shape: f32[2,16,64], index: 1, kind: input, shape index: {}]
  %s2 = inlined_call_operand.vmem [shape: f32[16,16], index: 2, kind: input, shape index: {}]
  %s3 = inlined_call_operand.vmem [shape: f32[16,16], index: 3, kind: input, shape index: {}]
  %s4 = inlined_call_operand.vmem [shape: f32[16,1], index: 4, kind: input, shape index: {}]
  %s5 = inlined_call_operand.vmem [shape: f32[16,16], index: 5, kind: input, shape index: {}]
  %s6 = inlined_call_operand.vmem [shape: f32[16,1], index: 6, kind: input, shape index: {}]
  %s7 = inlined_call_operand.vmem [shape: f32[2,1,64], index: 7, kind: input, shape index: {}]
  %s8 = inlined_call_operand.vmem [shape: f32[2,16,64], index: 8, kind: output, shape index: {}]
  %s9 = sld [smem:[#allocation0]]
  $region65: #{ppgn_phi_forward.12} parent=0
    _
  %s11 = ssub.s32 1, %s9
  %s12 = scalar_select 0, %s11, %s9
  loop: start=0, step=1, limit=4
  $region2: #{ppgn_phi_forward.12} parent=0 // loop_pre_header
    _
  $region3: #{ppgn_phi_forward.12} parent=0 // loop_header
    %s14 = sphi 0, %s18
    %p15 = scmp.ge.s32.totalorder %s14, 4
    %s21 = sphi 0, %s33
    %s22 = sphi 0, %s29
    %s23 = sphi 0, %s21
    %s24 = sphi 0, %s22
    %s25 = sphi 0, %s23
    %s26 = sphi 0, %s24
    %s38 = sphi 0, %s40
    %s41 = sphi 0, %s38
    %s42 = sphi 0, %s41
    %s58 = sphi 0, %s42
    %s66 = sphi 0, %s68
    %s69 = sphi 0, %s66
    %s70 = sphi 0, %s69
    %s86 = sphi 0, %s70
    %s90 = sphi 0, %s90
    %s92 = sphi 0, %s90
    %s93 = sphi 0, %s92
    %s107 = sphi 0, %s93
    %s111 = sphi 0, %s111
    %s113 = sphi 0, %s111
    %s114 = sphi 0, %s113
    %s128 = sphi 0, %s114
    %s132 = sphi 0, %s132
    %s134 = sphi 0, %s132
    %s135 = sphi 0, %s134
    %s149 = sphi 0, %s135
    %s153 = sphi 0, %s153
    %s155 = sphi 0, %s153
    %s156 = sphi 0, %s155
    %s170 = sphi 0, %s156
    %s174 = sphi 0, %s174
    %s176 = sphi 0, %s174
    %s177 = sphi 0, %s176
    %s191 = sphi 0, %s177
    %s199 = sphi 0, %s201
    %s202 = sphi 0, %s199
    %s203 = sphi 0, %s202
    %s219 = sphi 0, %s203
    %s227 = sphi 0, %s229
    %s230 = sphi 0, %s227
    %s231 = sphi 0, %s230
    %s247 = sphi 0, %s231
  $region4: #{ppgn_phi_forward.12} parent=0 // loop_header_branch
    %17 = sbr.rel (%p15) target = $region8
  $region5: #{ppgn_phi_forward.12} parent=0 // loop_body
    %s19 = ssub.s32 %s14, 1
    %s20 = ssub.s32 %s14, 2
    %s27 = sadd.s32 1, %s22
    %p28 = scmp.ge.s32.totalorder %s27, 1
    %s29 = scalar_select %p28, 0, %s27
    %s30 = sadd.s32 1, %s21
    %s31 = scalar_select %p28, %s30, %s21
    %p32 = scmp.ge.s32.totalorder %s31, 2
    %s33 = scalar_select %p32, 0, %s31
    %s34 = ssub.s32 %s21, %s33
    %s35 = ssub.s32 %s22, %s29
    %s36 = sor.u32 %s34, %s35
    %p37 = scmp.eq.s32.totalorder %s36, 0
    %s39 = sadd.s32 %s38, 1
    %s40 = scalar_select %p37, %s38, %s39
    %p43 = pneg %p37
    %p44 = scmp.eq.s32.totalorder %s14, 1
    %p45 = por %p43, %p44
    %p46 = scmp.ne.s32.totalorder %s38, %s41
    %p47 = scmp.eq.s32.totalorder %s14, 0
    %p48 = por %p46, %p47
    %p49 = scmp.ne.s32.totalorder %s38, %s41
    %p50 = scmp.eq.s32.totalorder %s19, 1
    %p51 = por %p49, %p50
    %p52 = scmp.ne.s32.totalorder %s41, %s42
    %p53 = scmp.eq.s32.totalorder %s19, 0
    %p54 = por %p52, %p53
    %p55 = scmp.ne.s32.totalorder %s41, %s42
    %p56 = scmp.eq.s32.totalorder %s20, 1
    %p57 = por %p55, %p56
    %p59 = scmp.ne.s32.totalorder %s42, %s58
    %p60 = scmp.eq.s32.totalorder %s20, 0
    %p61 = por %p59, %p60
    %s62 = ssub.s32 %s21, %s33
    %s63 = ssub.s32 %s22, %s29
    %s64 = sor.u32 %s62, %s63
    %p65 = scmp.eq.s32.totalorder %s64, 0
    %s67 = sadd.s32 %s66, 1
    %s68 = scalar_select %p65, %s66, %s67
    %p71 = pneg %p65
    %p72 = scmp.eq.s32.totalorder %s14, 1
    %p73 = por %p71, %p72
    %p74 = scmp.ne.s32.totalorder %s66, %s69
    %p75 = scmp.eq.s32.totalorder %s14, 0
    %p76 = por %p74, %p75
    %p77 = scmp.ne.s32.totalorder %s66, %s69
    %p78 = scmp.eq.s32.totalorder %s19, 1
    %p79 = por %p77, %p78
    %p80 = scmp.ne.s32.totalorder %s69, %s70
    %p81 = scmp.eq.s32.totalorder %s19, 0
    %p82 = por %p80, %p81
    %p83 = scmp.ne.s32.totalorder %s69, %s70
    %p84 = scmp.eq.s32.totalorder %s20, 1
    %p85 = por %p83, %p84
    %p87 = scmp.ne.s32.totalorder %s70, %s86
    %p88 = scmp.eq.s32.totalorder %s20, 0
    %p89 = por %p87, %p88
    %s91 = sadd.s32 %s90, 1
    %p94 = scmp.eq.s32.totalorder %s14, 1
    %p95 = scmp.ne.s32.totalorder %s90, %s92
    %p96 = scmp.eq.s32.totalorder %s14, 0
    %p97 = por %p95, %p96
    %p98 = scmp.ne.s32.totalorder %s90, %s92
    %p99 = scmp.eq.s32.totalorder %s19, 1
    %p100 = por %p98, %p99
    %p101 = scmp.ne.s32.totalorder %s92, %s93
    %p102 = scmp.eq.s32.totalorder %s19, 0
    %p103 = por %p101, %p102
    %p104 = scmp.ne.s32.totalorder %s92, %s93
    %p105 = scmp.eq.s32.totalorder %s20, 1
    %p106 = por %p104, %p105
    %p108 = scmp.ne.s32.totalorder %s93, %s107
    %p109 = scmp.eq.s32.totalorder %s20, 0
    %p110 = por %p108, %p109
    %s112 = sadd.s32 %s111, 1
    %p115 = scmp.eq.s32.totalorder %s14, 1
    %p116 = scmp.ne.s32.totalorder %s111, %s113
    %p117 = scmp.eq.s32.totalorder %s14, 0
    %p118 = por %p116, %p117
    %p119 = scmp.ne.s32.totalorder %s111, %s113
    %p120 = scmp.eq.s32.totalorder %s19, 1
    %p121 = por %p119, %p120
    %p122 = scmp.ne.s32.totalorder %s113, %s114
    %p123 = scmp.eq.s32.totalorder %s19, 0
    %p124 = por %p122, %p123
    %p125 = scmp.ne.s32.totalorder %s113, %s114
    %p126 = scmp.eq.s32.totalorder %s20, 1
    %p127 = por %p125, %p126
    %p129 = scmp.ne.s32.totalorder %s114, %s128
    %p130 = scmp.eq.s32.totalorder %s20, 0
    %p131 = por %p129, %p130
    %s133 = sadd.s32 %s132, 1
    %p136 = scmp.eq.s32.totalorder %s14, 1
    %p137 = scmp.ne.s32.totalorder %s132, %s134
    %p138 = scmp.eq.s32.totalorder %s14, 0
    %p139 = por %p137, %p138
    %p140 = scmp.ne.s32.totalorder %s132, %s134
    %p141 = scmp.eq.s32.totalorder %s19, 1
    %p142 = por %p140, %p141
    %p143 = scmp.ne.s32.totalorder %s134, %s135
    %p144 = scmp.eq.s32.totalorder %s19, 0
    %p145 = por %p143, %p144
    %p146 = scmp.ne.s32.totalorder %s134, %s135
    %p147 = scmp.eq.s32.totalorder %s20, 1
    %p148 = por %p146, %p147
    %p150 = scmp.ne.s32.totalorder %s135, %s149
    %p151 = scmp.eq.s32.totalorder %s20, 0
    %p152 = por %p150, %p151
    %s154 = sadd.s32 %s153, 1
    %p157 = scmp.eq.s32.totalorder %s14, 1
    %p158 = scmp.ne.s32.totalorder %s153, %s155
    %p159 = scmp.eq.s32.totalorder %s14, 0
    %p160 = por %p158, %p159
    %p161 = scmp.ne.s32.totalorder %s153, %s155
    %p162 = scmp.eq.s32.totalorder %s19, 1
    %p163 = por %p161, %p162
    %p164 = scmp.ne.s32.totalorder %s155, %s156
    %p165 = scmp.eq.s32.totalorder %s19, 0
    %p166 = por %p164, %p165
    %p167 = scmp.ne.s32.totalorder %s155, %s156
    %p168 = scmp.eq.s32.totalorder %s20, 1
    %p169 = por %p167, %p168
    %p171 = scmp.ne.s32.totalorder %s156, %s170
    %p172 = scmp.eq.s32.totalorder %s20, 0
    %p173 = por %p171, %p172
    %s175 = sadd.s32 %s174, 1
    %p178 = scmp.eq.s32.totalorder %s14, 1
    %p179 = scmp.ne.s32.totalorder %s174, %s176
    %p180 = scmp.eq.s32.totalorder %s14, 0
    %p181 = por %p179, %p180
    %p182 = scmp.ne.s32.totalorder %s174, %s176
    %p183 = scmp.eq.s32.totalorder %s19, 1
    %p184 = por %p182, %p183
    %p185 = scmp.ne.s32.totalorder %s176, %s177
    %p186 = scmp.eq.s32.totalorder %s19, 0
    %p187 = por %p185, %p186
    %p188 = scmp.ne.s32.totalorder %s176, %s177
    %p189 = scmp.eq.s32.totalorder %s20, 1
    %p190 = por %p188, %p189
    %p192 = scmp.ne.s32.totalorder %s177, %s191
    %p193 = scmp.eq.s32.totalorder %s20, 0
    %p194 = por %p192, %p193
    %s195 = ssub.s32 %s21, %s33
    %s196 = ssub.s32 %s22, %s29
    %s197 = sor.u32 %s195, %s196
    %p198 = scmp.eq.s32.totalorder %s197, 0
    %s200 = sadd.s32 %s199, 1
    %s201 = scalar_select %p198, %s199, %s200
    %p204 = pneg %p198
    %p205 = scmp.eq.s32.totalorder %s14, 1
    %p206 = por %p204, %p205
    %p207 = scmp.ne.s32.totalorder %s199, %s202
    %p208 = scmp.eq.s32.totalorder %s14, 0
    %p209 = por %p207, %p208
    %p210 = scmp.ne.s32.totalorder %s199, %s202
    %p211 = scmp.eq.s32.totalorder %s19, 1
    %p212 = por %p210, %p211
    %p213 = scmp.ne.s32.totalorder %s202, %s203
    %p214 = scmp.eq.s32.totalorder %s19, 0
    %p215 = por %p213, %p214
    %p216 = scmp.ne.s32.totalorder %s202, %s203
    %p217 = scmp.eq.s32.totalorder %s20, 1
    %p218 = por %p216, %p217
    %p220 = scmp.ne.s32.totalorder %s203, %s219
    %p221 = scmp.eq.s32.totalorder %s20, 0
    %p222 = por %p220, %p221
    %s223 = ssub.s32 %s21, %s33
    %s224 = ssub.s32 %s22, %s29
    %s225 = sor.u32 %s223, %s224
    %p226 = scmp.eq.s32.totalorder %s225, 0
    %s228 = sadd.s32 %s227, 1
    %s229 = scalar_select %p226, %s227, %s228
    %p232 = pneg %p226
    %p233 = scmp.eq.s32.totalorder %s14, 1
    %p234 = por %p232, %p233
    %p235 = scmp.ne.s32.totalorder %s227, %s230
    %p236 = scmp.eq.s32.totalorder %s14, 0
    %p237 = por %p235, %p236
    %p238 = scmp.ne.s32.totalorder %s227, %s230
    %p239 = scmp.eq.s32.totalorder %s19, 1
    %p240 = por %p238, %p239
    %p241 = scmp.ne.s32.totalorder %s230, %s231
    %p242 = scmp.eq.s32.totalorder %s19, 0
    %p243 = por %p241, %p242
    %p244 = scmp.ne.s32.totalorder %s230, %s231
    %p245 = scmp.eq.s32.totalorder %s20, 1
    %p246 = por %p244, %p245
    %p248 = scmp.ne.s32.totalorder %s231, %s247
    %p249 = scmp.eq.s32.totalorder %s20, 0
    %p250 = por %p248, %p249
    %p251 = scmp.le.s32.totalorder 1, %s14
    %p252 = scmp.lt.s32.totalorder %s14, 3
    %p253 = pnand %p251, %p252
    %p254 = pneg %p253
    // Predicated region
    $region9: #{ppgn_phi_forward.12} parent=5 // pred_check
      _
    $region10: #{ppgn_phi_forward.12} parent=5 // pred_check_branch
      %256 = sbr.rel (%p253) target = $region12
    $region11: #{ppgn_phi_forward.12} parent=5 // pred_region
      %s257 = ssub.s32 %s14, 1
      // Predicated region
      $region13: #{ppgn_phi_forward.12} parent=11 // pred_check
        %p258 = pneg %p103
      $region14: #{ppgn_phi_forward.12} parent=11 // pred_check_branch
        %260 = sbr.rel (%p258) target = $region16
      $region15: #{ppgn_phi_forward.12} parent=11 // pred_region
        _
      $region16: #{ppgn_phi_forward.12} parent=11 // pred_fallthru
        _
      // Predicated region
      $region17: #{ppgn_phi_forward.12} parent=11 // pred_check
        %p261 = pneg %p124
      $region18: #{ppgn_phi_forward.12} parent=11 // pred_check_branch
        %263 = sbr.rel (%p261) target = $region20
      $region19: #{ppgn_phi_forward.12} parent=11 // pred_region
        _
      $region20: #{ppgn_phi_forward.12} parent=11 // pred_fallthru
        _
      // Predicated region
      $region21: #{ppgn_phi_forward.12} parent=11 // pred_check
        %p264 = pneg %p145
      $region22: #{ppgn_phi_forward.12} parent=11 // pred_check_branch
        %266 = sbr.rel (%p264) target = $region24
      $region23: #{ppgn_phi_forward.12} parent=11 // pred_region
        _
      $region24: #{ppgn_phi_forward.12} parent=11 // pred_fallthru
        _
      // Predicated region
      $region25: #{ppgn_phi_forward.12} parent=11 // pred_check
        %p267 = pneg %p166
      $region26: #{ppgn_phi_forward.12} parent=11 // pred_check_branch
        %269 = sbr.rel (%p267) target = $region28
      $region27: #{ppgn_phi_forward.12} parent=11 // pred_region
        _
      $region28: #{ppgn_phi_forward.12} parent=11 // pred_fallthru
        _
      // Predicated region
      $region29: #{ppgn_phi_forward.12} parent=11 // pred_check
        %p270 = pneg %p187
      $region30: #{ppgn_phi_forward.12} parent=11 // pred_check_branch
        %272 = sbr.rel (%p270) target = $region32
      $region31: #{ppgn_phi_forward.12} parent=11 // pred_region
        _
      $region32: #{ppgn_phi_forward.12} parent=11 // pred_fallthru
        _
    $region12: #{ppgn_phi_forward.12} parent=5 // pred_fallthru
      _
    %p273 = scmp.lt.s32.totalorder %s14, 2
    // Predicated region
    $region33: #{ppgn_phi_forward.12} parent=5 // pred_check
      %p274 = pneg %p273
    $region34: #{ppgn_phi_forward.12} parent=5 // pred_check_branch
      %276 = sbr.rel (%p274) target = $region36
    $region35: #{ppgn_phi_forward.12} parent=5 // pred_region
      // Predicated region
      $region37: #{ppgn_phi_forward.12} parent=35 // pred_check
        %p277 = pneg %p48
      $region38: #{ppgn_phi_forward.12} parent=35 // pred_check_branch
        %279 = sbr.rel (%p277) target = $region40
      $region39: #{ppgn_phi_forward.12} parent=35 // pred_region
        %p280 = scmp.lt.s32.totalorder %s21, 1
        %s281 = scalar_select %p280, %s21, 1
        %p282 = scmp.lt.s32.totalorder %s22, 0
        %s283 = scalar_select %p282, %s22, 0
        %s284 = smul.addr %s281, 2
        %s285 = sadd.s32 %s283, %s284
        %s286 = smul.addr %s285, 8
        %s287 = scalar_lea.vmem %s0, %s286
      $region40: #{ppgn_phi_forward.12} parent=35 // pred_fallthru
        _
      // Predicated region
      $region41: #{ppgn_phi_forward.12} parent=35 // pred_check
        %p288 = pneg %p76
      $region42: #{ppgn_phi_forward.12} parent=35 // pred_check_branch
        %290 = sbr.rel (%p288) target = $region44
      $region43: #{ppgn_phi_forward.12} parent=35 // pred_region
        %p291 = scmp.lt.s32.totalorder %s21, 1
        %s292 = scalar_select %p291, %s21, 1
        %p293 = scmp.lt.s32.totalorder %s22, 0
        %s294 = scalar_select %p293, %s22, 0
        %s295 = smul.addr %s292, 2
        %s296 = sadd.s32 %s294, %s295
        %s297 = smul.addr %s296, 8
        %s298 = scalar_lea.vmem %s1, %s297
      $region44: #{ppgn_phi_forward.12} parent=35 // pred_fallthru
        _
      // Predicated region
      $region45: #{ppgn_phi_forward.12} parent=35 // pred_check
        %p299 = pneg %p209
      $region46: #{ppgn_phi_forward.12} parent=35 // pred_check_branch
        %301 = sbr.rel (%p299) target = $region48
      $region47: #{ppgn_phi_forward.12} parent=35 // pred_region
        %p302 = scmp.lt.s32.totalorder %s21, 1
        %s303 = scalar_select %p302, %s21, 1
        %p304 = scmp.lt.s32.totalorder %s22, 0
        %s305 = scalar_select %p304, %s22, 0
        %s306 = sadd.s32 %s305, %s303
        %s307 = scalar_lea.vmem %s7, %s306
      $region48: #{ppgn_phi_forward.12} parent=35 // pred_fallthru
        _
    $region36: #{ppgn_phi_forward.12} parent=5 // pred_fallthru
      _
    %p308 = scmp.le.s32.totalorder 1, %s14
    %p309 = scmp.lt.s32.totalorder %s14, 3
    %p310 = pnand %p308, %p309
    %p311 = pneg %p310
    // Predicated region
    $region49: #{ppgn_phi_forward.12} parent=5 // pred_check
      _
    $region50: #{ppgn_phi_forward.12} parent=5 // pred_check_branch
      %313 = sbr.rel (%p310) target = $region52
    $region51: #{ppgn_phi_forward.12} parent=5 // pred_region
      %s314 = ssub.s32 %s14, 1
      %p315 = scmp.lt.s32.totalorder %s23, 1
      %s316 = scalar_select %p315, %s23, 1
      %p317 = scmp.lt.s32.totalorder %s24, 0
      %s318 = scalar_select %p317, %s24, 0
      %s319 = smul.addr %s316, 2
      %s320 = sadd.s32 %s318, %s319
      %s321 = smul.addr %s320, 8
      %s322 = scalar_lea.vmem %s0, %s321
      %p323 = pneg %p54
      %p324 = pneg %p51
      %p325 = scmp.lt.s32.totalorder %s23, 1
      %s326 = scalar_select %p325, %s23, 1
      %p327 = scmp.lt.s32.totalorder %s24, 0
      %s328 = scalar_select %p327, %s24, 0
      %s329 = smul.addr %s326, 2
      %s330 = sadd.s32 %s328, %s329
      %s331 = smul.addr %s330, 8
      %s332 = scalar_lea.vmem %s1, %s331
      %p333 = pneg %p82
      %p334 = pneg %p79
      %p335 = pneg %p103
      %p336 = pneg %p100
      %p337 = pneg %p124
      %p338 = pneg %p121
      %p339 = pneg %p145
      %p340 = pneg %p142
      %p341 = pneg %p166
      %p342 = pneg %p163
      %p343 = pneg %p187
      %p344 = pneg %p184
      %p345 = scmp.lt.s32.totalorder %s23, 1
      %s346 = scalar_select %p345, %s23, 1
      %p347 = scmp.lt.s32.totalorder %s24, 0
      %s348 = scalar_select %p347, %s24, 0
      %s349 = sadd.s32 %s348, %s346
      %s350 = scalar_lea.vmem %s7, %s349
      %p351 = pneg %p215
      %p352 = pneg %p212
      %p353 = pneg %p243
      %p354 = pneg %p240
      %p355 = scmp.lt.s32.totalorder %s23, 1
      %s356 = scalar_select %p355, %s23, 1
      %p357 = scmp.lt.s32.totalorder %s24, 0
      %s358 = scalar_select %p357, %s24, 0
      %s359 = smul.addr %s356, 2
      %s360 = sadd.s32 %s358, %s359
      %s361 = smul.addr %s360, 8
      %s362 = scalar_lea.vmem %s8, %s361
      %p363 = scmp.lt.s32.totalorder %s23, 1
      %s364 = scalar_select %p363, %s23, 1
      %p365 = scmp.lt.s32.totalorder %s24, 0
      %s366 = scalar_select %p365, %s24, 0
      %s367 = smul.addr %s364, 2
      %s368 = sadd.s32 %s366, %s367
      %s369 = smul.addr %s368, 8
      %s370 = scalar_lea.vmem %s0, %s369
      %p371 = scmp.lt.s32.totalorder %s23, 1
      %s372 = scalar_select %p371, %s23, 1
      %p373 = scmp.lt.s32.totalorder %s24, 0
      %s374 = scalar_select %p373, %s24, 0
      %s375 = smul.addr %s372, 2
      %s376 = sadd.s32 %s374, %s375
      %s377 = smul.addr %s376, 8
      %s378 = scalar_lea.vmem %s1, %s377
      %p379 = scmp.lt.s32.totalorder %s23, 1
      %s380 = scalar_select %p379, %s23, 1
      %p381 = scmp.lt.s32.totalorder %s24, 0
      %s382 = scalar_select %p381, %s24, 0
      %s383 = sadd.s32 %s382, %s380
      %s384 = scalar_lea.vmem %s7, %s383
      %p385 = scmp.lt.s32.totalorder %s23, 1
      %s386 = scalar_select %p385, %s23, 1
      %p387 = scmp.lt.s32.totalorder %s24, 0
      %s388 = scalar_select %p387, %s24, 0
      %s389 = smul.addr %s386, 2
      %s390 = sadd.s32 %s388, %s389
      %s391 = smul.addr %s390, 8
      %s392 = scalar_lea.vmem %s8, %s391
      %v393 = vld [vmem:[%s2] sm:$0xff]
      %v394 = vld [vmem:[%s2 + $0x8] sm:$0xff]
      %v395 = vld [vmem:[%s370] sm:$0xff]
      %v396 = vld [vmem:[%s370 + $0x8] sm:$0xff]
      %v397 = vld [vmem:[%s3] sm:$0xff]
      %v398 = vld [vmem:[%s3 + $0x8] sm:$0xff]
      %v399 = vld [vmem:[%s378] sm:$0xff]
      %v400 = vld [vmem:[%s378 + $0x8] sm:$0xff]
      %vm401 = vcmask 130048
      %v403 = vsel %vm401, %v397, 0
      %v406 = vsel %vm401, %v398, 0
      %408 = vmatprep.subr.mxu0 0.0
      %409 = vmatpush1.msra.mxu0 %v399
      %410 = vmatprep.subr.mxu0 0.0
      %411 = vmatpush1.msra.mxu0 %v400
      %412 = vmatprep.subr.mxu0 0.0
      %413 = vmatpush1.msra.mxu0 0.0
      %414 = vmatprep.subr.mxu0 0.0
      %415 = vmatpush1.msra.mxu0 0.0
      %416 = vmatprep.subr.mxu0 0.0
      %417 = vmatpush1.msra.mxu0 0.0
      %418 = vmatprep.subr.mxu0 0.0
      %419 = vmatpush1.msra.mxu0 0.0
      %420 = vmatprep.subr.mxu0 0.0
      %421 = vmatpush1.msra.mxu0 0.0
      %422 = vmatprep.subr.mxu0 0.0
      %423 = vmatpush1.msra.mxu0 0.0
      %424 = vmatprep.subr.mxu0 0.0
      %425 = vmatpush1.msra.mxu0 0.0
      %426 = vmatprep.subr.mxu0 0.0
      %427 = vmatpush1.msra.mxu0 0.0
      %428 = vmatprep.subr.mxu0 0.0
      %429 = vmatpush1.msra.mxu0 0.0
      %430 = vmatprep.subr.mxu0 0.0
      %431 = vmatpush1.msra.mxu0 0.0
      %432 = vmatprep.subr.mxu0 0.0
      %433 = vmatpush1.msra.mxu0 0.0
      %434 = vmatprep.subr.mxu0 0.0
      %435 = vmatpush1.msra.mxu0 0.0
      %436 = vmatprep.subr.mxu0 0.0
      %437 = vmatpush1.msra.mxu0 0.0
      %438 = vmatprep.subr.mxu0 0.0
      %439 = vmatpush1.msra.mxu0 0.0
      %440 = vmatprep.subr.mxu0 0.0
      %441 = vmatpush1.msra.mxu0 0.0
      %442 = vmatprep.subr.mxu0 0.0
      %443 = vmatpush1.msra.mxu0 0.0
      %444 = vmatprep.subr.mxu0 0.0
      %445 = vmatpush1.msra.mxu0 0.0
      %446 = vmatprep.subr.mxu0 0.0
      %447 = vmatpush1.msra.mxu0 0.0
      %448 = vmatprep.subr.mxu0 0.0
      %449 = vmatpush1.msra.mxu0 0.0
      %450 = vmatprep.subr.mxu0 0.0
      %451 = vmatpush1.msra.mxu0 0.0
      %452 = vmatprep.subr.mxu0 0.0
      %453 = vmatpush1.msra.mxu0 0.0
      %454 = vmatprep.subr.mxu0 0.0
      %455 = vmatpush1.msra.mxu0 0.0
      %456 = vmatprep.subr.mxu0 0.0
      %457 = vmatpush1.msra.mxu0 0.0
      %458 = vmatprep.subr.mxu0 0.0
      %459 = vmatpush1.msra.mxu0 0.0
      %460 = vmatprep.subr.mxu0 0.0
      %461 = vmatpush1.msra.mxu0 0.0
      %462 = vmatprep.subr.mxu0 0.0
      %463 = vmatpush1.msra.mxu0 0.0
      %464 = vmatprep.subr.mxu0 0.0
      %465 = vmatpush1.msra.mxu0 0.0
      %466 = vmatprep.subr.mxu0 0.0
      %467 = vmatpush1.msra.mxu0 0.0
      %468 = vmatprep.subr.mxu0 0.0
      %469 = vmatpush1.msra.mxu0 0.0
      %470 = vmatprep.subr.mxu0 0.0
      %471 = vmatpush1.msra.mxu0 0.0
      %472 = vmatprep.mubr.f32.mxu0 0.0
      %473 = vmatmul.mubr.f32.gmra.mrb[0].mxu0 %v403
      %v474 = vpop.f32.mrb[0].mxu0
      %v475 = vadd.f32 0.0, %v474
      %v476 = vpop.f32.mrb[0].mxu0
      %477 = vmatprep.mubr.f32.mxu0 0.0
      %478 = vmatmul.mubr.f32.gmra.mrb[0].mxu0 %v406
      %v479 = vpop.f32.mrb[0].mxu0
      %v480 = vadd.f32 0.0, %v479
      %v481 = vpop.f32.mrb[0].mxu0
      %482 = vdwg.mxu0
      %v484 = vsel %vm401, %v393, 0
      %v487 = vsel %vm401, %v394, 0
      %489 = vmatprep.subr.mxu0 0.0
      %490 = vmatpush1.msra.mxu0 %v395
      %491 = vmatprep.subr.mxu0 0.0
      %492 = vmatpush1.msra.mxu0 %v396
      %493 = vmatprep.subr.mxu0 0.0
      %494 = vmatpush1.msra.mxu0 0.0
      %495 = vmatprep.subr.mxu0 0.0
      %496 = vmatpush1.msra.mxu0 0.0
      %497 = vmatprep.subr.mxu0 0.0
      %498 = vmatpush1.msra.mxu0 0.0
      %499 = vmatprep.subr.mxu0 0.0
      %500 = vmatpush1.msra.mxu0 0.0
      %501 = vmatprep.subr.mxu0 0.0
      %502 = vmatpush1.msra.mxu0 0.0
      %503 = vmatprep.subr.mxu0 0.0
      %504 = vmatpush1.msra.mxu0 0.0
      %505 = vmatprep.subr.mxu0 0.0
      %506 = vmatpush1.msra.mxu0 0.0
      %507 = vmatprep.subr.mxu0 0.0
      %508 = vmatpush1.msra.mxu0 0.0
      %509 = vmatprep.subr.mxu0 0.0
      %510 = vmatpush1.msra.mxu0 0.0
      %511 = vmatprep.subr.mxu0 0.0
      %512 = vmatpush1.msra.mxu0 0.0
      %513 = vmatprep.subr.mxu0 0.0
      %514 = vmatpush1.msra.mxu0 0.0
      %515 = vmatprep.subr.mxu0 0.0
      %516 = vmatpush1.msra.mxu0 0.0
      %517 = vmatprep.subr.mxu0 0.0
      %518 = vmatpush1.msra.mxu0 0.0
      %519 = vmatprep.subr.mxu0 0.0
      %520 = vmatpush1.msra.mxu0 0.0
      %521 = vmatprep.subr.mxu0 0.0
      %522 = vmatpush1.msra.mxu0 0.0
      %523 = vmatprep.subr.mxu0 0.0
      %524 = vmatpush1.msra.mxu0 0.0
      %525 = vmatprep.subr.mxu0 0.0
      %526 = vmatpush1.msra.mxu0 0.0
      %527 = vmatprep.subr.mxu0 0.0
      %528 = vmatpush1.msra.mxu0 0.0
      %529 = vmatprep.subr.mxu0 0.0
      %530 = vmatpush1.msra.mxu0 0.0
      %531 = vmatprep.subr.mxu0 0.0
      %532 = vmatpush1.msra.mxu0 0.0
      %533 = vmatprep.subr.mxu0 0.0
      %534 = vmatpush1.msra.mxu0 0.0
      %535 = vmatprep.subr.mxu0 0.0
      %536 = vmatpush1.msra.mxu0 0.0
      %537 = vmatprep.subr.mxu0 0.0
      %538 = vmatpush1.msra.mxu0 0.0
      %539 = vmatprep.subr.mxu0 0.0
      %540 = vmatpush1.msra.mxu0 0.0
      %541 = vmatprep.subr.mxu0 0.0
      %542 = vmatpush1.msra.mxu0 0.0
      %543 = vmatprep.subr.mxu0 0.0
      %544 = vmatpush1.msra.mxu0 0.0
      %545 = vmatprep.subr.mxu0 0.0
      %546 = vmatpush1.msra.mxu0 0.0
      %547 = vmatprep.subr.mxu0 0.0
      %548 = vmatpush1.msra.mxu0 0.0
      %549 = vmatprep.subr.mxu0 0.0
      %550 = vmatpush1.msra.mxu0 0.0
      %551 = vmatprep.subr.mxu0 0.0
      %552 = vmatpush1.msra.mxu0 0.0
      %553 = vmatprep.mubr.f32.mxu0 0.0
      %554 = vmatmul.mubr.f32.gmra.mrb[0].mxu0 %v484
      %v555 = vpop.f32.mrb[0].mxu0
      %v556 = vadd.f32 %v475, %v555
      %v557 = vpop.f32.mrb[0].mxu0
      %558 = vmatprep.mubr.f32.mxu0 0.0
      %559 = vmatmul.mubr.f32.gmra.mrb[0].mxu0 %v487
      %v560 = vpop.f32.mrb[0].mxu0
      %v561 = vadd.f32 %v480, %v560
      %v562 = vpop.f32.mrb[0].mxu0
      %563 = vdwg.mxu0
      %v564 = vld [vmem:[%s4] sm:$0xff]
      %v565 = vld [vmem:[%s4 + $0x8] sm:$0xff]
      %567 = vset.pattern.permute.xlu0 0
      %568 = vperm.xlu0 %567, %v564
      %v569 = vpop.permute.xlu0 %568
      %572 = vset.pattern.permute.xlu0 0
      %573 = vperm.xlu0 %572, %v565
      %v574 = vpop.permute.xlu0 %573
      %v576 = vadd.f32 %v556, %v569
      %v577 = vadd.f32 %v561, %v574
      %v578 = vmax.f32 %v576, 0.0
      %v579 = vmax.f32 %v577, 0.0
      %v580 = vld [vmem:[%s5] sm:$0xff]
      %v581 = vld [vmem:[%s5 + $0x8] sm:$0xff]
      %v582 = vld [vmem:[%s6] sm:$0xff]
      %v583 = vld [vmem:[%s6 + $0x8] sm:$0xff]
      %585 = vset.pattern.permute.xlu0 0
      %586 = vperm.xlu0 %585, %v582
      %v587 = vpop.permute.xlu0 %586
      %590 = vset.pattern.permute.xlu0 0
      %591 = vperm.xlu0 %590, %v583
      %v592 = vpop.permute.xlu0 %591
      %v595 = vsel %vm401, %v580, 0
      %v598 = vsel %vm401, %v581, 0
      %600 = vmatprep.subr.mxu0 0.0
      %601 = vmatpush1.msra.mxu0 %v578
      %602 = vmatprep.subr.mxu0 0.0
      %603 = vmatpush1.msra.mxu0 %v579
      %604 = vmatprep.subr.mxu0 0.0
      %605 = vmatpush1.msra.mxu0 0.0
      %606 = vmatprep.subr.mxu0 0.0
      %607 = vmatpush1.msra.mxu0 0.0
      %608 = vmatprep.subr.mxu0 0.0
      %609 = vmatpush1.msra.mxu0 0.0
      %610 = vmatprep.subr.mxu0 0.0
      %611 = vmatpush1.msra.mxu0 0.0
      %612 = vmatprep.subr.mxu0 0.0
      %613 = vmatpush1.msra.mxu0 0.0
      %614 = vmatprep.subr.mxu0 0.0
      %615 = vmatpush1.msra.mxu0 0.0
      %616 = vmatprep.subr.mxu0 0.0
      %617 = vmatpush1.msra.mxu0 0.0
      %618 = vmatprep.subr.mxu0 0.0
      %619 = vmatpush1.msra.mxu0 0.0
      %620 = vmatprep.subr.mxu0 0.0
      %621 = vmatpush1.msra.mxu0 0.0
      %622 = vmatprep.subr.mxu0 0.0
      %623 = vmatpush1.msra.mxu0 0.0
      %624 = vmatprep.subr.mxu0 0.0
      %625 = vmatpush1.msra.mxu0 0.0
      %626 = vmatprep.subr.mxu0 0.0
      %627 = vmatpush1.msra.mxu0 0.0
      %628 = vmatprep.subr.mxu0 0.0
      %629 = vmatpush1.msra.mxu0 0.0
      %630 = vmatprep.subr.mxu0 0.0
      %631 = vmatpush1.msra.mxu0 0.0
      %632 = vmatprep.subr.mxu0 0.0
      %633 = vmatpush1.msra.mxu0 0.0
      %634 = vmatprep.subr.mxu0 0.0
      %635 = vmatpush1.msra.mxu0 0.0
      %636 = vmatprep.subr.mxu0 0.0
      %637 = vmatpush1.msra.mxu0 0.0
      %638 = vmatprep.subr.mxu0 0.0
      %639 = vmatpush1.msra.mxu0 0.0
      %640 = vmatprep.subr.mxu0 0.0
      %641 = vmatpush1.msra.mxu0 0.0
      %642 = vmatprep.subr.mxu0 0.0
      %643 = vmatpush1.msra.mxu0 0.0
      %644 = vmatprep.subr.mxu0 0.0
      %645 = vmatpush1.msra.mxu0 0.0
      %646 = vmatprep.subr.mxu0 0.0
      %647 = vmatpush1.msra.mxu0 0.0
      %648 = vmatprep.subr.mxu0 0.0
      %649 = vmatpush1.msra.mxu0 0.0
      %650 = vmatprep.subr.mxu0 0.0
      %651 = vmatpush1.msra.mxu0 0.0
      %652 = vmatprep.subr.mxu0 0.0
      %653 = vmatpush1.msra.mxu0 0.0
      %654 = vmatprep.subr.mxu0 0.0
      %655 = vmatpush1.msra.mxu0 0.0
      %656 = vmatprep.subr.mxu0 0.0
      %657 = vmatpush1.msra.mxu0 0.0
      %658 = vmatprep.subr.mxu0 0.0
      %659 = vmatpush1.msra.mxu0 0.0
      %660 = vmatprep.subr.mxu0 0.0
      %661 = vmatpush1.msra.mxu0 0.0
      %662 = vmatprep.subr.mxu0 0.0
      %663 = vmatpush1.msra.mxu0 0.0
      %664 = vmatprep.mubr.f32.mxu0 0.0
      %665 = vmatmul.mubr.f32.gmra.mrb[0].mxu0 %v595
      %v666 = vpop.f32.mrb[0].mxu0
      %v667 = vadd.f32 %v587, %v666
      %v668 = vpop.f32.mrb[0].mxu0
      %669 = vmatprep.mubr.f32.mxu0 0.0
      %670 = vmatmul.mubr.f32.gmra.mrb[0].mxu0 %v598
      %v671 = vpop.f32.mrb[0].mxu0
      %v672 = vadd.f32 %v592, %v671
      %v673 = vpop.f32.mrb[0].mxu0
      %674 = vdwg.mxu0
      %v675 = vld [vmem:[%s384] sm:$0x1]
      %v677 = vlaneseq
      %v678 = vshrl.u32 %v677, 7
      %v679 = vsub.s32 0, %v678
      %v680 = vrot.slane %v675, %v679
      %v682 = vmul.f32 %v667, %v680
      %v683 = vmul.f32 %v672, %v680
      %vm684 = vcmask 523264
      %685 = vst.msk [vmem:[%s392] sm:$0xff] %vm684, %v682
      %686 = vst.msk [vmem:[%s392 + $0x8] sm:$0xff] %vm684, %v683
      %p687 = scmp.lt.s32.totalorder %s23, 1
      %s688 = scalar_select %p687, %s23, 1
      %p689 = scmp.lt.s32.totalorder %s24, 0
      %s690 = scalar_select %p689, %s24, 0
      %s691 = smul.addr %s688, 2
      %s692 = sadd.s32 %s690, %s691
      %s693 = smul.addr %s692, 8
      %s694 = scalar_lea.vmem %s8, %s693
      // Predicated region
      $region53: #{ppgn_phi_forward.12} parent=51 // pred_check
        %p695 = pneg %p240
      $region54: #{ppgn_phi_forward.12} parent=51 // pred_check_branch
        %697 = sbr.rel (%p695) target = $region56
      $region55: #{ppgn_phi_forward.12} parent=51 // pred_region
        _
      $region56: #{ppgn_phi_forward.12} parent=51 // pred_fallthru
        _
    $region52: #{ppgn_phi_forward.12} parent=5 // pred_fallthru
      _
    %p698 = scmp.le.s32.totalorder 2, %s14
    // Predicated region
    $region57: #{ppgn_phi_forward.12} parent=5 // pred_check
      %p699 = pneg %p698
    $region58: #{ppgn_phi_forward.12} parent=5 // pred_check_branch
      %701 = sbr.rel (%p699) target = $region60
    $region59: #{ppgn_phi_forward.12} parent=5 // pred_region
      %s702 = ssub.s32 %s14, 2
      // Predicated region
      $region61: #{ppgn_phi_forward.12} parent=59 // pred_check
        %p703 = pneg %p246
      $region62: #{ppgn_phi_forward.12} parent=59 // pred_check_branch
        %705 = sbr.rel (%p703) target = $region64
      $region63: #{ppgn_phi_forward.12} parent=59 // pred_region
        %p706 = scmp.lt.s32.totalorder %s25, 1
        %s707 = scalar_select %p706, %s25, 1
        %p708 = scmp.lt.s32.totalorder %s26, 0
        %s709 = scalar_select %p708, %s26, 0
        %s710 = smul.addr %s707, 2
        %s711 = sadd.s32 %s709, %s710
        %s712 = smul.addr %s711, 8
        %s713 = scalar_lea.vmem %s8, %s712
      $region64: #{ppgn_phi_forward.12} parent=59 // pred_fallthru
        _
    $region60: #{ppgn_phi_forward.12} parent=5 // pred_fallthru
      _
  $region6: #{ppgn_phi_forward.12} parent=0 // loop_footer
    %s18 = sadd.s32 1, %s14
  $region7: #{ppgn_phi_forward.12} parent=0 // loop_footer_branch
    %13 = sbr.rel target = $region3
  $region8: #{ppgn_phi_forward.12} parent=0 // loop_exit
    _

// kernel: ppgn_phi_forward.11
$region0: #{ppgn_phi_forward.11}
  #allocation0 [shape = 'u32[]', space=smem, size = 0x4, offset = 0x4, fixed_abs, tag = 'smem constant byte address 0x4 - core index']
  #allocation1 [shape = 'u32[144,128]{1,0:T(1,128)}', space=vmem, size = 0x12000, scoped, tag = 'internal scratch']
  %s0 = inlined_call_operand.vmem [shape: f32[2,16,8,8], index: 0, kind: input, shape index: {}]
  %s1 = inlined_call_operand.vmem [shape: f32[2,16,8,8], index: 1, kind: input, shape index: {}]
  %s2 = inlined_call_operand.vmem [shape: f32[2,16,8,8], index: 2, kind: output, shape index: {}]
  %s3 = sld [smem:[#allocation0]]
  $region41: #{ppgn_phi_forward.11} parent=0
    _
  %s5 = ssub.s32 1, %s3
  %s6 = scalar_select 0, %s5, %s3
  loop: start=0, step=1, limit=4
  $region2: #{ppgn_phi_forward.11} parent=0 // loop_pre_header
    _
  $region3: #{ppgn_phi_forward.11} parent=0 // loop_header
    %s8 = sphi 0, %s12
    %p9 = scmp.ge.s32.totalorder %s8, 4
    %s15 = sphi 0, %s27
    %s16 = sphi 0, %s23
    %s17 = sphi 0, %s15
    %s18 = sphi 0, %s16
    %s19 = sphi 0, %s17
    %s20 = sphi 0, %s18
    %s32 = sphi 0, %s34
    %s35 = sphi 0, %s32
    %s36 = sphi 0, %s35
    %s52 = sphi 0, %s36
    %s60 = sphi 0, %s62
    %s63 = sphi 0, %s60
    %s64 = sphi 0, %s63
    %s80 = sphi 0, %s64
    %s88 = sphi 0, %s90
    %s91 = sphi 0, %s88
    %s92 = sphi 0, %s91
    %s108 = sphi 0, %s92
  $region4: #{ppgn_phi_forward.11} parent=0 // loop_header_branch
    %11 = sbr.rel (%p9) target = $region8
  $region5: #{ppgn_phi_forward.11} parent=0 // loop_body
    %s13 = ssub.s32 %s8, 1
    %s14 = ssub.s32 %s8, 2
    %s21 = sadd.s32 1, %s16
    %p22 = scmp.ge.s32.totalorder %s21, 1
    %s23 = scalar_select %p22, 0, %s21
    %s24 = sadd.s32 1, %s15
    %s25 = scalar_select %p22, %s24, %s15
    %p26 = scmp.ge.s32.totalorder %s25, 2
    %s27 = scalar_select %p26, 0, %s25
    %s28 = ssub.s32 %s15, %s27
    %s29 = ssub.s32 %s16, %s23
    %s30 = sor.u32 %s28, %s29
    %p31 = scmp.eq.s32.totalorder %s30, 0
    %s33 = sadd.s32 %s32, 1
    %s34 = scalar_select %p31, %s32, %s33
    %p37 = pneg %p31
    %p38 = scmp.eq.s32.totalorder %s8, 1
    %p39 = por %p37, %p38
    %p40 = scmp.ne.s32.totalorder %s32, %s35
    %p41 = scmp.eq.s32.totalorder %s8, 0
    %p42 = por %p40, %p41
    %p43 = scmp.ne.s32.totalorder %s32, %s35
    %p44 = scmp.eq.s32.totalorder %s13, 1
    %p45 = por %p43, %p44
    %p46 = scmp.ne.s32.totalorder %s35, %s36
    %p47 = scmp.eq.s32.totalorder %s13, 0
    %p48 = por %p46, %p47
    %p49 = scmp.ne.s32.totalorder %s35, %s36
    %p50 = scmp.eq.s32.totalorder %s14, 1
    %p51 = por %p49, %p50
    %p53 = scmp.ne.s32.totalorder %s36, %s52
    %p54 = scmp.eq.s32.totalorder %s14, 0
    %p55 = por %p53, %p54
    %s56 = ssub.s32 %s15, %s27
    %s57 = ssub.s32 %s16, %s23
    %s58 = sor.u32 %s56, %s57
    %p59 = scmp.eq.s32.totalorder %s58, 0
    %s61 = sadd.s32 %s60, 1
    %s62 = scalar_select %p59, %s60, %s61
    %p65 = pneg %p59
    %p66 = scmp.eq.s32.totalorder %s8, 1
    %p67 = por %p65, %p66
    %p68 = scmp.ne.s32.totalorder %s60, %s63
    %p69 = scmp.eq.s32.totalorder %s8, 0
    %p70 = por %p68, %p69
    %p71 = scmp.ne.s32.totalorder %s60, %s63
    %p72 = scmp.eq.s32.totalorder %s13, 1
    %p73 = por %p71, %p72
    %p74 = scmp.ne.s32.totalorder %s63, %s64
    %p75 = scmp.eq.s32.totalorder %s13, 0
    %p76 = por %p74, %p75
    %p77 = scmp.ne.s32.totalorder %s63, %s64
    %p78 = scmp.eq.s32.totalorder %s14, 1
    %p79 = por %p77, %p78
    %p81 = scmp.ne.s32.totalorder %s64, %s80
    %p82 = scmp.eq.s32.totalorder %s14, 0
    %p83 = por %p81, %p82
    %s84 = ssub.s32 %s15, %s27
    %s85 = ssub.s32 %s16, %s23
    %s86 = sor.u32 %s84, %s85
    %p87 = scmp.eq.s32.totalorder %s86, 0
    %s89 = sadd.s32 %s88, 1
    %s90 = scalar_select %p87, %s88, %s89
    %p93 = pneg %p87
    %p94 = scmp.eq.s32.totalorder %s8, 1
    %p95 = por %p93, %p94
    %p96 = scmp.ne.s32.totalorder %s88, %s91
    %p97 = scmp.eq.s32.totalorder %s8, 0
    %p98 = por %p96, %p97
    %p99 = scmp.ne.s32.totalorder %s88, %s91
    %p100 = scmp.eq.s32.totalorder %s13, 1
    %p101 = por %p99, %p100
    %p102 = scmp.ne.s32.totalorder %s91, %s92
    %p103 = scmp.eq.s32.totalorder %s13, 0
    %p104 = por %p102, %p103
    %p105 = scmp.ne.s32.totalorder %s91, %s92
    %p106 = scmp.eq.s32.totalorder %s14, 1
    %p107 = por %p105, %p106
    %p109 = scmp.ne.s32.totalorder %s92, %s108
    %p110 = scmp.eq.s32.totalorder %s14, 0
    %p111 = por %p109, %p110
    %p112 = scmp.le.s32.totalorder 1, %s8
    %p113 = scmp.lt.s32.totalorder %s8, 3
    %p114 = pnand %p112, %p113
    %p115 = pneg %p114
    // Predicated region
    $region9: #{ppgn_phi_forward.11} parent=5 // pred_check
      _
    $region10: #{ppgn_phi_forward.11} parent=5 // pred_check_branch
      %117 = sbr.rel (%p114) target = $region12
    $region11: #{ppgn_phi_forward.11} parent=5 // pred_region
      %s118 = ssub.s32 %s8, 1
    $region12: #{ppgn_phi_forward.11} parent=5 // pred_fallthru
      _
    %p119 = scmp.lt.s32.totalorder %s8, 2
    // Predicated region
    $region13: #{ppgn_phi_forward.11} parent=5 // pred_check
      %p120 = pneg %p119
    $region14: #{ppgn_phi_forward.11} parent=5 // pred_check_branch
      %122 = sbr.rel (%p120) target = $region16
    $region15: #{ppgn_phi_forward.11} parent=5 // pred_region
      // Predicated region
      $region17: #{ppgn_phi_forward.11} parent=15 // pred_check
        %p123 = pneg %p42
      $region18: #{ppgn_phi_forward.11} parent=15 // pred_check_branch
        %125 = sbr.rel (%p123) target = $region20
      $region19: #{ppgn_phi_forward.11} parent=15 // pred_region
        %s126 = smul.u32 16, %s16
        %p127 = scmp.lt.s32.totalorder %s15, 1
        %s128 = scalar_select %p127, %s15, 1
        %p129 = scmp.lt.s32.totalorder %s126, 15
        %s130 = scalar_select %p129, %s126, 15
        %s131 = smul.addr %s128, 16
        %s132 = sadd.s32 %s130, %s131
        %s133 = smul.addr %s132, 8
        %s134 = scalar_lea.vmem %s0, %s133
        %s135 = smul.u32 16, %s16
      $region20: #{ppgn_phi_forward.11} parent=15 // pred_fallthru
        _
      // Predicated region
      $region21: #{ppgn_phi_forward.11} parent=15 // pred_check
        %p136 = pneg %p70
      $region22: #{ppgn_phi_forward.11} parent=15 // pred_check_branch
        %138 = sbr.rel (%p136) target = $region24
      $region23: #{ppgn_phi_forward.11} parent=15 // pred_region
        %s139 = smul.u32 16, %s16
        %p140 = scmp.lt.s32.totalorder %s15, 1
        %s141 = scalar_select %p140, %s15, 1
        %p142 = scmp.lt.s32.totalorder %s139, 15
        %s143 = scalar_select %p142, %s139, 15
        %s144 = smul.addr %s141, 16
        %s145 = sadd.s32 %s143, %s144
        %s146 = smul.addr %s145, 8
        %s147 = scalar_lea.vmem %s1, %s146
        %s148 = smul.u32 16, %s16
      $region24: #{ppgn_phi_forward.11} parent=15 // pred_fallthru
        _
    $region16: #{ppgn_phi_forward.11} parent=5 // pred_fallthru
      _
    %p149 = scmp.le.s32.totalorder 1, %s8
    %p150 = scmp.lt.s32.totalorder %s8, 3
    %p151 = pnand %p149, %p150
    %p152 = pneg %p151
    // Predicated region
    $region25: #{ppgn_phi_forward.11} parent=5 // pred_check
      _
    $region26: #{ppgn_phi_forward.11} parent=5 // pred_check_branch
      %154 = sbr.rel (%p151) target = $region28
    $region27: #{ppgn_phi_forward.11} parent=5 // pred_region
      %s155 = ssub.s32 %s8, 1
      %s156 = smul.u32 16, %s18
      %p157 = scmp.lt.s32.totalorder %s17, 1
      %s158 = scalar_select %p157, %s17, 1
      %p159 = scmp.lt.s32.totalorder %s156, 15
      %s160 = scalar_select %p159, %s156, 15
      %s161 = smul.addr %s158, 16
      %s162 = sadd.s32 %s160, %s161
      %s163 = smul.addr %s162, 8
      %s164 = scalar_lea.vmem %s0, %s163
      %p165 = pneg %p48
      %p166 = pneg %p45
      %s167 = smul.u32 16, %s18
      %p168 = scmp.lt.s32.totalorder %s17, 1
      %s169 = scalar_select %p168, %s17, 1
      %p170 = scmp.lt.s32.totalorder %s167, 15
      %s171 = scalar_select %p170, %s167, 15
      %s172 = smul.addr %s169, 16
      %s173 = sadd.s32 %s171, %s172
      %s174 = smul.addr %s173, 8
      %s175 = scalar_lea.vmem %s1, %s174
      %p176 = pneg %p76
      %p177 = pneg %p73
      %p178 = pneg %p104
      %p179 = pneg %p101
      %s180 = smul.u32 16, %s18
      %p181 = scmp.lt.s32.totalorder %s17, 1
      %s182 = scalar_select %p181, %s17, 1
      %p183 = scmp.lt.s32.totalorder %s180, 15
      %s184 = scalar_select %p183, %s180, 15
      %s185 = smul.addr %s182, 16
      %s186 = sadd.s32 %s184, %s185
      %s187 = smul.addr %s186, 8
      %s188 = scalar_lea.vmem %s2, %s187
      %s189 = smul.u32 16, %s18
      %p190 = scmp.lt.s32.totalorder %s17, 1
      %s191 = scalar_select %p190, %s17, 1
      %p192 = scmp.lt.s32.totalorder %s189, 15
      %s193 = scalar_select %p192, %s189, 15
      %s194 = smul.addr %s191, 16
      %s195 = sadd.s32 %s193, %s194
      %s196 = smul.addr %s195, 8
      %s197 = scalar_lea.vmem %s0, %s196
      %s198 = smul.u32 16, %s18
      %s199 = smul.u32 16, %s18
      %p200 = scmp.lt.s32.totalorder %s17, 1
      %s201 = scalar_select %p200, %s17, 1
      %p202 = scmp.lt.s32.totalorder %s199, 15
      %s203 = scalar_select %p202, %s199, 15
      %s204 = smul.addr %s201, 16
      %s205 = sadd.s32 %s203, %s204
      %s206 = smul.addr %s205, 8
      %s207 = scalar_lea.vmem %s1, %s206
      %s208 = smul.u32 16, %s18
      %s209 = smul.u32 16, %s18
      %p210 = scmp.lt.s32.totalorder %s17, 1
      %s211 = scalar_select %p210, %s17, 1
      %p212 = scmp.lt.s32.totalorder %s209, 15
      %s213 = scalar_select %p212, %s209, 15
      %s214 = smul.addr %s211, 16
      %s215 = sadd.s32 %s213, %s214
      %s216 = smul.addr %s215, 8
      %s217 = scalar_lea.vmem %s2, %s216
      %s218 = smul.u32 16, %s18
      %v219 = vld [vmem:[%s197] sm:$0xff]
      %v220 = vld [vmem:[%s197 + $0x8] sm:$0xff]
      %v221 = vld [vmem:[%s197 + $0x10] sm:$0xff]
      %v222 = vld [vmem:[%s197 + $0x18] sm:$0xff]
      %v223 = vld [vmem:[%s197 + $0x20] sm:$0xff]
      %v224 = vld [vmem:[%s197 + $0x28] sm:$0xff]
      %v225 = vld [vmem:[%s197 + $0x30] sm:$0xff]
      %v226 = vld [vmem:[%s197 + $0x38] sm:$0xff]
      %v227 = vld [vmem:[%s197 + $0x40] sm:$0xff]
      %v228 = vld [vmem:[%s197 + $0x48] sm:$0xff]
      %v229 = vld [vmem:[%s197 + $0x50] sm:$0xff]
      %v230 = vld [vmem:[%s197 + $0x58] sm:$0xff]
      %v231 = vld [vmem:[%s197 + $0x60] sm:$0xff]
      %v232 = vld [vmem:[%s197 + $0x68] sm:$0xff]
      %v233 = vld [vmem:[%s197 + $0x70] sm:$0xff]
      %v234 = vld [vmem:[%s197 + $0x78] sm:$0xff]
      %v235 = vld [vmem:[%s207] sm:$0xff]
      %v236 = vld [vmem:[%s207 + $0x8] sm:$0xff]
      %v237 = vld [vmem:[%s207 + $0x10] sm:$0xff]
      %v238 = vld [vmem:[%s207 + $0x18] sm:$0xff]
      %v239 = vld [vmem:[%s207 + $0x20] sm:$0xff]
      %v240 = vld [vmem:[%s207 + $0x28] sm:$0xff]
      %v241 = vld [vmem:[%s207 + $0x30] sm:$0xff]
      %v242 = vld [vmem:[%s207 + $0x38] sm:$0xff]
      %v243 = vld [vmem:[%s207 + $0x40] sm:$0xff]
      %v244 = vld [vmem:[%s207 + $0x48] sm:$0xff]
      %v245 = vld [vmem:[%s207 + $0x50] sm:$0xff]
      %v246 = vld [vmem:[%s207 + $0x58] sm:$0xff]
      %v247 = vld [vmem:[%s207 + $0x60] sm:$0xff]
      %v248 = vld [vmem:[%s207 + $0x68] sm:$0xff]
      %v249 = vld [vmem:[%s207 + $0x70] sm:$0xff]
      %v250 = vld [vmem:[%s207 + $0x78] sm:$0xff]
      %vm251 = vcmask 64512
      %v253 = vsel %vm251, %v219, 0
      %255 = vmatprep.subr.mxu0 0.0
      %256 = vmatpush1.msra.mxu0 %v235
      %257 = vmatprep.subr.mxu0 0.0
      %258 = vmatpush1.msra.mxu0 0.0
      %259 = vmatprep.subr.mxu0 0.0
      %260 = vmatpush1.msra.mxu0 0.0
      %261 = vmatprep.subr.mxu0 0.0
      %262 = vmatpush1.msra.mxu0 0.0
      %263 = vmatprep.subr.mxu0 0.0
      %264 = vmatpush1.msra.mxu0 0.0
      %265 = vmatprep.subr.mxu0 0.0
      %266 = vmatpush1.msra.mxu0 0.0
      %267 = vmatprep.subr.mxu0 0.0
      %268 = vmatpush1.msra.mxu0 0.0
      %269 = vmatprep.subr.mxu0 0.0
      %270 = vmatpush1.msra.mxu0 0.0
      %271 = vmatprep.subr.mxu0 0.0
      %272 = vmatpush1.msra.mxu0 0.0
      %273 = vmatprep.subr.mxu0 0.0
      %274 = vmatpush1.msra.mxu0 0.0
      %275 = vmatprep.subr.mxu0 0.0
      %276 = vmatpush1.msra.mxu0 0.0
      %277 = vmatprep.subr.mxu0 0.0
      %278 = vmatpush1.msra.mxu0 0.0
      %279 = vmatprep.subr.mxu0 0.0
      %280 = vmatpush1.msra.mxu0 0.0
      %281 = vmatprep.subr.mxu0 0.0
      %282 = vmatpush1.msra.mxu0 0.0
      %283 = vmatprep.subr.mxu0 0.0
      %284 = vmatpush1.msra.mxu0 0.0
      %285 = vmatprep.subr.mxu0 0.0
      %286 = vmatpush1.msra.mxu0 0.0
      %287 = vmatprep.subr.mxu0 0.0
      %288 = vmatpush1.msra.mxu0 0.0
      %289 = vmatprep.subr.mxu0 0.0
      %290 = vmatpush1.msra.mxu0 0.0
      %291 = vmatprep.subr.mxu0 0.0
      %292 = vmatpush1.msra.mxu0 0.0
      %293 = vmatprep.subr.mxu0 0.0
      %294 = vmatpush1.msra.mxu0 0.0
      %295 = vmatprep.subr.mxu0 0.0
      %296 = vmatpush1.msra.mxu0 0.0
      %297 = vmatprep.subr.mxu0 0.0
      %298 = vmatpush1.msra.mxu0 0.0
      %299 = vmatprep.subr.mxu0 0.0
      %300 = vmatpush1.msra.mxu0 0.0
      %301 = vmatprep.subr.mxu0 0.0
      %302 = vmatpush1.msra.mxu0 0.0
      %303 = vmatprep.subr.mxu0 0.0
      %304 = vmatpush1.msra.mxu0 0.0
      %305 = vmatprep.subr.mxu0 0.0
      %306 = vmatpush1.msra.mxu0 0.0
      %307 = vmatprep.subr.mxu0 0.0
      %308 = vmatpush1.msra.mxu0 0.0
      %309 = vmatprep.subr.mxu0 0.0
      %310 = vmatpush1.msra.mxu0 0.0
      %311 = vmatprep.subr.mxu0 0.0
      %312 = vmatpush1.msra.mxu0 0.0
      %313 = vmatprep.subr.mxu0 0.0
      %314 = vmatpush1.msra.mxu0 0.0
      %315 = vmatprep.subr.mxu0 0.0
      %316 = vmatpush1.msra.mxu0 0.0
      %317 = vmatprep.subr.mxu0 0.0
      %318 = vmatpush1.msra.mxu0 0.0
      %319 = vmatprep.mubr.f32.mxu0 0.0
      %320 = vmatmul.mubr.f32.gmra.mrb[0].mxu0 %v253
      %v321 = vpop.f32.mrb[0].mxu0
      %v322 = vadd.f32 0.0, %v321
      %v323 = vpop.f32.mrb[0].mxu0
      %324 = vdwg.mxu0
      %v326 = vsel %vm251, %v220, 0
      %328 = vmatprep.subr.mxu0 0.0
      %329 = vmatpush1.msra.mxu0 %v236
      %330 = vmatprep.subr.mxu0 0.0
      %331 = vmatpush1.msra.mxu0 0.0
      %332 = vmatprep.subr.mxu0 0.0
      %333 = vmatpush1.msra.mxu0 0.0
      %334 = vmatprep.subr.mxu0 0.0
      %335 = vmatpush1.msra.mxu0 0.0
      %336 = vmatprep.subr.mxu0 0.0
      %337 = vmatpush1.msra.mxu0 0.0
      %338 = vmatprep.subr.mxu0 0.0
      %339 = vmatpush1.msra.mxu0 0.0
      %340 = vmatprep.subr.mxu0 0.0
      %341 = vmatpush1.msra.mxu0 0.0
      %342 = vmatprep.subr.mxu0 0.0
      %343 = vmatpush1.msra.mxu0 0.0
      %344 = vmatprep.subr.mxu0 0.0
      %345 = vmatpush1.msra.mxu0 0.0
      %346 = vmatprep.subr.mxu0 0.0
      %347 = vmatpush1.msra.mxu0 0.0
      %348 = vmatprep.subr.mxu0 0.0
      %349 = vmatpush1.msra.mxu0 0.0
      %350 = vmatprep.subr.mxu0 0.0
      %351 = vmatpush1.msra.mxu0 0.0
      %352 = vmatprep.subr.mxu0 0.0
      %353 = vmatpush1.msra.mxu0 0.0
      %354 = vmatprep.subr.mxu0 0.0
      %355 = vmatpush1.msra.mxu0 0.0
      %356 = vmatprep.subr.mxu0 0.0
      %357 = vmatpush1.msra.mxu0 0.0
      %358 = vmatprep.subr.mxu0 0.0
      %359 = vmatpush1.msra.mxu0 0.0
      %360 = vmatprep.subr.mxu0 0.0
      %361 = vmatpush1.msra.mxu0 0.0
      %362 = vmatprep.subr.mxu0 0.0
      %363 = vmatpush1.msra.mxu0 0.0
      %364 = vmatprep.subr.mxu0 0.0
      %365 = vmatpush1.msra.mxu0 0.0
      %366 = vmatprep.subr.mxu0 0.0
      %367 = vmatpush1.msra.mxu0 0.0
      %368 = vmatprep.subr.mxu0 0.0
      %369 = vmatpush1.msra.mxu0 0.0
      %370 = vmatprep.subr.mxu0 0.0
      %371 = vmatpush1.msra.mxu0 0.0
      %372 = vmatprep.subr.mxu0 0.0
      %373 = vmatpush1.msra.mxu0 0.0
      %374 = vmatprep.subr.mxu0 0.0
      %375 = vmatpush1.msra.mxu0 0.0
      %376 = vmatprep.subr.mxu0 0.0
      %377 = vmatpush1.msra.mxu0 0.0
      %378 = vmatprep.subr.mxu0 0.0
      %379 = vmatpush1.msra.mxu0 0.0
      %380 = vmatprep.subr.mxu0 0.0
      %381 = vmatpush1.msra.mxu0 0.0
      %382 = vmatprep.subr.mxu0 0.0
      %383 = vmatpush1.msra.mxu0 0.0
      %384 = vmatprep.subr.mxu0 0.0
      %385 = vmatpush1.msra.mxu0 0.0
      %386 = vmatprep.subr.mxu0 0.0
      %387 = vmatpush1.msra.mxu0 0.0
      %388 = vmatprep.subr.mxu0 0.0
      %389 = vmatpush1.msra.mxu0 0.0
      %390 = vmatprep.subr.mxu0 0.0
      %391 = vmatpush1.msra.mxu0 0.0
      %392 = vmatprep.mubr.f32.mxu0 0.0
      %393 = vmatmul.mubr.f32.gmra.mrb[0].mxu0 %v326
      %v394 = vpop.f32.mrb[0].mxu0
      %v395 = vadd.f32 0.0, %v394
      %v396 = vpop.f32.mrb[0].mxu0
      %397 = vdwg.mxu0
      %v399 = vsel %vm251, %v221, 0
      %401 = vmatprep.subr.mxu0 0.0
      %402 = vmatpush1.msra.mxu0 %v237
      %403 = vmatprep.subr.mxu0 0.0
      %404 = vmatpush1.msra.mxu0 0.0
      %405 = vmatprep.subr.mxu0 0.0
      %406 = vmatpush1.msra.mxu0 0.0
      %407 = vmatprep.subr.mxu0 0.0
      %408 = vmatpush1.msra.mxu0 0.0
      %409 = vmatprep.subr.mxu0 0.0
      %410 = vmatpush1.msra.mxu0 0.0
      %411 = vmatprep.subr.mxu0 0.0
      %412 = vmatpush1.msra.mxu0 0.0
      %413 = vmatprep.subr.mxu0 0.0
      %414 = vmatpush1.msra.mxu0 0.0
      %415 = vmatprep.subr.mxu0 0.0
      %416 = vmatpush1.msra.mxu0 0.0
      %417 = vmatprep.subr.mxu0 0.0
      %418 = vmatpush1.msra.mxu0 0.0
      %419 = vmatprep.subr.mxu0 0.0
      %420 = vmatpush1.msra.mxu0 0.0
      %421 = vmatprep.subr.mxu0 0.0
      %422 = vmatpush1.msra.mxu0 0.0
      %423 = vmatprep.subr.mxu0 0.0
      %424 = vmatpush1.msra.mxu0 0.0
      %425 = vmatprep.subr.mxu0 0.0
      %426 = vmatpush1.msra.mxu0 0.0
      %427 = vmatprep.subr.mxu0 0.0
      %428 = vmatpush1.msra.mxu0 0.0
      %429 = vmatprep.subr.mxu0 0.0
      %430 = vmatpush1.msra.mxu0 0.0
      %431 = vmatprep.subr.mxu0 0.0
      %432 = vmatpush1.msra.mxu0 0.0
      %433 = vmatprep.subr.mxu0 0.0
      %434 = vmatpush1.msra.mxu0 0.0
      %435 = vmatprep.subr.mxu0 0.0
      %436 = vmatpush1.msra.mxu0 0.0
      %437 = vmatprep.subr.mxu0 0.0
      %438 = vmatpush1.msra.mxu0 0.0
      %439 = vmatprep.subr.mxu0 0.0
      %440 = vmatpush1.msra.mxu0 0.0
      %441 = vmatprep.subr.mxu0 0.0
      %442 = vmatpush1.msra.mxu0 0.0
      %443 = vmatprep.subr.mxu0 0.0
      %444 = vmatpush1.msra.mxu0 0.0
      %445 = vmatprep.subr.mxu0 0.0
      %446 = vmatpush1.msra.mxu0 0.0
      %447 = vmatprep.subr.mxu0 0.0
      %448 = vmatpush1.msra.mxu0 0.0
      %449 = vmatprep.subr.mxu0 0.0
      %450 = vmatpush1.msra.mxu0 0.0
      %451 = vmatprep.subr.mxu0 0.0
      %452 = vmatpush1.msra.mxu0 0.0
      %453 = vmatprep.subr.mxu0 0.0
      %454 = vmatpush1.msra.mxu0 0.0
      %455 = vmatprep.subr.mxu0 0.0
      %456 = vmatpush1.msra.mxu0 0.0
      %457 = vmatprep.subr.mxu0 0.0
      %458 = vmatpush1.msra.mxu0 0.0
      %459 = vmatprep.subr.mxu0 0.0
      %460 = vmatpush1.msra.mxu0 0.0
      %461 = vmatprep.subr.mxu0 0.0
      %462 = vmatpush1.msra.mxu0 0.0
      %463 = vmatprep.subr.mxu0 0.0
      %464 = vmatpush1.msra.mxu0 0.0
      %465 = vmatprep.mubr.f32.mxu0 0.0
      %466 = vmatmul.mubr.f32.gmra.mrb[0].mxu0 %v399
      %v467 = vpop.f32.mrb[0].mxu0
      %v468 = vadd.f32 0.0, %v467
      %v469 = vpop.f32.mrb[0].mxu0
      %470 = vdwg.mxu0
      %v472 = vsel %vm251, %v222, 0
      %474 = vmatprep.subr.mxu0 0.0
      %475 = vmatpush1.msra.mxu0 %v238
      %476 = vmatprep.subr.mxu0 0.0
      %477 = vmatpush1.msra.mxu0 0.0
      %478 = vmatprep.subr.mxu0 0.0
      %479 = vmatpush1.msra.mxu0 0.0
      %480 = vmatprep.subr.mxu0 0.0
      %481 = vmatpush1.msra.mxu0 0.0
      %482 = vmatprep.subr.mxu0 0.0
      %483 = vmatpush1.msra.mxu0 0.0
      %484 = vmatprep.subr.mxu0 0.0
      %485 = vmatpush1.msra.mxu0 0.0
      %486 = vmatprep.subr.mxu0 0.0
      %487 = vmatpush1.msra.mxu0 0.0
      %488 = vmatprep.subr.mxu0 0.0
      %489 = vmatpush1.msra.mxu0 0.0
      %490 = vmatprep.subr.mxu0 0.0
      %491 = vmatpush1.msra.mxu0 0.0
      %492 = vmatprep.subr.mxu0 0.0
      %493 = vmatpush1.msra.mxu0 0.0
      %494 = vmatprep.subr.mxu0 0.0
      %495 = vmatpush1.msra.mxu0 0.0
      %496 = vmatprep.subr.mxu0 0.0
      %497 = vmatpush1.msra.mxu0 0.0
      %498 = vmatprep.subr.mxu0 0.0
      %499 = vmatpush1.msra.mxu0 0.0
      %500 = vmatprep.subr.mxu0 0.0
      %501 = vmatpush1.msra.mxu0 0.0
      %502 = vmatprep.subr.mxu0 0.0
      %503 = vmatpush1.msra.mxu0 0.0
      %504 = vmatprep.subr.mxu0 0.0
      %505 = vmatpush1.msra.mxu0 0.0
      %506 = vmatprep.subr.mxu0 0.0
      %507 = vmatpush1.msra.mxu0 0.0
      %508 = vmatprep.subr.mxu0 0.0
      %509 = vmatpush1.msra.mxu0 0.0
      %510 = vmatprep.subr.mxu0 0.0
      %511 = vmatpush1.msra.mxu0 0.0
      %512 = vmatprep.subr.mxu0 0.0
      %513 = vmatpush1.msra.mxu0 0.0
      %514 = vmatprep.subr.mxu0 0.0
      %515 = vmatpush1.msra.mxu0 0.0
      %516 = vmatprep.subr.mxu0 0.0
      %517 = vmatpush1.msra.mxu0 0.0
      %518 = vmatprep.subr.mxu0 0.0
      %519 = vmatpush1.msra.mxu0 0.0
      %520 = vmatprep.subr.mxu0 0.0
      %521 = vmatpush1.msra.mxu0 0.0
      %522 = vmatprep.subr.mxu0 0.0
      %523 = vmatpush1.msra.mxu0 0.0
      %524 = vmatprep.subr.mxu0 0.0
      %525 = vmatpush1.msra.mxu0 0.0
      %526 = vmatprep.subr.mxu0 0.0
      %527 = vmatpush1.msra.mxu0 0.0
      %528 = vmatprep.subr.mxu0 0.0
      %529 = vmatpush1.msra.mxu0 0.0
      %530 = vmatprep.subr.mxu0 0.0
      %531 = vmatpush1.msra.mxu0 0.0
      %532 = vmatprep.subr.mxu0 0.0
      %533 = vmatpush1.msra.mxu0 0.0
      %534 = vmatprep.subr.mxu0 0.0
      %535 = vmatpush1.msra.mxu0 0.0
      %536 = vmatprep.subr.mxu0 0.0
      %537 = vmatpush1.msra.mxu0 0.0
      %538 = vmatprep.mubr.f32.mxu0 0.0
      %539 = vmatmul.mubr.f32.gmra.mrb[0].mxu0 %v472
      %v540 = vpop.f32.mrb[0].mxu0
      %v541 = vadd.f32 0.0, %v540
      %v542 = vpop.f32.mrb[0].mxu0
      %543 = vdwg.mxu0
      %v545 = vsel %vm251, %v223, 0
      %547 = vmatprep.subr.mxu0 0.0
      %548 = vmatpush1.msra.mxu0 %v239
      %549 = vmatprep.subr.mxu0 0.0
      %550 = vmatpush1.msra.mxu0 0.0
      %551 = vmatprep.subr.mxu0 0.0
      %552 = vmatpush1.msra.mxu0 0.0
      %553 = vmatprep.subr.mxu0 0.0
      %554 = vmatpush1.msra.mxu0 0.0
      %555 = vmatprep.subr.mxu0 0.0
      %556 = vmatpush1.msra.mxu0 0.0
      %557 = vmatprep.subr.mxu0 0.0
      %558 = vmatpush1.msra.mxu0 0.0
      %559 = vmatprep.subr.mxu0 0.0
      %560 = vmatpush1.msra.mxu0 0.0
      %561 = vmatprep.subr.mxu0 0.0
      %562 = vmatpush1.msra.mxu0 0.0
      %563 = vmatprep.subr.mxu0 0.0
      %564 = vmatpush1.msra.mxu0 0.0
      %565 = vmatprep.subr.mxu0 0.0
      %566 = vmatpush1.msra.mxu0 0.0
      %567 = vmatprep.subr.mxu0 0.0
      %568 = vmatpush1.msra.mxu0 0.0
      %569 = vmatprep.subr.mxu0 0.0
      %570 = vmatpush1.msra.mxu0 0.0
      %571 = vmatprep.subr.mxu0 0.0
      %572 = vmatpush1.msra.mxu0 0.0
      %573 = vmatprep.subr.mxu0 0.0
      %574 = vmatpush1.msra.mxu0 0.0
      %575 = vmatprep.subr.mxu0 0.0
      %576 = vmatpush1.msra.mxu0 0.0
      %577 = vmatprep.subr.mxu0 0.0
      %578 = vmatpush1.msra.mxu0 0.0
      %579 = vmatprep.subr.mxu0 0.0
      %580 = vmatpush1.msra.mxu0 0.0
      %581 = vmatprep.subr.mxu0 0.0
      %582 = vmatpush1.msra.mxu0 0.0
      %583 = vmatprep.subr.mxu0 0.0
      %584 = vmatpush1.msra.mxu0 0.0
      %585 = vmatprep.subr.mxu0 0.0
      %586 = vmatpush1.msra.mxu0 0.0
      %587 = vmatprep.subr.mxu0 0.0
      %588 = vmatpush1.msra.mxu0 0.0
      %589 = vmatprep.subr.mxu0 0.0
      %590 = vmatpush1.msra.mxu0 0.0
      %591 = vmatprep.subr.mxu0 0.0
      %592 = vmatpush1.msra.mxu0 0.0
      %593 = vmatprep.subr.mxu0 0.0
      %594 = vmatpush1.msra.mxu0 0.0
      %595 = vmatprep.subr.mxu0 0.0
      %596 = vmatpush1.msra.mxu0 0.0
      %597 = vmatprep.subr.mxu0 0.0
      %598 = vmatpush1.msra.mxu0 0.0
      %599 = vmatprep.subr.mxu0 0.0
      %600 = vmatpush1.msra.mxu0 0.0
      %601 = vmatprep.subr.mxu0 0.0
      %602 = vmatpush1.msra.mxu0 0.0
      %603 = vmatprep.subr.mxu0 0.0
      %604 = vmatpush1.msra.mxu0 0.0
      %605 = vmatprep.subr.mxu0 0.0
      %606 = vmatpush1.msra.mxu0 0.0
      %607 = vmatprep.subr.mxu0 0.0
      %608 = vmatpush1.msra.mxu0 0.0
      %609 = vmatprep.subr.mxu0 0.0
      %610 = vmatpush1.msra.mxu0 0.0
      %611 = vmatprep.mubr.f32.mxu0 0.0
      %612 = vmatmul.mubr.f32.gmra.mrb[0].mxu0 %v545
      %v613 = vpop.f32.mrb[0].mxu0
      %v614 = vadd.f32 0.0, %v613
      %v615 = vpop.f32.mrb[0].mxu0
      %616 = vdwg.mxu0
      %v618 = vsel %vm251, %v224, 0
      %620 = vmatprep.subr.mxu0 0.0
      %621 = vmatpush1.msra.mxu0 %v240
      %622 = vmatprep.subr.mxu0 0.0
      %623 = vmatpush1.msra.mxu0 0.0
      %624 = vmatprep.subr.mxu0 0.0
      %625 = vmatpush1.msra.mxu0 0.0
      %626 = vmatprep.subr.mxu0 0.0
      %627 = vmatpush1.msra.mxu0 0.0
      %628 = vmatprep.subr.mxu0 0.0
      %629 = vmatpush1.msra.mxu0 0.0
      %630 = vmatprep.subr.mxu0 0.0
      %631 = vmatpush1.msra.mxu0 0.0
      %632 = vmatprep.subr.mxu0 0.0
      %633 = vmatpush1.msra.mxu0 0.0
      %634 = vmatprep.subr.mxu0 0.0
      %635 = vmatpush1.msra.mxu0 0.0
      %636 = vmatprep.subr.mxu0 0.0
      %637 = vmatpush1.msra.mxu0 0.0
      %638 = vmatprep.subr.mxu0 0.0
      %639 = vmatpush1.msra.mxu0 0.0
      %640 = vmatprep.subr.mxu0 0.0
      %641 = vmatpush1.msra.mxu0 0.0
      %642 = vmatprep.subr.mxu0 0.0
      %643 = vmatpush1.msra.mxu0 0.0
      %644 = vmatprep.subr.mxu0 0.0
      %645 = vmatpush1.msra.mxu0 0.0
      %646 = vmatprep.subr.mxu0 0.0
      %647 = vmatpush1.msra.mxu0 0.0
      %648 = vmatprep.subr.mxu0 0.0
      %649 = vmatpush1.msra.mxu0 0.0
      %650 = vmatprep.subr.mxu0 0.0
      %651 = vmatpush1.msra.mxu0 0.0
      %652 = vmatprep.subr.mxu0 0.0
      %653 = vmatpush1.msra.mxu0 0.0
      %654 = vmatprep.subr.mxu0 0.0
      %655 = vmatpush1.msra.mxu0 0.0
      %656 = vmatprep.subr.mxu0 0.0
      %657 = vmatpush1.msra.mxu0 0.0
      %658 = vmatprep.subr.mxu0 0.0
      %659 = vmatpush1.msra.mxu0 0.0
      %660 = vmatprep.subr.mxu0 0.0
      %661 = vmatpush1.msra.mxu0 0.0
      %662 = vmatprep.subr.mxu0 0.0
      %663 = vmatpush1.msra.mxu0 0.0
      %664 = vmatprep.subr.mxu0 0.0
      %665 = vmatpush1.msra.mxu0 0.0
      %666 = vmatprep.subr.mxu0 0.0
      %667 = vmatpush1.msra.mxu0 0.0
      %668 = vmatprep.subr.mxu0 0.0
      %669 = vmatpush1.msra.mxu0 0.0
      %670 = vmatprep.subr.mxu0 0.0
      %671 = vmatpush1.msra.mxu0 0.0
      %672 = vmatprep.subr.mxu0 0.0
      %673 = vmatpush1.msra.mxu0 0.0
      %674 = vmatprep.subr.mxu0 0.0
      %675 = vmatpush1.msra.mxu0 0.0
      %676 = vmatprep.subr.mxu0 0.0
      %677 = vmatpush1.msra.mxu0 0.0
      %678 = vmatprep.subr.mxu0 0.0
      %679 = vmatpush1.msra.mxu0 0.0
      %680 = vmatprep.subr.mxu0 0.0
      %681 = vmatpush1.msra.mxu0 0.0
      %682 = vmatprep.subr.mxu0 0.0
      %683 = vmatpush1.msra.mxu0 0.0
      %684 = vmatprep.mubr.f32.mxu0 0.0
      %685 = vmatmul.mubr.f32.gmra.mrb[0].mxu0 %v618
      %v686 = vpop.f32.mrb[0].mxu0
      %v687 = vadd.f32 0.0, %v686
      %v688 = vpop.f32.mrb[0].mxu0
      %689 = vdwg.mxu0
      %v691 = vsel %vm251, %v225, 0
      %693 = vmatprep.subr.mxu0 0.0
      %694 = vmatpush1.msra.mxu0 %v241
      %695 = vmatprep.subr.mxu0 0.0
      %696 = vmatpush1.msra.mxu0 0.0
      %697 = vmatprep.subr.mxu0 0.0
      %698 = vmatpush1.msra.mxu0 0.0
      %699 = vmatprep.subr.mxu0 0.0
      %700 = vmatpush1.msra.mxu0 0.0
      %701 = vmatprep.subr.mxu0 0.0
      %702 = vmatpush1.msra.mxu0 0.0
      %703 = vmatprep.subr.mxu0 0.0
      %704 = vmatpush1.msra.mxu0 0.0
      %705 = vmatprep.subr.mxu0 0.0
      %706 = vmatpush1.msra.mxu0 0.0
      %707 = vmatprep.subr.mxu0 0.0
      %708 = vmatpush1.msra.mxu0 0.0
      %709 = vmatprep.subr.mxu0 0.0
      %710 = vmatpush1.msra.mxu0 0.0
      %711 = vmatprep.subr.mxu0 0.0
      %712 = vmatpush1.msra.mxu0 0.0
      %713 = vmatprep.subr.mxu0 0.0
      %714 = vmatpush1.msra.mxu0 0.0
      %715 = vmatprep.subr.mxu0 0.0
      %716 = vmatpush1.msra.mxu0 0.0
      %717 = vmatprep.subr.mxu0 0.0
      %718 = vmatpush1.msra.mxu0 0.0
      %719 = vmatprep.subr.mxu0 0.0
      %720 = vmatpush1.msra.mxu0 0.0
      %721 = vmatprep.subr.mxu0 0.0
      %722 = vmatpush1.msra.mxu0 0.0
      %723 = vmatprep.subr.mxu0 0.0
      %724 = vmatpush1.msra.mxu0 0.0
      %725 = vmatprep.subr.mxu0 0.0
      %726 = vmatpush1.msra.mxu0 0.0
      %727 = vmatprep.subr.mxu0 0.0
      %728 = vmatpush1.msra.mxu0 0.0
      %729 = vmatprep.subr.mxu0 0.0
      %730 = vmatpush1.msra.mxu0 0.0
      %731 = vmatprep.subr.mxu0 0.0
      %732 = vmatpush1.msra.mxu0 0.0
      %733 = vmatprep.subr.mxu0 0.0
      %734 = vmatpush1.msra.mxu0 0.0
      %735 = vmatprep.subr.mxu0 0.0
      %736 = vmatpush1.msra.mxu0 0.0
      %737 = vmatprep.subr.mxu0 0.0
      %738 = vmatpush1.msra.mxu0 0.0
      %739 = vmatprep.subr.mxu0 0.0
      %740 = vmatpush1.msra.mxu0 0.0
      %741 = vmatprep.subr.mxu0 0.0
      %742 = vmatpush1.msra.mxu0 0.0
      %743 = vmatprep.subr.mxu0 0.0
      %744 = vmatpush1.msra.mxu0 0.0
      %745 = vmatprep.subr.mxu0 0.0
      %746 = vmatpush1.msra.mxu0 0.0
      %747 = vmatprep.subr.mxu0 0.0
      %748 = vmatpush1.msra.mxu0 0.0
      %749 = vmatprep.subr.mxu0 0.0
      %750 = vmatpush1.msra.mxu0 0.0
      %751 = vmatprep.subr.mxu0 0.0
      %752 = vmatpush1.msra.mxu0 0.0
      %753 = vmatprep.subr.mxu0 0.0
      %754 = vmatpush1.msra.mxu0 0.0
      %755 = vmatprep.subr.mxu0 0.0
      %756 = vmatpush1.msra.mxu0 0.0
      %757 = vmatprep.mubr.f32.mxu0 0.0
      %758 = vmatmul.mubr.f32.gmra.mrb[0].mxu0 %v691
      %v759 = vpop.f32.mrb[0].mxu0
      %v760 = vadd.f32 0.0, %v759
      %v761 = vpop.f32.mrb[0].mxu0
      %762 = vdwg.mxu0
      %v764 = vsel %vm251, %v226, 0
      %766 = vmatprep.subr.mxu0 0.0
      %767 = vmatpush1.msra.mxu0 %v242
      %768 = vmatprep.subr.mxu0 0.0
      %769 = vmatpush1.msra.mxu0 0.0
      %770 = vmatprep.subr.mxu0 0.0
      %771 = vmatpush1.msra.mxu0 0.0
      %772 = vmatprep.subr.mxu0 0.0
      %773 = vmatpush1.msra.mxu0 0.0
      %774 = vmatprep.subr.mxu0 0.0
      %775 = vmatpush1.msra.mxu0 0.0
      %776 = vmatprep.subr.mxu0 0.0
      %777 = vmatpush1.msra.mxu0 0.0
      %778 = vmatprep.subr.mxu0 0.0
      %779 = vmatpush1.msra.mxu0 0.0
      %780 = vmatprep.subr.mxu0 0.0
      %781 = vmatpush1.msra.mxu0 0.0
      %782 = vmatprep.subr.mxu0 0.0
      %783 = vmatpush1.msra.mxu0 0.0
      %784 = vmatprep.subr.mxu0 0.0
      %785 = vmatpush1.msra.mxu0 0.0
      %786 = vmatprep.subr.mxu0 0.0
      %787 = vmatpush1.msra.mxu0 0.0
      %788 = vmatprep.subr.mxu0 0.0
      %789 = vmatpush1.msra.mxu0 0.0
      %790 = vmatprep.subr.mxu0 0.0
      %791 = vmatpush1.msra.mxu0 0.0
      %792 = vmatprep.subr.mxu0 0.0
      %793 = vmatpush1.msra.mxu0 0.0
      %794 = vmatprep.subr.mxu0 0.0
      %795 = vmatpush1.msra.mxu0 0.0
      %796 = vmatprep.subr.mxu0 0.0
      %797 = vmatpush1.msra.mxu0 0.0
      %798 = vmatprep.subr.mxu0 0.0
      %799 = vmatpush1.msra.mxu0 0.0
      %800 = vmatprep.subr.mxu0 0.0
      %801 = vmatpush1.msra.mxu0 0.0
      %802 = vmatprep.subr.mxu0 0.0
      %803 = vmatpush1.msra.mxu0 0.0
      %804 = vmatprep.subr.mxu0 0.0
      %805 = vmatpush1.msra.mxu0 0.0
      %806 = vmatprep.subr.mxu0 0.0
      %807 = vmatpush1.msra.mxu0 0.0
      %808 = vmatprep.subr.mxu0 0.0
      %809 = vmatpush1.msra.mxu0 0.0
      %810 = vmatprep.subr.mxu0 0.0
      %811 = vmatpush1.msra.mxu0 0.0
      %812 = vmatprep.subr.mxu0 0.0
      %813 = vmatpush1.msra.mxu0 0.0
      %814 = vmatprep.subr.mxu0 0.0
      %815 = vmatpush1.msra.mxu0 0.0
      %816 = vmatprep.subr.mxu0 0.0
      %817 = vmatpush1.msra.mxu0 0.0
      %818 = vmatprep.subr.mxu0 0.0
      %819 = vmatpush1.msra.mxu0 0.0
      %820 = vmatprep.subr.mxu0 0.0
      %821 = vmatpush1.msra.mxu0 0.0
      %822 = vmatprep.subr.mxu0 0.0
      %823 = vmatpush1.msra.mxu0 0.0
      %824 = vmatprep.subr.mxu0 0.0
      %825 = vmatpush1.msra.mxu0 0.0
      %826 = vmatprep.subr.mxu0 0.0
      %827 = vmatpush1.msra.mxu0 0.0
      %828 = vmatprep.subr.mxu0 0.0
      %829 = vmatpush1.msra.mxu0 0.0
      %830 = vmatprep.mubr.f32.mxu0 0.0
      %831 = vmatmul.mubr.f32.gmra.mrb[0].mxu0 %v764
      %v832 = vpop.f32.mrb[0].mxu0
      %v833 = vadd.f32 0.0, %v832
      %v834 = vpop.f32.mrb[0].mxu0
      %835 = vdwg.mxu0
      %v837 = vsel %vm251, %v227, 0
      %839 = vmatprep.subr.mxu0 0.0
      %840 = vmatpush1.msra.mxu0 %v243
      %841 = vmatprep.subr.mxu0 0.0
      %842 = vmatpush1.msra.mxu0 0.0
      %843 = vmatprep.subr.mxu0 0.0
      %844 = vmatpush1.msra.mxu0 0.0
      %845 = vmatprep.subr.mxu0 0.0
      %846 = vmatpush1.msra.mxu0 0.0
      %847 = vmatprep.subr.mxu0 0.0
      %848 = vmatpush1.msra.mxu0 0.0
      %849 = vmatprep.subr.mxu0 0.0
      %850 = vmatpush1.msra.mxu0 0.0
      %851 = vmatprep.subr.mxu0 0.0
      %852 = vmatpush1.msra.mxu0 0.0
      %853 = vmatprep.subr.mxu0 0.0
      %854 = vmatpush1.msra.mxu0 0.0
      %855 = vmatprep.subr.mxu0 0.0
      %856 = vmatpush1.msra.mxu0 0.0
      %857 = vmatprep.subr.mxu0 0.0
      %858 = vmatpush1.msra.mxu0 0.0
      %859 = vmatprep.subr.mxu0 0.0
      %860 = vmatpush1.msra.mxu0 0.0
      %861 = vmatprep.subr.mxu0 0.0
      %862 = vmatpush1.msra.mxu0 0.0
      %863 = vmatprep.subr.mxu0 0.0
      %864 = vmatpush1.msra.mxu0 0.0
      %865 = vmatprep.subr.mxu0 0.0
      %866 = vmatpush1.msra.mxu0 0.0
      %867 = vmatprep.subr.mxu0 0.0
      %868 = vmatpush1.msra.mxu0 0.0
      %869 = vmatprep.subr.mxu0 0.0
      %870 = vmatpush1.msra.mxu0 0.0
      %871 = vmatprep.subr.mxu0 0.0
      %872 = vmatpush1.msra.mxu0 0.0
      %873 = vmatprep.subr.mxu0 0.0
      %874 = vmatpush1.msra.mxu0 0.0
      %875 = vmatprep.subr.mxu0 0.0
      %876 = vmatpush1.msra.mxu0 0.0
      %877 = vmatprep.subr.mxu0 0.0
      %878 = vmatpush1.msra.mxu0 0.0
      %879 = vmatprep.subr.mxu0 0.0
      %880 = vmatpush1.msra.mxu0 0.0
      %881 = vmatprep.subr.mxu0 0.0
      %882 = vmatpush1.msra.mxu0 0.0
      %883 = vmatprep.subr.mxu0 0.0
      %884 = vmatpush1.msra.mxu0 0.0
      %885 = vmatprep.subr.mxu0 0.0
      %886 = vmatpush1.msra.mxu0 0.0
      %887 = vmatprep.subr.mxu0 0.0
      %888 = vmatpush1.msra.mxu0 0.0
      %889 = vmatprep.subr.mxu0 0.0
      %890 = vmatpush1.msra.mxu0 0.0
      %891 = vmatprep.subr.mxu0 0.0
      %892 = vmatpush1.msra.mxu0 0.0
      %893 = vmatprep.subr.mxu0 0.0
      %894 = vmatpush1.msra.mxu0 0.0
      %895 = vmatprep.subr.mxu0 0.0
      %896 = vmatpush1.msra.mxu0 0.0
      %897 = vmatprep.subr.mxu0 0.0
      %898 = vmatpush1.msra.mxu0 0.0
      %899 = vmatprep.subr.mxu0 0.0
      %900 = vmatpush1.msra.mxu0 0.0
      %901 = vmatprep.subr.mxu0 0.0
      %902 = vmatpush1.msra.mxu0 0.0
      %903 = vmatprep.mubr.f32.mxu0 0.0
      %904 = vmatmul.mubr.f32.gmra.mrb[0].mxu0 %v837
      %v905 = vpop.f32.mrb[0].mxu0
      %v906 = vadd.f32 0.0, %v905
      %v907 = vpop.f32.mrb[0].mxu0
      %908 = vdwg.mxu0
      %v910 = vsel %vm251, %v228, 0
      %912 = vmatprep.subr.mxu0 0.0
      %913 = vmatpush1.msra.mxu0 %v244
      %914 = vmatprep.subr.mxu0 0.0
      %915 = vmatpush1.msra.mxu0 0.0
      %916 = vmatprep.subr.mxu0 0.0
      %917 = vmatpush1.msra.mxu0 0.0
      %918 = vmatprep.subr.mxu0 0.0
      %919 = vmatpush1.msra.mxu0 0.0
      %920 = vmatprep.subr.mxu0 0.0
      %921 = vmatpush1.msra.mxu0 0.0
      %922 = vmatprep.subr.mxu0 0.0
      %923 = vmatpush1.msra.mxu0 0.0
      %924 = vmatprep.subr.mxu0 0.0
      %925 = vmatpush1.msra.mxu0 0.0
      %926 = vmatprep.subr.mxu0 0.0
      %927 = vmatpush1.msra.mxu0 0.0
      %928 = vmatprep.subr.mxu0 0.0
      %929 = vmatpush1.msra.mxu0 0.0
      %930 = vmatprep.subr.mxu0 0.0
      %931 = vmatpush1.msra.mxu0 0.0
      %932 = vmatprep.subr.mxu0 0.0
      %933 = vmatpush1.msra.mxu0 0.0
      %934 = vmatprep.subr.mxu0 0.0
      %935 = vmatpush1.msra.mxu0 0.0
      %936 = vmatprep.subr.mxu0 0.0
      %937 = vmatpush1.msra.mxu0 0.0
      %938 = vmatprep.subr.mxu0 0.0
      %939 = vmatpush1.msra.mxu0 0.0
      %940 = vmatprep.subr.mxu0 0.0
      %941 = vmatpush1.msra.mxu0 0.0
      %942 = vmatprep.subr.mxu0 0.0
      %943 = vmatpush1.msra.mxu0 0.0
      %944 = vmatprep.subr.mxu0 0.0
      %945 = vmatpush1.msra.mxu0 0.0
      %946 = vmatprep.subr.mxu0 0.0
      %947 = vmatpush1.msra.mxu0 0.0
      %948 = vmatprep.subr.mxu0 0.0
      %949 = vmatpush1.msra.mxu0 0.0
      %950 = vmatprep.subr.mxu0 0.0
      %951 = vmatpush1.msra.mxu0 0.0
      %952 = vmatprep.subr.mxu0 0.0
      %953 = vmatpush1.msra.mxu0 0.0
      %954 = vmatprep.subr.mxu0 0.0
      %955 = vmatpush1.msra.mxu0 0.0
      %956 = vmatprep.subr.mxu0 0.0
      %957 = vmatpush1.msra.mxu0 0.0
      %958 = vmatprep.subr.mxu0 0.0
      %959 = vmatpush1.msra.mxu0 0.0
      %960 = vmatprep.subr.mxu0 0.0
      %961 = vmatpush1.msra.mxu0 0.0
      %962 = vmatprep.subr.mxu0 0.0
      %963 = vmatpush1.msra.mxu0 0.0
      %964 = vmatprep.subr.mxu0 0.0
      %965 = vmatpush1.msra.mxu0 0.0
      %966 = vmatprep.subr.mxu0 0.0
      %967 = vmatpush1.msra.mxu0 0.0
      %968 = vmatprep.subr.mxu0 0.0
      %969 = vmatpush1.msra.mxu0 0.0
      %970 = vmatprep.subr.mxu0 0.0
      %971 = vmatpush1.msra.mxu0 0.0
      %972 = vmatprep.subr.mxu0 0.0
      %973 = vmatpush1.msra.mxu0 0.0
      %974 = vmatprep.subr.mxu0 0.0
      %975 = vmatpush1.msra.mxu0 0.0
      %976 = vmatprep.mubr.f32.mxu0 0.0
      %977 = vmatmul.mubr.f32.gmra.mrb[0].mxu0 %v910
      %v978 = vpop.f32.mrb[0].mxu0
      %v979 = vadd.f32 0.0, %v978
      %v980 = vpop.f32.mrb[0].mxu0
      %981 = vdwg.mxu0
      %v983 = vsel %vm251, %v229, 0
      %985 = vmatprep.subr.mxu0 0.0
      %986 = vmatpush1.msra.mxu0 %v245
      %987 = vmatprep.subr.mxu0 0.0
      %988 = vmatpush1.msra.mxu0 0.0
      %989 = vmatprep.subr.mxu0 0.0
      %990 = vmatpush1.msra.mxu0 0.0
      %991 = vmatprep.subr.mxu0 0.0
      %992 = vmatpush1.msra.mxu0 0.0
      %993 = vmatprep.subr.mxu0 0.0
      %994 = vmatpush1.msra.mxu0 0.0
      %995 = vmatprep.subr.mxu0 0.0
      %996 = vmatpush1.msra.mxu0 0.0
      %997 = vmatprep.subr.mxu0 0.0
      %998 = vmatpush1.msra.mxu0 0.0
      %999 = vmatprep.subr.mxu0 0.0
      %1000 = vmatpush1.msra.mxu0 0.0
      %1001 = vmatprep.subr.mxu0 0.0
      %1002 = vmatpush1.msra.mxu0 0.0
      %1003 = vmatprep.subr.mxu0 0.0
      %1004 = vmatpush1.msra.mxu0 0.0
      %1005 = vmatprep.subr.mxu0 0.0
      %1006 = vmatpush1.msra.mxu0 0.0
      %1007 = vmatprep.subr.mxu0 0.0
      %1008 = vmatpush1.msra.mxu0 0.0
      %1009 = vmatprep.subr.mxu0 0.0
      %1010 = vmatpush1.msra.mxu0 0.0
      %1011 = vmatprep.subr.mxu0 0.0
      %1012 = vmatpush1.msra.mxu0 0.0
      %1013 = vmatprep.subr.mxu0 0.0
      %1014 = vmatpush1.msra.mxu0 0.0
      %1015 = vmatprep.subr.mxu0 0.0
      %1016 = vmatpush1.msra.mxu0 0.0
      %1017 = vmatprep.subr.mxu0 0.0
      %1018 = vmatpush1.msra.mxu0 0.0
      %1019 = vmatprep.subr.mxu0 0.0
      %1020 = vmatpush1.msra.mxu0 0.0
      %1021 = vmatprep.subr.mxu0 0.0
      %1022 = vmatpush1.msra.mxu0 0.0
      %1023 = vmatprep.subr.mxu0 0.0
      %1024 = vmatpush1.msra.mxu0 0.0
      %1025 = vmatprep.subr.mxu0 0.0
      %1026 = vmatpush1.msra.mxu0 0.0
      %1027 = vmatprep.subr.mxu0 0.0
      %1028 = vmatpush1.msra.mxu0 0.0
      %1029 = vmatprep.subr.mxu0 0.0
      %1030 = vmatpush1.msra.mxu0 0.0
      %1031 = vmatprep.subr.mxu0 0.0
      %1032 = vmatpush1.msra.mxu0 0.0
      %1033 = vmatprep.subr.mxu0 0.0
      %1034 = vmatpush1.msra.mxu0 0.0
      %1035 = vmatprep.subr.mxu0 0.0
      %1036 = vmatpush1.msra.mxu0 0.0
      %1037 = vmatprep.subr.mxu0 0.0
      %1038 = vmatpush1.msra.mxu0 0.0
      %1039 = vmatprep.subr.mxu0 0.0
      %1040 = vmatpush1.msra.mxu0 0.0
      %1041 = vmatprep.subr.mxu0 0.0
      %1042 = vmatpush1.msra.mxu0 0.0
      %1043 = vmatprep.subr.mxu0 0.0
      %1044 = vmatpush1.msra.mxu0 0.0
      %1045 = vmatprep.subr.mxu0 0.0
      %1046 = vmatpush1.msra.mxu0 0.0
      %1047 = vmatprep.subr.mxu0 0.0
      %1048 = vmatpush1.msra.mxu0 0.0
      %1049 = vmatprep.mubr.f32.mxu0 0.0
      %1050 = vmatmul.mubr.f32.gmra.mrb[0].mxu0 %v983
      %v1051 = vpop.f32.mrb[0].mxu0
      %v1052 = vadd.f32 0.0, %v1051
      %v1053 = vpop.f32.mrb[0].mxu0
      %1054 = vdwg.mxu0
      %v1056 = vsel %vm251, %v230, 0
      %1058 = vmatprep.subr.mxu0 0.0
      %1059 = vmatpush1.msra.mxu0 %v246
      %1060 = vmatprep.subr.mxu0 0.0
      %1061 = vmatpush1.msra.mxu0 0.0
      %1062 = vmatprep.subr.mxu0 0.0
      %1063 = vmatpush1.msra.mxu0 0.0
      %1064 = vmatprep.subr.mxu0 0.0
      %1065 = vmatpush1.msra.mxu0 0.0
      %1066 = vmatprep.subr.mxu0 0.0
      %1067 = vmatpush1.msra.mxu0 0.0
      %1068 = vmatprep.subr.mxu0 0.0
      %1069 = vmatpush1.msra.mxu0 0.0
      %1070 = vmatprep.subr.mxu0 0.0
      %1071 = vmatpush1.msra.mxu0 0.0
      %1072 = vmatprep.subr.mxu0 0.0
      %1073 = vmatpush1.msra.mxu0 0.0
      %1074 = vmatprep.subr.mxu0 0.0
      %1075 = vmatpush1.msra.mxu0 0.0
      %1076 = vmatprep.subr.mxu0 0.0
      %1077 = vmatpush1.msra.mxu0 0.0
      %1078 = vmatprep.subr.mxu0 0.0
      %1079 = vmatpush1.msra.mxu0 0.0
      %1080 = vmatprep.subr.mxu0 0.0
      %1081 = vmatpush1.msra.mxu0 0.0
      %1082 = vmatprep.subr.mxu0 0.0
      %1083 = vmatpush1.msra.mxu0 0.0
      %1084 = vmatprep.subr.mxu0 0.0
      %1085 = vmatpush1.msra.mxu0 0.0
      %1086 = vmatprep.subr.mxu0 0.0
      %1087 = vmatpush1.msra.mxu0 0.0
      %1088 = vmatprep.subr.mxu0 0.0
      %1089 = vmatpush1.msra.mxu0 0.0
      %1090 = vmatprep.subr.mxu0 0.0
      %1091 = vmatpush1.msra.mxu0 0.0
      %1092 = vmatprep.subr.mxu0 0.0
      %1093 = vmatpush1.msra.mxu0 0.0
      %1094 = vmatprep.subr.mxu0 0.0
      %1095 = vmatpush1.msra.mxu0 0.0
      %1096 = vmatprep.subr.mxu0 0.0
      %1097 = vmatpush1.msra.mxu0 0.0
      %1098 = vmatprep.subr.mxu0 0.0
      %1099 = vmatpush1.msra.mxu0 0.0
      %1100 = vmatprep.subr.mxu0 0.0
      %1101 = vmatpush1.msra.mxu0 0.0
      %1102 = vmatprep.subr.mxu0 0.0
      %1103 = vmatpush1.msra.mxu0 0.0
      %1104 = vmatprep.subr.mxu0 0.0
      %1105 = vmatpush1.msra.mxu0 0.0
      %1106 = vmatprep.subr.mxu0 0.0
      %1107 = vmatpush1.msra.mxu0 0.0
      %1108 = vmatprep.subr.mxu0 0.0
      %1109 = vmatpush1.msra.mxu0 0.0
      %1110 = vmatprep.subr.mxu0 0.0
      %1111 = vmatpush1.msra.mxu0 0.0
      %1112 = vmatprep.subr.mxu0 0.0
      %1113 = vmatpush1.msra.mxu0 0.0
      %1114 = vmatprep.subr.mxu0 0.0
      %1115 = vmatpush1.msra.mxu0 0.0
      %1116 = vmatprep.subr.mxu0 0.0
      %1117 = vmatpush1.msra.mxu0 0.0
      %1118 = vmatprep.subr.mxu0 0.0
      %1119 = vmatpush1.msra.mxu0 0.0
      %1120 = vmatprep.subr.mxu0 0.0
      %1121 = vmatpush1.msra.mxu0 0.0
      %1122 = vmatprep.mubr.f32.mxu0 0.0
      %1123 = vmatmul.mubr.f32.gmra.mrb[0].mxu0 %v1056
      %v1124 = vpop.f32.mrb[0].mxu0
      %v1125 = vadd.f32 0.0, %v1124
      %v1126 = vpop.f32.mrb[0].mxu0
      %1127 = vdwg.mxu0
      %v1129 = vsel %vm251, %v231, 0
      %1131 = vmatprep.subr.mxu0 0.0
      %1132 = vmatpush1.msra.mxu0 %v247
      %1133 = vmatprep.subr.mxu0 0.0
      %1134 = vmatpush1.msra.mxu0 0.0
      %1135 = vmatprep.subr.mxu0 0.0
      %1136 = vmatpush1.msra.mxu0 0.0
      %1137 = vmatprep.subr.mxu0 0.0
      %1138 = vmatpush1.msra.mxu0 0.0
      %1139 = vmatprep.subr.mxu0 0.0
      %1140 = vmatpush1.msra.mxu0 0.0
      %1141 = vmatprep.subr.mxu0 0.0
      %1142 = vmatpush1.msra.mxu0 0.0
      %1143 = vmatprep.subr.mxu0 0.0
      %1144 = vmatpush1.msra.mxu0 0.0
      %1145 = vmatprep.subr.mxu0 0.0
      %1146 = vmatpush1.msra.mxu0 0.0
      %1147 = vmatprep.subr.mxu0 0.0
      %1148 = vmatpush1.msra.mxu0 0.0
      %1149 = vmatprep.subr.mxu0 0.0
      %1150 = vmatpush1.msra.mxu0 0.0
      %1151 = vmatprep.subr.mxu0 0.0
      %1152 = vmatpush1.msra.mxu0 0.0
      %1153 = vmatprep.subr.mxu0 0.0
      %1154 = vmatpush1.msra.mxu0 0.0
      %1155 = vmatprep.subr.mxu0 0.0
      %1156 = vmatpush1.msra.mxu0 0.0
      %1157 = vmatprep.subr.mxu0 0.0
      %1158 = vmatpush1.msra.mxu0 0.0
      %1159 = vmatprep.subr.mxu0 0.0
      %1160 = vmatpush1.msra.mxu0 0.0
      %1161 = vmatprep.subr.mxu0 0.0
      %1162 = vmatpush1.msra.mxu0 0.0
      %1163 = vmatprep.subr.mxu0 0.0
      %1164 = vmatpush1.msra.mxu0 0.0
      %1165 = vmatprep.subr.mxu0 0.0
      %1166 = vmatpush1.msra.mxu0 0.0
      %1167 = vmatprep.subr.mxu0 0.0
      %1168 = vmatpush1.msra.mxu0 0.0
      %1169 = vmatprep.subr.mxu0 0.0
      %1170 = vmatpush1.msra.mxu0 0.0
      %1171 = vmatprep.subr.mxu0 0.0
      %1172 = vmatpush1.msra.mxu0 0.0
      %1173 = vmatprep.subr.mxu0 0.0
      %1174 = vmatpush1.msra.mxu0 0.0
      %1175 = vmatprep.subr.mxu0 0.0
      %1176 = vmatpush1.msra.mxu0 0.0
      %1177 = vmatprep.subr.mxu0 0.0
      %1178 = vmatpush1.msra.mxu0 0.0
      %1179 = vmatprep.subr.mxu0 0.0
      %1180 = vmatpush1.msra.mxu0 0.0
      %1181 = vmatprep.subr.mxu0 0.0
      %1182 = vmatpush1.msra.mxu0 0.0
      %1183 = vmatprep.subr.mxu0 0.0
      %1184 = vmatpush1.msra.mxu0 0.0
      %1185 = vmatprep.subr.mxu0 0.0
      %1186 = vmatpush1.msra.mxu0 0.0
      %1187 = vmatprep.subr.mxu0 0.0
      %1188 = vmatpush1.msra.mxu0 0.0
      %1189 = vmatprep.subr.mxu0 0.0
      %1190 = vmatpush1.msra.mxu0 0.0
      %1191 = vmatprep.subr.mxu0 0.0
      %1192 = vmatpush1.msra.mxu0 0.0
      %1193 = vmatprep.subr.mxu0 0.0
      %1194 = vmatpush1.msra.mxu0 0.0
      %1195 = vmatprep.mubr.f32.mxu0 0.0
      %1196 = vmatmul.mubr.f32.gmra.mrb[0].mxu0 %v1129
      %v1197 = vpop.f32.mrb[0].mxu0
      %v1198 = vadd.f32 0.0, %v1197
      %v1199 = vpop.f32.mrb[0].mxu0
      %1200 = vdwg.mxu0
      %v1202 = vsel %vm251, %v232, 0
      %1204 = vmatprep.subr.mxu0 0.0
      %1205 = vmatpush1.msra.mxu0 %v248
      %1206 = vmatprep.subr.mxu0 0.0
      %1207 = vmatpush1.msra.mxu0 0.0
      %1208 = vmatprep.subr.mxu0 0.0
      %1209 = vmatpush1.msra.mxu0 0.0
      %1210 = vmatprep.subr.mxu0 0.0
      %1211 = vmatpush1.msra.mxu0 0.0
      %1212 = vmatprep.subr.mxu0 0.0
      %1213 = vmatpush1.msra.mxu0 0.0
      %1214 = vmatprep.subr.mxu0 0.0
      %1215 = vmatpush1.msra.mxu0 0.0
      %1216 = vmatprep.subr.mxu0 0.0
      %1217 = vmatpush1.msra.mxu0 0.0
      %1218 = vmatprep.subr.mxu0 0.0
      %1219 = vmatpush1.msra.mxu0 0.0
      %1220 = vmatprep.subr.mxu0 0.0
      %1221 = vmatpush1.msra.mxu0 0.0
      %1222 = vmatprep.subr.mxu0 0.0
      %1223 = vmatpush1.msra.mxu0 0.0
      %1224 = vmatprep.subr.mxu0 0.0
      %1225 = vmatpush1.msra.mxu0 0.0
      %1226 = vmatprep.subr.mxu0 0.0
      %1227 = vmatpush1.msra.mxu0 0.0
      %1228 = vmatprep.subr.mxu0 0.0
      %1229 = vmatpush1.msra.mxu0 0.0
      %1230 = vmatprep.subr.mxu0 0.0
      %1231 = vmatpush1.msra.mxu0 0.0
      %1232 = vmatprep.subr.mxu0 0.0
      %1233 = vmatpush1.msra.mxu0 0.0
      %1234 = vmatprep.subr.mxu0 0.0
      %1235 = vmatpush1.msra.mxu0 0.0
      %1236 = vmatprep.subr.mxu0 0.0
      %1237 = vmatpush1.msra.mxu0 0.0
      %1238 = vmatprep.subr.mxu0 0.0
      %1239 = vmatpush1.msra.mxu0 0.0
      %1240 = vmatprep.subr.mxu0 0.0
      %1241 = vmatpush1.msra.mxu0 0.0
      %1242 = vmatprep.subr.mxu0 0.0
      %1243 = vmatpush1.msra.mxu0 0.0
      %1244 = vmatprep.subr.mxu0 0.0
      %1245 = vmatpush1.msra.mxu0 0.0
      %1246 = vmatprep.subr.mxu0 0.0
      %1247 = vmatpush1.msra.mxu0 0.0
      %1248 = vmatprep.subr.mxu0 0.0
      %1249 = vmatpush1.msra.mxu0 0.0
      %1250 = vmatprep.subr.mxu0 0.0
      %1251 = vmatpush1.msra.mxu0 0.0
      %1252 = vmatprep.subr.mxu0 0.0
      %1253 = vmatpush1.msra.mxu0 0.0
      %1254 = vmatprep.subr.mxu0 0.0
      %1255 = vmatpush1.msra.mxu0 0.0
      %1256 = vmatprep.subr.mxu0 0.0
      %1257 = vmatpush1.msra.mxu0 0.0
      %1258 = vmatprep.subr.mxu0 0.0
      %1259 = vmatpush1.msra.mxu0 0.0
      %1260 = vmatprep.subr.mxu0 0.0
      %1261 = vmatpush1.msra.mxu0 0.0
      %1262 = vmatprep.subr.mxu0 0.0
      %1263 = vmatpush1.msra.mxu0 0.0
      %1264 = vmatprep.subr.mxu0 0.0
      %1265 = vmatpush1.msra.mxu0 0.0
      %1266 = vmatprep.subr.mxu0 0.0
      %1267 = vmatpush1.msra.mxu0 0.0
      %1268 = vmatprep.mubr.f32.mxu0 0.0
      %1269 = vmatmul.mubr.f32.gmra.mrb[0].mxu0 %v1202
      %v1270 = vpop.f32.mrb[0].mxu0
      %v1271 = vadd.f32 0.0, %v1270
      %v1272 = vpop.f32.mrb[0].mxu0
      %1273 = vdwg.mxu0
      %v1275 = vsel %vm251, %v233, 0
      %1277 = vmatprep.subr.mxu0 0.0
      %1278 = vmatpush1.msra.mxu0 %v249
      %1279 = vmatprep.subr.mxu0 0.0
      %1280 = vmatpush1.msra.mxu0 0.0
      %1281 = vmatprep.subr.mxu0 0.0
      %1282 = vmatpush1.msra.mxu0 0.0
      %1283 = vmatprep.subr.mxu0 0.0
      %1284 = vmatpush1.msra.mxu0 0.0
      %1285 = vmatprep.subr.mxu0 0.0
      %1286 = vmatpush1.msra.mxu0 0.0
      %1287 = vmatprep.subr.mxu0 0.0
      %1288 = vmatpush1.msra.mxu0 0.0
      %1289 = vmatprep.subr.mxu0 0.0
      %1290 = vmatpush1.msra.mxu0 0.0
      %1291 = vmatprep.subr.mxu0 0.0
      %1292 = vmatpush1.msra.mxu0 0.0
      %1293 = vmatprep.subr.mxu0 0.0
      %1294 = vmatpush1.msra.mxu0 0.0
      %1295 = vmatprep.subr.mxu0 0.0
      %1296 = vmatpush1.msra.mxu0 0.0
      %1297 = vmatprep.subr.mxu0 0.0
      %1298 = vmatpush1.msra.mxu0 0.0
      %1299 = vmatprep.subr.mxu0 0.0
      %1300 = vmatpush1.msra.mxu0 0.0
      %1301 = vmatprep.subr.mxu0 0.0
      %1302 = vmatpush1.msra.mxu0 0.0
      %1303 = vmatprep.subr.mxu0 0.0
      %1304 = vmatpush1.msra.mxu0 0.0
      %1305 = vmatprep.subr.mxu0 0.0
      %1306 = vmatpush1.msra.mxu0 0.0
      %1307 = vmatprep.subr.mxu0 0.0
      %1308 = vmatpush1.msra.mxu0 0.0
      %1309 = vmatprep.subr.mxu0 0.0
      %1310 = vmatpush1.msra.mxu0 0.0
      %1311 = vmatprep.subr.mxu0 0.0
      %1312 = vmatpush1.msra.mxu0 0.0
      %1313 = vmatprep.subr.mxu0 0.0
      %1314 = vmatpush1.msra.mxu0 0.0
      %1315 = vmatprep.subr.mxu0 0.0
      %1316 = vmatpush1.msra.mxu0 0.0
      %1317 = vmatprep.subr.mxu0 0.0
      %1318 = vmatpush1.msra.mxu0 0.0
      %1319 = vmatprep.subr.mxu0 0.0
      %1320 = vmatpush1.msra.mxu0 0.0
      %1321 = vmatprep.subr.mxu0 0.0
      %1322 = vmatpush1.msra.mxu0 0.0
      %1323 = vmatprep.subr.mxu0 0.0
      %1324 = vmatpush1.msra.mxu0 0.0
      %1325 = vmatprep.subr.mxu0 0.0
      %1326 = vmatpush1.msra.mxu0 0.0
      %1327 = vmatprep.subr.mxu0 0.0
      %1328 = vmatpush1.msra.mxu0 0.0
      %1329 = vmatprep.subr.mxu0 0.0
      %1330 = vmatpush1.msra.mxu0 0.0
      %1331 = vmatprep.subr.mxu0 0.0
      %1332 = vmatpush1.msra.mxu0 0.0
      %1333 = vmatprep.subr.mxu0 0.0
      %1334 = vmatpush1.msra.mxu0 0.0
      %1335 = vmatprep.subr.mxu0 0.0
      %1336 = vmatpush1.msra.mxu0 0.0
      %1337 = vmatprep.subr.mxu0 0.0
      %1338 = vmatpush1.msra.mxu0 0.0
      %1339 = vmatprep.subr.mxu0 0.0
      %1340 = vmatpush1.msra.mxu0 0.0
      %1341 = vmatprep.mubr.f32.mxu0 0.0
      %1342 = vmatmul.mubr.f32.gmra.mrb[0].mxu0 %v1275
      %v1343 = vpop.f32.mrb[0].mxu0
      %v1344 = vadd.f32 0.0, %v1343
      %v1345 = vpop.f32.mrb[0].mxu0
      %1346 = vdwg.mxu0
      %v1348 = vsel %vm251, %v234, 0
      %1350 = vmatprep.subr.mxu0 0.0
      %1351 = vmatpush1.msra.mxu0 %v250
      %1352 = vmatprep.subr.mxu0 0.0
      %1353 = vmatpush1.msra.mxu0 0.0
      %1354 = vmatprep.subr.mxu0 0.0
      %1355 = vmatpush1.msra.mxu0 0.0
      %1356 = vmatprep.subr.mxu0 0.0
      %1357 = vmatpush1.msra.mxu0 0.0
      %1358 = vmatprep.subr.mxu0 0.0
      %1359 = vmatpush1.msra.mxu0 0.0
      %1360 = vmatprep.subr.mxu0 0.0
      %1361 = vmatpush1.msra.mxu0 0.0
      %1362 = vmatprep.subr.mxu0 0.0
      %1363 = vmatpush1.msra.mxu0 0.0
      %1364 = vmatprep.subr.mxu0 0.0
      %1365 = vmatpush1.msra.mxu0 0.0
      %1366 = vmatprep.subr.mxu0 0.0
      %1367 = vmatpush1.msra.mxu0 0.0
      %1368 = vmatprep.subr.mxu0 0.0
      %1369 = vmatpush1.msra.mxu0 0.0
      %1370 = vmatprep.subr.mxu0 0.0
      %1371 = vmatpush1.msra.mxu0 0.0
      %1372 = vmatprep.subr.mxu0 0.0
      %1373 = vmatpush1.msra.mxu0 0.0
      %1374 = vmatprep.subr.mxu0 0.0
      %1375 = vmatpush1.msra.mxu0 0.0
      %1376 = vmatprep.subr.mxu0 0.0
      %1377 = vmatpush1.msra.mxu0 0.0
      %1378 = vmatprep.subr.mxu0 0.0
      %1379 = vmatpush1.msra.mxu0 0.0
      %1380 = vmatprep.subr.mxu0 0.0
      %1381 = vmatpush1.msra.mxu0 0.0
      %1382 = vmatprep.subr.mxu0 0.0
      %1383 = vmatpush1.msra.mxu0 0.0
      %1384 = vmatprep.subr.mxu0 0.0
      %1385 = vmatpush1.msra.mxu0 0.0
      %1386 = vmatprep.subr.mxu0 0.0
      %1387 = vmatpush1.msra.mxu0 0.0
      %1388 = vmatprep.subr.mxu0 0.0
      %1389 = vmatpush1.msra.mxu0 0.0
      %1390 = vmatprep.subr.mxu0 0.0
      %1391 = vmatpush1.msra.mxu0 0.0
      %1392 = vmatprep.subr.mxu0 0.0
      %1393 = vmatpush1.msra.mxu0 0.0
      %1394 = vmatprep.subr.mxu0 0.0
      %1395 = vmatpush1.msra.mxu0 0.0
      %1396 = vmatprep.subr.mxu0 0.0
      %1397 = vmatpush1.msra.mxu0 0.0
      %1398 = vmatprep.subr.mxu0 0.0
      %1399 = vmatpush1.msra.mxu0 0.0
      %1400 = vmatprep.subr.mxu0 0.0
      %1401 = vmatpush1.msra.mxu0 0.0
      %1402 = vmatprep.subr.mxu0 0.0
      %1403 = vmatpush1.msra.mxu0 0.0
      %1404 = vmatprep.subr.mxu0 0.0
      %1405 = vmatpush1.msra.mxu0 0.0
      %1406 = vmatprep.subr.mxu0 0.0
      %1407 = vmatpush1.msra.mxu0 0.0
      %1408 = vmatprep.subr.mxu0 0.0
      %1409 = vmatpush1.msra.mxu0 0.0
      %1410 = vmatprep.subr.mxu0 0.0
      %1411 = vmatpush1.msra.mxu0 0.0
      %1412 = vmatprep.subr.mxu0 0.0
      %1413 = vmatpush1.msra.mxu0 0.0
      %1414 = vmatprep.mubr.f32.mxu0 0.0
      %1415 = vmatmul.mubr.f32.gmra.mrb[0].mxu0 %v1348
      %v1416 = vpop.f32.mrb[0].mxu0
      %v1417 = vadd.f32 0.0, %v1416
      %v1418 = vpop.f32.mrb[0].mxu0
      %1419 = vdwg.mxu0
      %1420 = vst.msk [vmem:[%s217] sm:$0xff] %vm251, %v322
      %1421 = vst.msk [vmem:[%s217 + $0x8] sm:$0xff] %vm251, %v395
      %1422 = vst.msk [vmem:[%s217 + $0x10] sm:$0xff] %vm251, %v468
      %1423 = vst.msk [vmem:[%s217 + $0x18] sm:$0xff] %vm251, %v541
      %1424 = vst.msk [vmem:[%s217 + $0x20] sm:$0xff] %vm251, %v614
      %1425 = vst.msk [vmem:[%s217 + $0x28] sm:$0xff] %vm251, %v687
      %1426 = vst.msk [vmem:[%s217 + $0x30] sm:$0xff] %vm251, %v760
      %1427 = vst.msk [vmem:[%s217 + $0x38] sm:$0xff] %vm251, %v833
      %1428 = vst.msk [vmem:[%s217 + $0x40] sm:$0xff] %vm251, %v906
      %1429 = vst.msk [vmem:[%s217 + $0x48] sm:$0xff] %vm251, %v979
      %1430 = vst.msk [vmem:[%s217 + $0x50] sm:$0xff] %vm251, %v1052
      %1431 = vst.msk [vmem:[%s217 + $0x58] sm:$0xff] %vm251, %v1125
      %1432 = vst.msk [vmem:[%s217 + $0x60] sm:$0xff] %vm251, %v1198
      %1433 = vst.msk [vmem:[%s217 + $0x68] sm:$0xff] %vm251, %v1271
      %1434 = vst.msk [vmem:[%s217 + $0x70] sm:$0xff] %vm251, %v1344
      %1435 = vst.msk [vmem:[%s217 + $0x78] sm:$0xff] %vm251, %v1417
      %s1436 = smul.u32 16, %s18
      %p1437 = scmp.lt.s32.totalorder %s17, 1
      %s1438 = scalar_select %p1437, %s17, 1
      %p1439 = scmp.lt.s32.totalorder %s1436, 15
      %s1440 = scalar_select %p1439, %s1436, 15
      %s1441 = smul.addr %s1438, 16
      %s1442 = sadd.s32 %s1440, %s1441
      %s1443 = smul.addr %s1442, 8
      %s1444 = scalar_lea.vmem %s2, %s1443
      // Predicated region
      $region29: #{ppgn_phi_forward.11} parent=27 // pred_check
        %p1445 = pneg %p101
      $region30: #{ppgn_phi_forward.11} parent=27 // pred_check_branch
        %1447 = sbr.rel (%p1445) target = $region32
      $region31: #{ppgn_phi_forward.11} parent=27 // pred_region
        %s1448 = smul.u32 16, %s18
      $region32: #{ppgn_phi_forward.11} parent=27 // pred_fallthru
        _
    $region28: #{ppgn_phi_forward.11} parent=5 // pred_fallthru
      _
    %p1449 = scmp.le.s32.totalorder 2, %s8
    // Predicated region
    $region33: #{ppgn_phi_forward.11} parent=5 // pred_check
      %p1450 = pneg %p1449
    $region34: #{ppgn_phi_forward.11} parent=5 // pred_check_branch
      %1452 = sbr.rel (%p1450) target = $region36
    $region35: #{ppgn_phi_forward.11} parent=5 // pred_region
      %s1453 = ssub.s32 %s8, 2
      // Predicated region
      $region37: #{ppgn_phi_forward.11} parent=35 // pred_check
        %p1454 = pneg %p107
      $region38: #{ppgn_phi_forward.11} parent=35 // pred_check_branch
        %1456 = sbr.rel (%p1454) target = $region40
      $region39: #{ppgn_phi_forward.11} parent=35 // pred_region
        %s1457 = smul.u32 16, %s20
        %p1458 = scmp.lt.s32.totalorder %s19, 1
        %s1459 = scalar_select %p1458, %s19, 1
        %p1460 = scmp.lt.s32.totalorder %s1457, 15
        %s1461 = scalar_select %p1460, %s1457, 15
        %s1462 = smul.addr %s1459, 16
        %s1463 = sadd.s32 %s1461, %s1462
        %s1464 = smul.addr %s1463, 8
        %s1465 = scalar_lea.vmem %s2, %s1464
      $region40: #{ppgn_phi_forward.11} parent=35 // pred_fallthru
        _
    $region36: #{ppgn_phi_forward.11} parent=5 // pred_fallthru
      _
  $region6: #{ppgn_phi_forward.11} parent=0 // loop_footer
    %s12 = sadd.s32 1, %s8
  $region7: #{ppgn_phi_forward.11} parent=0 // loop_footer_branch
    %7 = sbr.rel target = $region3
  $region8: #{ppgn_phi_forward.11} parent=0 // loop_exit
    _

// kernel: ppgn_phi_forward.16
$region0: #{ppgn_phi_forward.16}
  #allocation0 [shape = 'u32[]', space=smem, size = 0x4, offset = 0x4, fixed_abs, tag = 'smem constant byte address 0x4 - core index']
  #allocation1 [shape = 'u32[144,128]{1,0:T(1,128)}', space=vmem, size = 0x12000, scoped, tag = 'internal scratch']
  %s0 = inlined_call_operand.vmem [shape: f32[2,16,64], index: 0, kind: input, shape index: {}]
  %s1 = inlined_call_operand.vmem [shape: f32[16,16], index: 1, kind: input, shape index: {}]
  %s2 = inlined_call_operand.vmem [shape: f32[16,1], index: 2, kind: input, shape index: {}]
  %s3 = inlined_call_operand.vmem [shape: f32[8,16], index: 3, kind: input, shape index: {}]
  %s4 = inlined_call_operand.vmem [shape: f32[8,1], index: 4, kind: input, shape index: {}]
  %s5 = inlined_call_operand.vmem [shape: f32[2,1,64], index: 5, kind: input, shape index: {}]
  %s6 = inlined_call_operand.vmem [shape: f32[2,8,64], index: 6, kind: output, shape index: {}]
  %s7 = sld [smem:[#allocation0]]
  $region57: #{ppgn_phi_forward.16} parent=0
    _
  %s9 = ssub.s32 1, %s7
  %s10 = scalar_select 0, %s9, %s7
  loop: start=0, step=1, limit=4
  $region2: #{ppgn_phi_forward.16} parent=0 // loop_pre_header
    _
  $region3: #{ppgn_phi_forward.16} parent=0 // loop_header
    %s12 = sphi 0, %s16
    %p13 = scmp.ge.s32.totalorder %s12, 4
    %s19 = sphi 0, %s31
    %s20 = sphi 0, %s27
    %s21 = sphi 0, %s19
    %s22 = sphi 0, %s20
    %s23 = sphi 0, %s21
    %s24 = sphi 0, %s22
    %s36 = sphi 0, %s38
    %s39 = sphi 0, %s36
    %s40 = sphi 0, %s39
    %s56 = sphi 0, %s40
    %s60 = sphi 0, %s60
    %s62 = sphi 0, %s60
    %s63 = sphi 0, %s62
    %s77 = sphi 0, %s63
    %s81 = sphi 0, %s81
    %s83 = sphi 0, %s81
    %s84 = sphi 0, %s83
    %s98 = sphi 0, %s84
    %s102 = sphi 0, %s102
    %s104 = sphi 0, %s102
    %s105 = sphi 0, %s104
    %s119 = sphi 0, %s105
    %s123 = sphi 0, %s123
    %s125 = sphi 0, %s123
    %s126 = sphi 0, %s125
    %s140 = sphi 0, %s126
    %s148 = sphi 0, %s150
    %s151 = sphi 0, %s148
    %s152 = sphi 0, %s151
    %s168 = sphi 0, %s152
    %s176 = sphi 0, %s178
    %s179 = sphi 0, %s176
    %s180 = sphi 0, %s179
    %s196 = sphi 0, %s180
  $region4: #{ppgn_phi_forward.16} parent=0 // loop_header_branch
    %15 = sbr.rel (%p13) target = $region8
  $region5: #{ppgn_phi_forward.16} parent=0 // loop_body
    %s17 = ssub.s32 %s12, 1
    %s18 = ssub.s32 %s12, 2
    %s25 = sadd.s32 1, %s20
    %p26 = scmp.ge.s32.totalorder %s25, 1
    %s27 = scalar_select %p26, 0, %s25
    %s28 = sadd.s32 1, %s19
    %s29 = scalar_select %p26, %s28, %s19
    %p30 = scmp.ge.s32.totalorder %s29, 2
    %s31 = scalar_select %p30, 0, %s29
    %s32 = ssub.s32 %s19, %s31
    %s33 = ssub.s32 %s20, %s27
    %s34 = sor.u32 %s32, %s33
    %p35 = scmp.eq.s32.totalorder %s34, 0
    %s37 = sadd.s32 %s36, 1
    %s38 = scalar_select %p35, %s36, %s37
    %p41 = pneg %p35
    %p42 = scmp.eq.s32.totalorder %s12, 1
    %p43 = por %p41, %p42
    %p44 = scmp.ne.s32.totalorder %s36, %s39
    %p45 = scmp.eq.s32.totalorder %s12, 0
    %p46 = por %p44, %p45
    %p47 = scmp.ne.s32.totalorder %s36, %s39
    %p48 = scmp.eq.s32.totalorder %s17, 1
    %p49 = por %p47, %p48
    %p50 = scmp.ne.s32.totalorder %s39, %s40
    %p51 = scmp.eq.s32.totalorder %s17, 0
    %p52 = por %p50, %p51
    %p53 = scmp.ne.s32.totalorder %s39, %s40
    %p54 = scmp.eq.s32.totalorder %s18, 1
    %p55 = por %p53, %p54
    %p57 = scmp.ne.s32.totalorder %s40, %s56
    %p58 = scmp.eq.s32.totalorder %s18, 0
    %p59 = por %p57, %p58
    %s61 = sadd.s32 %s60, 1
    %p64 = scmp.eq.s32.totalorder %s12, 1
    %p65 = scmp.ne.s32.totalorder %s60, %s62
    %p66 = scmp.eq.s32.totalorder %s12, 0
    %p67 = por %p65, %p66
    %p68 = scmp.ne.s32.totalorder %s60, %s62
    %p69 = scmp.eq.s32.totalorder %s17, 1
    %p70 = por %p68, %p69
    %p71 = scmp.ne.s32.totalorder %s62, %s63
    %p72 = scmp.eq.s32.totalorder %s17, 0
    %p73 = por %p71, %p72
    %p74 = scmp.ne.s32.totalorder %s62, %s63
    %p75 = scmp.eq.s32.totalorder %s18, 1
    %p76 = por %p74, %p75
    %p78 = scmp.ne.s32.totalorder %s63, %s77
    %p79 = scmp.eq.s32.totalorder %s18, 0
    %p80 = por %p78, %p79
    %s82 = sadd.s32 %s81, 1
    %p85 = scmp.eq.s32.totalorder %s12, 1
    %p86 = scmp.ne.s32.totalorder %s81, %s83
    %p87 = scmp.eq.s32.totalorder %s12, 0
    %p88 = por %p86, %p87
    %p89 = scmp.ne.s32.totalorder %s81, %s83
    %p90 = scmp.eq.s32.totalorder %s17, 1
    %p91 = por %p89, %p90
    %p92 = scmp.ne.s32.totalorder %s83, %s84
    %p93 = scmp.eq.s32.totalorder %s17, 0
    %p94 = por %p92, %p93
    %p95 = scmp.ne.s32.totalorder %s83, %s84
    %p96 = scmp.eq.s32.totalorder %s18, 1
    %p97 = por %p95, %p96
    %p99 = scmp.ne.s32.totalorder %s84, %s98
    %p100 = scmp.eq.s32.totalorder %s18, 0
    %p101 = por %p99, %p100
    %s103 = sadd.s32 %s102, 1
    %p106 = scmp.eq.s32.totalorder %s12, 1
    %p107 = scmp.ne.s32.totalorder %s102, %s104
    %p108 = scmp.eq.s32.totalorder %s12, 0
    %p109 = por %p107, %p108
    %p110 = scmp.ne.s32.totalorder %s102, %s104
    %p111 = scmp.eq.s32.totalorder %s17, 1
    %p112 = por %p110, %p111
    %p113 = scmp.ne.s32.totalorder %s104, %s105
    %p114 = scmp.eq.s32.totalorder %s17, 0
    %p115 = por %p113, %p114
    %p116 = scmp.ne.s32.totalorder %s104, %s105
    %p117 = scmp.eq.s32.totalorder %s18, 1
    %p118 = por %p116, %p117
    %p120 = scmp.ne.s32.totalorder %s105, %s119
    %p121 = scmp.eq.s32.totalorder %s18, 0
    %p122 = por %p120, %p121
    %s124 = sadd.s32 %s123, 1
    %p127 = scmp.eq.s32.totalorder %s12, 1
    %p128 = scmp.ne.s32.totalorder %s123, %s125
    %p129 = scmp.eq.s32.totalorder %s12, 0
    %p130 = por %p128, %p129
    %p131 = scmp.ne.s32.totalorder %s123, %s125
    %p132 = scmp.eq.s32.totalorder %s17, 1
    %p133 = por %p131, %p132
    %p134 = scmp.ne.s32.totalorder %s125, %s126
    %p135 = scmp.eq.s32.totalorder %s17, 0
    %p136 = por %p134, %p135
    %p137 = scmp.ne.s32.totalorder %s125, %s126
    %p138 = scmp.eq.s32.totalorder %s18, 1
    %p139 = por %p137, %p138
    %p141 = scmp.ne.s32.totalorder %s126, %s140
    %p142 = scmp.eq.s32.totalorder %s18, 0
    %p143 = por %p141, %p142
    %s144 = ssub.s32 %s19, %s31
    %s145 = ssub.s32 %s20, %s27
    %s146 = sor.u32 %s144, %s145
    %p147 = scmp.eq.s32.totalorder %s146, 0
    %s149 = sadd.s32 %s148, 1
    %s150 = scalar_select %p147, %s148, %s149
    %p153 = pneg %p147
    %p154 = scmp.eq.s32.totalorder %s12, 1
    %p155 = por %p153, %p154
    %p156 = scmp.ne.s32.totalorder %s148, %s151
    %p157 = scmp.eq.s32.totalorder %s12, 0
    %p158 = por %p156, %p157
    %p159 = scmp.ne.s32.totalorder %s148, %s151
    %p160 = scmp.eq.s32.totalorder %s17, 1
    %p161 = por %p159, %p160
    %p162 = scmp.ne.s32.totalorder %s151, %s152
    %p163 = scmp.eq.s32.totalorder %s17, 0
    %p164 = por %p162, %p163
    %p165 = scmp.ne.s32.totalorder %s151, %s152
    %p166 = scmp.eq.s32.totalorder %s18, 1
    %p167 = por %p165, %p166
    %p169 = scmp.ne.s32.totalorder %s152, %s168
    %p170 = scmp.eq.s32.totalorder %s18, 0
    %p171 = por %p169, %p170
    %s172 = ssub.s32 %s19, %s31
    %s173 = ssub.s32 %s20, %s27
    %s174 = sor.u32 %s172, %s173
    %p175 = scmp.eq.s32.totalorder %s174, 0
    %s177 = sadd.s32 %s176, 1
    %s178 = scalar_select %p175, %s176, %s177
    %p181 = pneg %p175
    %p182 = scmp.eq.s32.totalorder %s12, 1
    %p183 = por %p181, %p182
    %p184 = scmp.ne.s32.totalorder %s176, %s179
    %p185 = scmp.eq.s32.totalorder %s12, 0
    %p186 = por %p184, %p185
    %p187 = scmp.ne.s32.totalorder %s176, %s179
    %p188 = scmp.eq.s32.totalorder %s17, 1
    %p189 = por %p187, %p188
    %p190 = scmp.ne.s32.totalorder %s179, %s180
    %p191 = scmp.eq.s32.totalorder %s17, 0
    %p192 = por %p190, %p191
    %p193 = scmp.ne.s32.totalorder %s179, %s180
    %p194 = scmp.eq.s32.totalorder %s18, 1
    %p195 = por %p193, %p194
    %p197 = scmp.ne.s32.totalorder %s180, %s196
    %p198 = scmp.eq.s32.totalorder %s18, 0
    %p199 = por %p197, %p198
    %p200 = scmp.le.s32.totalorder 1, %s12
    %p201 = scmp.lt.s32.totalorder %s12, 3
    %p202 = pnand %p200, %p201
    %p203 = pneg %p202
    // Predicated region
    $region9: #{ppgn_phi_forward.16} parent=5 // pred_check
      _
    $region10: #{ppgn_phi_forward.16} parent=5 // pred_check_branch
      %205 = sbr.rel (%p202) target = $region12
    $region11: #{ppgn_phi_forward.16} parent=5 // pred_region
      %s206 = ssub.s32 %s12, 1
      // Predicated region
      $region13: #{ppgn_phi_forward.16} parent=11 // pred_check
        %p207 = pneg %p73
      $region14: #{ppgn_phi_forward.16} parent=11 // pred_check_branch
        %209 = sbr.rel (%p207) target = $region16
      $region15: #{ppgn_phi_forward.16} parent=11 // pred_region
        _
      $region16: #{ppgn_phi_forward.16} parent=11 // pred_fallthru
        _
      // Predicated region
      $region17: #{ppgn_phi_forward.16} parent=11 // pred_check
        %p210 = pneg %p94
      $region18: #{ppgn_phi_forward.16} parent=11 // pred_check_branch
        %212 = sbr.rel (%p210) target = $region20
      $region19: #{ppgn_phi_forward.16} parent=11 // pred_region
        _
      $region20: #{ppgn_phi_forward.16} parent=11 // pred_fallthru
        _
      // Predicated region
      $region21: #{ppgn_phi_forward.16} parent=11 // pred_check
        %p213 = pneg %p115
      $region22: #{ppgn_phi_forward.16} parent=11 // pred_check_branch
        %215 = sbr.rel (%p213) target = $region24
      $region23: #{ppgn_phi_forward.16} parent=11 // pred_region
        _
      $region24: #{ppgn_phi_forward.16} parent=11 // pred_fallthru
        _
      // Predicated region
      $region25: #{ppgn_phi_forward.16} parent=11 // pred_check
        %p216 = pneg %p136
      $region26: #{ppgn_phi_forward.16} parent=11 // pred_check_branch
        %218 = sbr.rel (%p216) target = $region28
      $region27: #{ppgn_phi_forward.16} parent=11 // pred_region
        _
      $region28: #{ppgn_phi_forward.16} parent=11 // pred_fallthru
        _
    $region12: #{ppgn_phi_forward.16} parent=5 // pred_fallthru
      _
    %p219 = scmp.lt.s32.totalorder %s12, 2
    // Predicated region
    $region29: #{ppgn_phi_forward.16} parent=5 // pred_check
      %p220 = pneg %p219
    $region30: #{ppgn_phi_forward.16} parent=5 // pred_check_branch
      %222 = sbr.rel (%p220) target = $region32
    $region31: #{ppgn_phi_forward.16} parent=5 // pred_region
      // Predicated region
      $region33: #{ppgn_phi_forward.16} parent=31 // pred_check
        %p223 = pneg %p46
      $region34: #{ppgn_phi_forward.16} parent=31 // pred_check_branch
        %225 = sbr.rel (%p223) target = $region36
      $region35: #{ppgn_phi_forward.16} parent=31 // pred_region
        %p226 = scmp.lt.s32.totalorder %s19, 1
        %s227 = scalar_select %p226, %s19, 1
        %p228 = scmp.lt.s32.totalorder %s20, 0
        %s229 = scalar_select %p228, %s20, 0
        %s230 = smul.addr %s227, 2
        %s231 = sadd.s32 %s229, %s230
        %s232 = smul.addr %s231, 8
        %s233 = scalar_lea.vmem %s0, %s232
      $region36: #{ppgn_phi_forward.16} parent=31 // pred_fallthru
        _
      // Predicated region
      $region37: #{ppgn_phi_forward.16} parent=31 // pred_check
        %p234 = pneg %p158
      $region38: #{ppgn_phi_forward.16} parent=31 // pred_check_branch
        %236 = sbr.rel (%p234) target = $region40
      $region39: #{ppgn_phi_forward.16} parent=31 // pred_region
        %p237 = scmp.lt.s32.totalorder %s19, 1
        %s238 = scalar_select %p237, %s19, 1
        %p239 = scmp.lt.s32.totalorder %s20, 0
        %s240 = scalar_select %p239, %s20, 0
        %s241 = sadd.s32 %s240, %s238
        %s242 = scalar_lea.vmem %s5, %s241
      $region40: #{ppgn_phi_forward.16} parent=31 // pred_fallthru
        _
    $region32: #{ppgn_phi_forward.16} parent=5 // pred_fallthru
      _
    %p243 = scmp.le.s32.totalorder 1, %s12
    %p244 = scmp.lt.s32.totalorder %s12, 3
    %p245 = pnand %p243, %p244
    %p246 = pneg %p245
    // Predicated region
    $region41: #{ppgn_phi_forward.16} parent=5 // pred_check
      _
    $region42: #{ppgn_phi_forward.16} parent=5 // pred_check_branch
      %248 = sbr.rel (%p245) target = $region44
    $region43: #{ppgn_phi_forward.16} parent=5 // pred_region
      %s249 = ssub.s32 %s12, 1
      %p250 = scmp.lt.s32.totalorder %s21, 1
      %s251 = scalar_select %p250, %s21, 1
      %p252 = scmp.lt.s32.totalorder %s22, 0
      %s253 = scalar_select %p252, %s22, 0
      %s254 = smul.addr %s251, 2
      %s255 = sadd.s32 %s253, %s254
      %s256 = smul.addr %s255, 8
      %s257 = scalar_lea.vmem %s0, %s256
      %p258 = pneg %p52
      %p259 = pneg %p49
      %p260 = pneg %p73
      %p261 = pneg %p70
      %p262 = pneg %p94
      %p263 = pneg %p91
      %p264 = pneg %p115
      %p265 = pneg %p112
      %p266 = pneg %p136
      %p267 = pneg %p133
      %p268 = scmp.lt.s32.totalorder %s21, 1
      %s269 = scalar_select %p268, %s21, 1
      %p270 = scmp.lt.s32.totalorder %s22, 0
      %s271 = scalar_select %p270, %s22, 0
      %s272 = sadd.s32 %s271, %s269
      %s273 = scalar_lea.vmem %s5, %s272
      %p274 = pneg %p164
      %p275 = pneg %p161
      %p276 = pneg %p192
      %p277 = pneg %p189
      %p278 = scmp.lt.s32.totalorder %s21, 1
      %s279 = scalar_select %p278, %s21, 1
      %p280 = scmp.lt.s32.totalorder %s22, 0
      %s281 = scalar_select %p280, %s22, 0
      %s282 = sadd.s32 %s281, %s279
      %s283 = smul.addr %s282, 8
      %s284 = scalar_lea.vmem %s6, %s283
      %p285 = scmp.lt.s32.totalorder %s21, 1
      %s286 = scalar_select %p285, %s21, 1
      %p287 = scmp.lt.s32.totalorder %s22, 0
      %s288 = scalar_select %p287, %s22, 0
      %s289 = smul.addr %s286, 2
      %s290 = sadd.s32 %s288, %s289
      %s291 = smul.addr %s290, 8
      %s292 = scalar_lea.vmem %s0, %s291
      %p293 = scmp.lt.s32.totalorder %s21, 1
      %s294 = scalar_select %p293, %s21, 1
      %p295 = scmp.lt.s32.totalorder %s22, 0
      %s296 = scalar_select %p295, %s22, 0
      %s297 = sadd.s32 %s296, %s294
      %s298 = scalar_lea.vmem %s5, %s297
      %p299 = scmp.lt.s32.totalorder %s21, 1
      %s300 = scalar_select %p299, %s21, 1
      %p301 = scmp.lt.s32.totalorder %s22, 0
      %s302 = scalar_select %p301, %s22, 0
      %s303 = sadd.s32 %s302, %s300
      %s304 = smul.addr %s303, 8
      %s305 = scalar_lea.vmem %s6, %s304
      %v306 = vld [vmem:[%s292] sm:$0xff]
      %v307 = vld [vmem:[%s292 + $0x8] sm:$0xff]
      %v308 = vld [vmem:[%s1] sm:$0xff]
      %v309 = vld [vmem:[%s1 + $0x8] sm:$0xff]
      %v310 = vld [vmem:[%s2] sm:$0xff]
      %v311 = vld [vmem:[%s2 + $0x8] sm:$0xff]
      %313 = vset.pattern.permute.xlu0 0
      %314 = vperm.xlu0 %313, %v310
      %v315 = vpop.permute.xlu0 %314
      %318 = vset.pattern.permute.xlu0 0
      %319 = vperm.xlu0 %318, %v311
      %v320 = vpop.permute.xlu0 %319
      %vm322 = vcmask 130048
      %v324 = vsel %vm322, %v308, 0
      %v327 = vsel %vm322, %v309, 0
      %329 = vmatprep.subr.mxu0 0.0
      %330 = vmatpush1.msra.mxu0 %v306
      %331 = vmatprep.subr.mxu0 0.0
      %332 = vmatpush1.msra.mxu0 %v307
      %333 = vmatprep.subr.mxu0 0.0
      %334 = vmatpush1.msra.mxu0 0.0
      %335 = vmatprep.subr.mxu0 0.0
      %336 = vmatpush1.msra.mxu0 0.0
      %337 = vmatprep.subr.mxu0 0.0
      %338 = vmatpush1.msra.mxu0 0.0
      %339 = vmatprep.subr.mxu0 0.0
      %340 = vmatpush1.msra.mxu0 0.0
      %341 = vmatprep.subr.mxu0 0.0
      %342 = vmatpush1.msra.mxu0 0.0
      %343 = vmatprep.subr.mxu0 0.0
      %344 = vmatpush1.msra.mxu0 0.0
      %345 = vmatprep.subr.mxu0 0.0
      %346 = vmatpush1.msra.mxu0 0.0
      %347 = vmatprep.subr.mxu0 0.0
      %348 = vmatpush1.msra.mxu0 0.0
      %349 = vmatprep.subr.mxu0 0.0
      %350 = vmatpush1.msra.mxu0 0.0
      %351 = vmatprep.subr.mxu0 0.0
      %352 = vmatpush1.msra.mxu0 0.0
      %353 = vmatprep.subr.mxu0 0.0
      %354 = vmatpush1.msra.mxu0 0.0
      %355 = vmatprep.subr.mxu0 0.0
      %356 = vmatpush1.msra.mxu0 0.0
      %357 = vmatprep.subr.mxu0 0.0
      %358 = vmatpush1.msra.mxu0 0.0
      %359 = vmatprep.subr.mxu0 0.0
      %360 = vmatpush1.msra.mxu0 0.0
      %361 = vmatprep.subr.mxu0 0.0
      %362 = vmatpush1.msra.mxu0 0.0
      %363 = vmatprep.subr.mxu0 0.0
      %364 = vmatpush1.msra.mxu0 0.0
      %365 = vmatprep.subr.mxu0 0.0
      %366 = vmatpush1.msra.mxu0 0.0
      %367 = vmatprep.subr.mxu0 0.0
      %368 = vmatpush1.msra.mxu0 0.0
      %369 = vmatprep.subr.mxu0 0.0
      %370 = vmatpush1.msra.mxu0 0.0
      %371 = vmatprep.subr.mxu0 0.0
      %372 = vmatpush1.msra.mxu0 0.0
      %373 = vmatprep.subr.mxu0 0.0
      %374 = vmatpush1.msra.mxu0 0.0
      %375 = vmatprep.subr.mxu0 0.0
      %376 = vmatpush1.msra.mxu0 0.0
      %377 = vmatprep.subr.mxu0 0.0
      %378 = vmatpush1.msra.mxu0 0.0
      %379 = vmatprep.subr.mxu0 0.0
      %380 = vmatpush1.msra.mxu0 0.0
      %381 = vmatprep.subr.mxu0 0.0
      %382 = vmatpush1.msra.mxu0 0.0
      %383 = vmatprep.subr.mxu0 0.0
      %384 = vmatpush1.msra.mxu0 0.0
      %385 = vmatprep.subr.mxu0 0.0
      %386 = vmatpush1.msra.mxu0 0.0
      %387 = vmatprep.subr.mxu0 0.0
      %388 = vmatpush1.msra.mxu0 0.0
      %389 = vmatprep.subr.mxu0 0.0
      %390 = vmatpush1.msra.mxu0 0.0
      %391 = vmatprep.subr.mxu0 0.0
      %392 = vmatpush1.msra.mxu0 0.0
      %393 = vmatprep.mubr.f32.mxu0 0.0
      %394 = vmatmul.mubr.f32.gmra.mrb[0].mxu0 %v324
      %v395 = vpop.f32.mrb[0].mxu0
      %v396 = vadd.f32 %v315, %v395
      %v397 = vpop.f32.mrb[0].mxu0
      %398 = vmatprep.mubr.f32.mxu0 0.0
      %399 = vmatmul.mubr.f32.gmra.mrb[0].mxu0 %v327
      %v400 = vpop.f32.mrb[0].mxu0
      %v401 = vadd.f32 %v320, %v400
      %v402 = vpop.f32.mrb[0].mxu0
      %403 = vdwg.mxu0
      %v404 = vmax.f32 %v396, 0.0
      %v405 = vmax.f32 %v401, 0.0
      %v406 = vld [vmem:[%s3] sm:$0xff]
      %v407 = vld [vmem:[%s4] sm:$0xff]
      %409 = vset.pattern.permute.xlu0 0
      %410 = vperm.xlu0 %409, %v407
      %v411 = vpop.permute.xlu0 %410
      %v414 = vsel %vm322, %v406, 0
      %416 = vmatprep.subr.mxu0 0.0
      %417 = vmatpush1.msra.mxu0 %v404
      %418 = vmatprep.subr.mxu0 0.0
      %419 = vmatpush1.msra.mxu0 %v405
      %420 = vmatprep.subr.mxu0 0.0
      %421 = vmatpush1.msra.mxu0 0.0
      %422 = vmatprep.subr.mxu0 0.0
      %423 = vmatpush1.msra.mxu0 0.0
      %424 = vmatprep.subr.mxu0 0.0
      %425 = vmatpush1.msra.mxu0 0.0
      %426 = vmatprep.subr.mxu0 0.0
      %427 = vmatpush1.msra.mxu0 0.0
      %428 = vmatprep.subr.mxu0 0.0
      %429 = vmatpush1.msra.mxu0 0.0
      %430 = vmatprep.subr.mxu0 0.0
      %431 = vmatpush1.msra.mxu0 0.0
      %432 = vmatprep.subr.mxu0 0.0
      %433 = vmatpush1.msra.mxu0 0.0
      %434 = vmatprep.subr.mxu0 0.0
      %435 = vmatpush1.msra.mxu0 0.0
      %436 = vmatprep.subr.mxu0 0.0
      %437 = vmatpush1.msra.mxu0 0.0
      %438 = vmatprep.subr.mxu0 0.0
      %439 = vmatpush1.msra.mxu0 0.0
      %440 = vmatprep.subr.mxu0 0.0
      %441 = vmatpush1.msra.mxu0 0.0
      %442 = vmatprep.subr.mxu0 0.0
      %443 = vmatpush1.msra.mxu0 0.0
      %444 = vmatprep.subr.mxu0 0.0
      %445 = vmatpush1.msra.mxu0 0.0
      %446 = vmatprep.subr.mxu0 0.0
      %447 = vmatpush1.msra.mxu0 0.0
      %448 = vmatprep.subr.mxu0 0.0
      %449 = vmatpush1.msra.mxu0 0.0
      %450 = vmatprep.subr.mxu0 0.0
      %451 = vmatpush1.msra.mxu0 0.0
      %452 = vmatprep.subr.mxu0 0.0
      %453 = vmatpush1.msra.mxu0 0.0
      %454 = vmatprep.subr.mxu0 0.0
      %455 = vmatpush1.msra.mxu0 0.0
      %456 = vmatprep.subr.mxu0 0.0
      %457 = vmatpush1.msra.mxu0 0.0
      %458 = vmatprep.subr.mxu0 0.0
      %459 = vmatpush1.msra.mxu0 0.0
      %460 = vmatprep.subr.mxu0 0.0
      %461 = vmatpush1.msra.mxu0 0.0
      %462 = vmatprep.subr.mxu0 0.0
      %463 = vmatpush1.msra.mxu0 0.0
      %464 = vmatprep.subr.mxu0 0.0
      %465 = vmatpush1.msra.mxu0 0.0
      %466 = vmatprep.subr.mxu0 0.0
      %467 = vmatpush1.msra.mxu0 0.0
      %468 = vmatprep.subr.mxu0 0.0
      %469 = vmatpush1.msra.mxu0 0.0
      %470 = vmatprep.subr.mxu0 0.0
      %471 = vmatpush1.msra.mxu0 0.0
      %472 = vmatprep.subr.mxu0 0.0
      %473 = vmatpush1.msra.mxu0 0.0
      %474 = vmatprep.subr.mxu0 0.0
      %475 = vmatpush1.msra.mxu0 0.0
      %476 = vmatprep.subr.mxu0 0.0
      %477 = vmatpush1.msra.mxu0 0.0
      %478 = vmatprep.subr.mxu0 0.0
      %479 = vmatpush1.msra.mxu0 0.0
      %480 = vmatprep.mubr.f32.mxu0 0.0
      %481 = vmatmul.mubr.f32.gmra.mrb[0].mxu0 %v414
      %v482 = vpop.f32.mrb[0].mxu0
      %v483 = vadd.f32 %v411, %v482
      %v484 = vpop.f32.mrb[0].mxu0
      %485 = vdwg.mxu0
      %v486 = vld [vmem:[%s298] sm:$0x1]
      %v488 = vlaneseq
      %v489 = vshrl.u32 %v488, 7
      %v490 = vsub.s32 0, %v489
      %v491 = vrot.slane %v486, %v490
      %v493 = vmul.f32 %v483, %v491
      %vm494 = vcmask 523264
      %495 = vst.msk [vmem:[%s305] sm:$0xff] %vm494, %v493
      %p496 = scmp.lt.s32.totalorder %s21, 1
      %s497 = scalar_select %p496, %s21, 1
      %p498 = scmp.lt.s32.totalorder %s22, 0
      %s499 = scalar_select %p498, %s22, 0
      %s500 = sadd.s32 %s499, %s497
      %s501 = smul.addr %s500, 8
      %s502 = scalar_lea.vmem %s6, %s501
      // Predicated region
      $region45: #{ppgn_phi_forward.16} parent=43 // pred_check
        %p503 = pneg %p189
      $region46: #{ppgn_phi_forward.16} parent=43 // pred_check_branch
        %505 = sbr.rel (%p503) target = $region48
      $region47: #{ppgn_phi_forward.16} parent=43 // pred_region
        _
      $region48: #{ppgn_phi_forward.16} parent=43 // pred_fallthru
        _
    $region44: #{ppgn_phi_forward.16} parent=5 // pred_fallthru
      _
    %p506 = scmp.le.s32.totalorder 2, %s12
    // Predicated region
    $region49: #{ppgn_phi_forward.16} parent=5 // pred_check
      %p507 = pneg %p506
    $region50: #{ppgn_phi_forward.16} parent=5 // pred_check_branch
      %509 = sbr.rel (%p507) target = $region52
    $region51: #{ppgn_phi_forward.16} parent=5 // pred_region
      %s510 = ssub.s32 %s12, 2
      // Predicated region
      $region53: #{ppgn_phi_forward.16} parent=51 // pred_check
        %p511 = pneg %p195
      $region54: #{ppgn_phi_forward.16} parent=51 // pred_check_branch
        %513 = sbr.rel (%p511) target = $region56
      $region55: #{ppgn_phi_forward.16} parent=51 // pred_region
        %p514 = scmp.lt.s32.totalorder %s23, 1
        %s515 = scalar_select %p514, %s23, 1
        %p516 = scmp.lt.s32.totalorder %s24, 0
        %s517 = scalar_select %p516, %s24, 0
        %s518 = sadd.s32 %s517, %s515
        %s519 = smul.addr %s518, 8
        %s520 = scalar_lea.vmem %s6, %s519
      $region56: #{ppgn_phi_forward.16} parent=51 // pred_fallthru
        _
    $region52: #{ppgn_phi_forward.16} parent=5 // pred_fallthru
      _
  $region6: #{ppgn_phi_forward.16} parent=0 // loop_footer
    %s16 = sadd.s32 1, %s12
  $region7: #{ppgn_phi_forward.16} parent=0 // loop_footer_branch
    %11 = sbr.rel target = $region3
  $region8: #{ppgn_phi_forward.16} parent=0 // loop_exit
    _

// kernel: ppgn_phi_forward.17
$region0: #{ppgn_phi_forward.17}
  #allocation0 [shape = 'u32[]', space=smem, size = 0x4, offset = 0x4, fixed_abs, tag = 'smem constant byte address 0x4 - core index']
  #allocation1 [shape = 'u32[144,128]{1,0:T(1,128)}', space=vmem, size = 0x12000, scoped, tag = 'internal scratch']
  %s0 = inlined_call_operand.vmem [shape: f32[2,8,8,8], index: 0, kind: input, shape index: {}]
  %s1 = inlined_call_operand.vmem [shape: f32[2,8,8], index: 1, kind: input, shape index: {}]
  %s2 = inlined_call_operand.vmem [shape: f32[8,8], index: 2, kind: input, shape index: {}]
  %s3 = inlined_call_operand.vmem [shape: f32[8,8], index: 3, kind: input, shape index: {}]
  %s4 = inlined_call_operand.vmem [shape: f32[8,1], index: 4, kind: input, shape index: {}]
  %s5 = inlined_call_operand.vmem [shape: f32[2,8,8], index: 5, kind: output, shape index: {}]
  %s6 = sld [smem:[#allocation0]]
  $region53: #{ppgn_phi_forward.17} parent=0
    _
  %s8 = ssub.s32 1, %s6
  %s9 = scalar_select 0, %s8, %s6
  loop: start=0, step=1, limit=4
  $region2: #{ppgn_phi_forward.17} parent=0 // loop_pre_header
    _
  $region3: #{ppgn_phi_forward.17} parent=0 // loop_header
    %s11 = sphi 0, %s15
    %p12 = scmp.ge.s32.totalorder %s11, 4
    %s18 = sphi 0, %s30
    %s19 = sphi 0, %s26
    %s20 = sphi 0, %s18
    %s21 = sphi 0, %s19
    %s22 = sphi 0, %s20
    %s23 = sphi 0, %s21
    %s35 = sphi 0, %s37
    %s38 = sphi 0, %s35
    %s39 = sphi 0, %s38
    %s55 = sphi 0, %s39
    %s63 = sphi 0, %s65
    %s66 = sphi 0, %s63
    %s67 = sphi 0, %s66
    %s83 = sphi 0, %s67
    %s87 = sphi 0, %s87
    %s89 = sphi 0, %s87
    %s90 = sphi 0, %s89
    %s104 = sphi 0, %s90
    %s108 = sphi 0, %s108
    %s110 = sphi 0, %s108
    %s111 = sphi 0, %s110
    %s125 = sphi 0, %s111
    %s129 = sphi 0, %s129
    %s131 = sphi 0, %s129
    %s132 = sphi 0, %s131
    %s146 = sphi 0, %s132
    %s154 = sphi 0, %s156
    %s157 = sphi 0, %s154
    %s158 = sphi 0, %s157
    %s174 = sphi 0, %s158
  $region4: #{ppgn_phi_forward.17} parent=0 // loop_header_branch
    %14 = sbr.rel (%p12) target = $region8
  $region5: #{ppgn_phi_forward.17} parent=0 // loop_body
    %s16 = ssub.s32 %s11, 1
    %s17 = ssub.s32 %s11, 2
    %s24 = sadd.s32 1, %s19
    %p25 = scmp.ge.s32.totalorder %s24, 1
    %s26 = scalar_select %p25, 0, %s24
    %s27 = sadd.s32 1, %s18
    %s28 = scalar_select %p25, %s27, %s18
    %p29 = scmp.ge.s32.totalorder %s28, 2
    %s30 = scalar_select %p29, 0, %s28
    %s31 = ssub.s32 %s18, %s30
    %s32 = ssub.s32 %s19, %s26
    %s33 = sor.u32 %s31, %s32
    %p34 = scmp.eq.s32.totalorder %s33, 0
    %s36 = sadd.s32 %s35, 1
    %s37 = scalar_select %p34, %s35, %s36
    %p40 = pneg %p34
    %p41 = scmp.eq.s32.totalorder %s11, 1
    %p42 = por %p40, %p41
    %p43 = scmp.ne.s32.totalorder %s35, %s38
    %p44 = scmp.eq.s32.totalorder %s11, 0
    %p45 = por %p43, %p44
    %p46 = scmp.ne.s32.totalorder %s35, %s38
    %p47 = scmp.eq.s32.totalorder %s16, 1
    %p48 = por %p46, %p47
    %p49 = scmp.ne.s32.totalorder %s38, %s39
    %p50 = scmp.eq.s32.totalorder %s16, 0
    %p51 = por %p49, %p50
    %p52 = scmp.ne.s32.totalorder %s38, %s39
    %p53 = scmp.eq.s32.totalorder %s17, 1
    %p54 = por %p52, %p53
    %p56 = scmp.ne.s32.totalorder %s39, %s55
    %p57 = scmp.eq.s32.totalorder %s17, 0
    %p58 = por %p56, %p57
    %s59 = ssub.s32 %s18, %s30
    %s60 = ssub.s32 %s19, %s26
    %s61 = sor.u32 %s59, %s60
    %p62 = scmp.eq.s32.totalorder %s61, 0
    %s64 = sadd.s32 %s63, 1
    %s65 = scalar_select %p62, %s63, %s64
    %p68 = pneg %p62
    %p69 = scmp.eq.s32.totalorder %s11, 1
    %p70 = por %p68, %p69
    %p71 = scmp.ne.s32.totalorder %s63, %s66
    %p72 = scmp.eq.s32.totalorder %s11, 0
    %p73 = por %p71, %p72
    %p74 = scmp.ne.s32.totalorder %s63, %s66
    %p75 = scmp.eq.s32.totalorder %s16, 1
    %p76 = por %p74, %p75
    %p77 = scmp.ne.s32.totalorder %s66, %s67
    %p78 = scmp.eq.s32.totalorder %s16, 0
    %p79 = por %p77, %p78
    %p80 = scmp.ne.s32.totalorder %s66, %s67
    %p81 = scmp.eq.s32.totalorder %s17, 1
    %p82 = por %p80, %p81
    %p84 = scmp.ne.s32.totalorder %s67, %s83
    %p85 = scmp.eq.s32.totalorder %s17, 0
    %p86 = por %p84, %p85
    %s88 = sadd.s32 %s87, 1
    %p91 = scmp.eq.s32.totalorder %s11, 1
    %p92 = scmp.ne.s32.totalorder %s87, %s89
    %p93 = scmp.eq.s32.totalorder %s11, 0
    %p94 = por %p92, %p93
    %p95 = scmp.ne.s32.totalorder %s87, %s89
    %p96 = scmp.eq.s32.totalorder %s16, 1
    %p97 = por %p95, %p96
    %p98 = scmp.ne.s32.totalorder %s89, %s90
    %p99 = scmp.eq.s32.totalorder %s16, 0
    %p100 = por %p98, %p99
    %p101 = scmp.ne.s32.totalorder %s89, %s90
    %p102 = scmp.eq.s32.totalorder %s17, 1
    %p103 = por %p101, %p102
    %p105 = scmp.ne.s32.totalorder %s90, %s104
    %p106 = scmp.eq.s32.totalorder %s17, 0
    %p107 = por %p105, %p106
    %s109 = sadd.s32 %s108, 1
    %p112 = scmp.eq.s32.totalorder %s11, 1
    %p113 = scmp.ne.s32.totalorder %s108, %s110
    %p114 = scmp.eq.s32.totalorder %s11, 0
    %p115 = por %p113, %p114
    %p116 = scmp.ne.s32.totalorder %s108, %s110
    %p117 = scmp.eq.s32.totalorder %s16, 1
    %p118 = por %p116, %p117
    %p119 = scmp.ne.s32.totalorder %s110, %s111
    %p120 = scmp.eq.s32.totalorder %s16, 0
    %p121 = por %p119, %p120
    %p122 = scmp.ne.s32.totalorder %s110, %s111
    %p123 = scmp.eq.s32.totalorder %s17, 1
    %p124 = por %p122, %p123
    %p126 = scmp.ne.s32.totalorder %s111, %s125
    %p127 = scmp.eq.s32.totalorder %s17, 0
    %p128 = por %p126, %p127
    %s130 = sadd.s32 %s129, 1
    %p133 = scmp.eq.s32.totalorder %s11, 1
    %p134 = scmp.ne.s32.totalorder %s129, %s131
    %p135 = scmp.eq.s32.totalorder %s11, 0
    %p136 = por %p134, %p135
    %p137 = scmp.ne.s32.totalorder %s129, %s131
    %p138 = scmp.eq.s32.totalorder %s16, 1
    %p139 = por %p137, %p138
    %p140 = scmp.ne.s32.totalorder %s131, %s132
    %p141 = scmp.eq.s32.totalorder %s16, 0
    %p142 = por %p140, %p141
    %p143 = scmp.ne.s32.totalorder %s131, %s132
    %p144 = scmp.eq.s32.totalorder %s17, 1
    %p145 = por %p143, %p144
    %p147 = scmp.ne.s32.totalorder %s132, %s146
    %p148 = scmp.eq.s32.totalorder %s17, 0
    %p149 = por %p147, %p148
    %s150 = ssub.s32 %s18, %s30
    %s151 = ssub.s32 %s19, %s26
    %s152 = sor.u32 %s150, %s151
    %p153 = scmp.eq.s32.totalorder %s152, 0
    %s155 = sadd.s32 %s154, 1
    %s156 = scalar_select %p153, %s154, %s155
    %p159 = pneg %p153
    %p160 = scmp.eq.s32.totalorder %s11, 1
    %p161 = por %p159, %p160
    %p162 = scmp.ne.s32.totalorder %s154, %s157
    %p163 = scmp.eq.s32.totalorder %s11, 0
    %p164 = por %p162, %p163
    %p165 = scmp.ne.s32.totalorder %s154, %s157
    %p166 = scmp.eq.s32.totalorder %s16, 1
    %p167 = por %p165, %p166
    %p168 = scmp.ne.s32.totalorder %s157, %s158
    %p169 = scmp.eq.s32.totalorder %s16, 0
    %p170 = por %p168, %p169
    %p171 = scmp.ne.s32.totalorder %s157, %s158
    %p172 = scmp.eq.s32.totalorder %s17, 1
    %p173 = por %p171, %p172
    %p175 = scmp.ne.s32.totalorder %s158, %s174
    %p176 = scmp.eq.s32.totalorder %s17, 0
    %p177 = por %p175, %p176
    %p178 = scmp.le.s32.totalorder 1, %s11
    %p179 = scmp.lt.s32.totalorder %s11, 3
    %p180 = pnand %p178, %p179
    %p181 = pneg %p180
    // Predicated region
    $region9: #{ppgn_phi_forward.17} parent=5 // pred_check
      _
    $region10: #{ppgn_phi_forward.17} parent=5 // pred_check_branch
      %183 = sbr.rel (%p180) target = $region12
    $region11: #{ppgn_phi_forward.17} parent=5 // pred_region
      %s184 = ssub.s32 %s11, 1
      // Predicated region
      $region13: #{ppgn_phi_forward.17} parent=11 // pred_check
        %p185 = pneg %p100
      $region14: #{ppgn_phi_forward.17} parent=11 // pred_check_branch
        %187 = sbr.rel (%p185) target = $region16
      $region15: #{ppgn_phi_forward.17} parent=11 // pred_region
        _
      $region16: #{ppgn_phi_forward.17} parent=11 // pred_fallthru
        _
      // Predicated region
      $region17: #{ppgn_phi_forward.17} parent=11 // pred_check
        %p188 = pneg %p121
      $region18: #{ppgn_phi_forward.17} parent=11 // pred_check_branch
        %190 = sbr.rel (%p188) target = $region20
      $region19: #{ppgn_phi_forward.17} parent=11 // pred_region
        _
      $region20: #{ppgn_phi_forward.17} parent=11 // pred_fallthru
        _
      // Predicated region
      $region21: #{ppgn_phi_forward.17} parent=11 // pred_check
        %p191 = pneg %p142
      $region22: #{ppgn_phi_forward.17} parent=11 // pred_check_branch
        %193 = sbr.rel (%p191) target = $region24
      $region23: #{ppgn_phi_forward.17} parent=11 // pred_region
        _
      $region24: #{ppgn_phi_forward.17} parent=11 // pred_fallthru
        _
    $region12: #{ppgn_phi_forward.17} parent=5 // pred_fallthru
      _
    %p194 = scmp.lt.s32.totalorder %s11, 2
    // Predicated region
    $region25: #{ppgn_phi_forward.17} parent=5 // pred_check
      %p195 = pneg %p194
    $region26: #{ppgn_phi_forward.17} parent=5 // pred_check_branch
      %197 = sbr.rel (%p195) target = $region28
    $region27: #{ppgn_phi_forward.17} parent=5 // pred_region
      // Predicated region
      $region29: #{ppgn_phi_forward.17} parent=27 // pred_check
        %p198 = pneg %p45
      $region30: #{ppgn_phi_forward.17} parent=27 // pred_check_branch
        %200 = sbr.rel (%p198) target = $region32
      $region31: #{ppgn_phi_forward.17} parent=27 // pred_region
        %p201 = scmp.lt.s32.totalorder %s18, 1
        %s202 = scalar_select %p201, %s18, 1
        %p203 = scmp.lt.s32.totalorder %s19, 0
        %s204 = scalar_select %p203, %s19, 0
        %s205 = smul.addr %s202, 8
        %s206 = sadd.s32 %s204, %s205
        %s207 = smul.addr %s206, 8
        %s208 = scalar_lea.vmem %s0, %s207
      $region32: #{ppgn_phi_forward.17} parent=27 // pred_fallthru
        _
      // Predicated region
      $region33: #{ppgn_phi_forward.17} parent=27 // pred_check
        %p209 = pneg %p73
      $region34: #{ppgn_phi_forward.17} parent=27 // pred_check_branch
        %211 = sbr.rel (%p209) target = $region36
      $region35: #{ppgn_phi_forward.17} parent=27 // pred_region
        %p212 = scmp.lt.s32.totalorder %s18, 1
        %s213 = scalar_select %p212, %s18, 1
        %p214 = scmp.lt.s32.totalorder %s19, 0
        %s215 = scalar_select %p214, %s19, 0
        %s216 = sadd.s32 %s215, %s213
        %s217 = smul.addr %s216, 8
        %s218 = scalar_lea.vmem %s1, %s217
      $region36: #{ppgn_phi_forward.17} parent=27 // pred_fallthru
        _
    $region28: #{ppgn_phi_forward.17} parent=5 // pred_fallthru
      _
    %p219 = scmp.le.s32.totalorder 1, %s11
    %p220 = scmp.lt.s32.totalorder %s11, 3
    %p221 = pnand %p219, %p220
    %p222 = pneg %p221
    // Predicated region
    $region37: #{ppgn_phi_forward.17} parent=5 // pred_check
      _
    $region38: #{ppgn_phi_forward.17} parent=5 // pred_check_branch
      %224 = sbr.rel (%p221) target = $region40
    $region39: #{ppgn_phi_forward.17} parent=5 // pred_region
      %s225 = ssub.s32 %s11, 1
      %p226 = scmp.lt.s32.totalorder %s20, 1
      %s227 = scalar_select %p226, %s20, 1
      %p228 = scmp.lt.s32.totalorder %s21, 0
      %s229 = scalar_select %p228, %s21, 0
      %s230 = smul.addr %s227, 8
      %s231 = sadd.s32 %s229, %s230
      %s232 = smul.addr %s231, 8
      %s233 = scalar_lea.vmem %s0, %s232
      %p234 = pneg %p51
      %p235 = pneg %p48
      %p236 = scmp.lt.s32.totalorder %s20, 1
      %s237 = scalar_select %p236, %s20, 1
      %p238 = scmp.lt.s32.totalorder %s21, 0
      %s239 = scalar_select %p238, %s21, 0
      %s240 = sadd.s32 %s239, %s237
      %s241 = smul.addr %s240, 8
      %s242 = scalar_lea.vmem %s1, %s241
      %p243 = pneg %p79
      %p244 = pneg %p76
      %p245 = pneg %p100
      %p246 = pneg %p97
      %p247 = pneg %p121
      %p248 = pneg %p118
      %p249 = pneg %p142
      %p250 = pneg %p139
      %p251 = pneg %p170
      %p252 = pneg %p167
      %p253 = scmp.lt.s32.totalorder %s20, 1
      %s254 = scalar_select %p253, %s20, 1
      %p255 = scmp.lt.s32.totalorder %s21, 0
      %s256 = scalar_select %p255, %s21, 0
      %s257 = sadd.s32 %s256, %s254
      %s258 = smul.addr %s257, 8
      %s259 = scalar_lea.vmem %s5, %s258
      %p260 = scmp.lt.s32.totalorder %s20, 1
      %s261 = scalar_select %p260, %s20, 1
      %p262 = scmp.lt.s32.totalorder %s21, 0
      %s263 = scalar_select %p262, %s21, 0
      %s264 = smul.addr %s261, 8
      %s265 = sadd.s32 %s263, %s264
      %s266 = smul.addr %s265, 8
      %s267 = scalar_lea.vmem %s0, %s266
      %p268 = scmp.lt.s32.totalorder %s20, 1
      %s269 = scalar_select %p268, %s20, 1
      %p270 = scmp.lt.s32.totalorder %s21, 0
      %s271 = scalar_select %p270, %s21, 0
      %s272 = sadd.s32 %s271, %s269
      %s273 = smul.addr %s272, 8
      %s274 = scalar_lea.vmem %s1, %s273
      %p275 = scmp.lt.s32.totalorder %s20, 1
      %s276 = scalar_select %p275, %s20, 1
      %p277 = scmp.lt.s32.totalorder %s21, 0
      %s278 = scalar_select %p277, %s21, 0
      %s279 = sadd.s32 %s278, %s276
      %s280 = smul.addr %s279, 8
      %s281 = scalar_lea.vmem %s5, %s280
      %s282 = smul.u32 %s21, 8
      %v283 = vld [vmem:[%s267] sm:$0xff]
      %v284 = vld [vmem:[%s267 + $0x8] sm:$0xff]
      %v285 = vld [vmem:[%s267 + $0x10] sm:$0xff]
      %v286 = vld [vmem:[%s267 + $0x18] sm:$0xff]
      %v287 = vld [vmem:[%s267 + $0x20] sm:$0xff]
      %v288 = vld [vmem:[%s267 + $0x28] sm:$0xff]
      %v289 = vld [vmem:[%s267 + $0x30] sm:$0xff]
      %v290 = vld [vmem:[%s267 + $0x38] sm:$0xff]
      %v291 = vld [vmem:[%s274] sm:$0xff]
      %v292 = vlaneseq
      %v293 = vshrl.u32 %v292, 7
      %v294 = vstv %s282
      %v295 = vadd.s32 %v293, %v294
      %v296 = vlaneseq
      %v297 = vand.u32 %v296, 127
      %vm298 = vcmp.eq.s32.totalorder %v295, %v297
      %vm299 = vcmask 64512
      %v300 = vsel %vm299, %v283, 0.0
      %301 = vadd.xlane.f32.xlu0 %v300
      %v302 = vpop.xlane.xlu0 %301
      %v303 = vsel %vm299, %v284, 0.0
      %304 = vadd.xlane.f32.xlu0 %v303
      %v305 = vpop.xlane.xlu0 %304
      %v306 = vsel %vm299, %v285, 0.0
      %307 = vadd.xlane.f32.xlu0 %v306
      %v308 = vpop.xlane.xlu0 %307
      %v309 = vsel %vm299, %v286, 0.0
      %310 = vadd.xlane.f32.xlu0 %v309
      %v311 = vpop.xlane.xlu0 %310
      %v312 = vsel %vm299, %v287, 0.0
      %313 = vadd.xlane.f32.xlu0 %v312
      %v314 = vpop.xlane.xlu0 %313
      %v315 = vsel %vm299, %v288, 0.0
      %316 = vadd.xlane.f32.xlu0 %v315
      %v317 = vpop.xlane.xlu0 %316
      %v318 = vsel %vm299, %v289, 0.0
      %319 = vadd.xlane.f32.xlu0 %v318
      %v320 = vpop.xlane.xlu0 %319
      %v321 = vsel %vm299, %v290, 0.0
      %322 = vadd.xlane.f32.xlu0 %v321
      %v323 = vpop.xlane.xlu0 %322
      %v324 = vsel %vm298, 1, 0
      %vm325 = vcmp.eq.s32.totalorder %v324, 1
      %v326 = vsel %vm325, %v283, 0.0
      %v327 = vsel %vm325, %v284, 0.0
      %v328 = vsel %vm325, %v285, 0.0
      %v329 = vsel %vm325, %v286, 0.0
      %v330 = vsel %vm325, %v287, 0.0
      %v331 = vsel %vm325, %v288, 0.0
      %v332 = vsel %vm325, %v289, 0.0
      %v333 = vsel %vm325, %v290, 0.0
      %v334 = vsel %vm299, %v326, 0.0
      %335 = vadd.xlane.f32.xlu0 %v334
      %v336 = vpop.xlane.xlu0 %335
      %v337 = vsel %vm299, %v327, 0.0
      %338 = vadd.xlane.f32.xlu0 %v337
      %v339 = vpop.xlane.xlu0 %338
      %v340 = vsel %vm299, %v328, 0.0
      %341 = vadd.xlane.f32.xlu0 %v340
      %v342 = vpop.xlane.xlu0 %341
      %v343 = vsel %vm299, %v329, 0.0
      %344 = vadd.xlane.f32.xlu0 %v343
      %v345 = vpop.xlane.xlu0 %344
      %v346 = vsel %vm299, %v330, 0.0
      %347 = vadd.xlane.f32.xlu0 %v346
      %v348 = vpop.xlane.xlu0 %347
      %v349 = vsel %vm299, %v331, 0.0
      %350 = vadd.xlane.f32.xlu0 %v349
      %v351 = vpop.xlane.xlu0 %350
      %v352 = vsel %vm299, %v332, 0.0
      %353 = vadd.xlane.f32.xlu0 %v352
      %v354 = vpop.xlane.xlu0 %353
      %v355 = vsel %vm299, %v333, 0.0
      %356 = vadd.xlane.f32.xlu0 %v355
      %v357 = vpop.xlane.xlu0 %356
      %v358 = vsel %vm298, %v291, 0.0
      %v359 = vsel %vm299, %v358, 0.0
      %360 = vadd.xlane.f32.xlu0 %v359
      %v361 = vpop.xlane.xlu0 %360
      %v362 = vsel %vm299, %v291, 0.0
      %363 = vadd.xlane.f32.xlu0 %v362
      %v364 = vpop.xlane.xlu0 %363
      %v365 = vsub.f32 %v364, %v361
      %v366 = vmul.f32 %v336, %v361
      %v367 = vmul.f32 %v339, %v361
      %v368 = vmul.f32 %v342, %v361
      %v369 = vmul.f32 %v345, %v361
      %v370 = vmul.f32 %v348, %v361
      %v371 = vmul.f32 %v351, %v361
      %v372 = vmul.f32 %v354, %v361
      %v373 = vmul.f32 %v357, %v361
      %v374 = vsub.f32 %v302, %v366
      %v375 = vsub.f32 %v305, %v367
      %v376 = vsub.f32 %v308, %v368
      %v377 = vsub.f32 %v311, %v369
      %v378 = vsub.f32 %v314, %v370
      %v379 = vsub.f32 %v317, %v371
      %v380 = vsub.f32 %v320, %v372
      %v381 = vsub.f32 %v323, %v373
      %v382 = vmax.f32 %v365, 1.0
      %v383 = vrcp.pop %v382
      %v384 = vmul.f32 %v374, %v383
      %v385 = vmul.f32 %v375, %v383
      %v386 = vmul.f32 %v376, %v383
      %v387 = vmul.f32 %v377, %v383
      %v388 = vmul.f32 %v378, %v383
      %v389 = vmul.f32 %v379, %v383
      %v390 = vmul.f32 %v380, %v383
      %v391 = vmul.f32 %v381, %v383
      %v392 = vld [vmem:[%s2] sm:$0xff]
      %v393 = vld [vmem:[%s3] sm:$0xff]
      %v402 = vlaneseq
      %v403 = vshrl.u32 %v402, 7
      %v404 = vsub.s32 %v297, %v403
      %v405 = vrot.slane %v384, %v404
      %v406 = vlaneseq
      %v407 = vshrl.u32 %v406, 7
      %v408 = vsub.s32 %v297, %v407
      %v409 = vrot.slane %v385, %v408
      %v410 = vlaneseq
      %v411 = vshrl.u32 %v410, 7
      %v412 = vsub.s32 %v297, %v411
      %v413 = vrot.slane %v386, %v412
      %v414 = vlaneseq
      %v415 = vshrl.u32 %v414, 7
      %v416 = vsub.s32 %v297, %v415
      %v417 = vrot.slane %v387, %v416
      %v418 = vlaneseq
      %v419 = vshrl.u32 %v418, 7
      %v420 = vsub.s32 %v297, %v419
      %v421 = vrot.slane %v388, %v420
      %v422 = vlaneseq
      %v423 = vshrl.u32 %v422, 7
      %v424 = vsub.s32 %v297, %v423
      %v425 = vrot.slane %v389, %v424
      %v426 = vlaneseq
      %v427 = vshrl.u32 %v426, 7
      %v428 = vsub.s32 %v297, %v427
      %v429 = vrot.slane %v390, %v428
      %v430 = vlaneseq
      %v431 = vshrl.u32 %v430, 7
      %v432 = vsub.s32 %v297, %v431
      %v433 = vrot.slane %v391, %v432
      %vm434 = vcmask 1041409
      %v435 = vsel %vm434, %v409, %v405
      %vm436 = vcmask 1042434
      %v437 = vsel %vm436, %v413, %v435
      %vm438 = vcmask 1043459
      %v439 = vsel %vm438, %v417, %v437
      %vm440 = vcmask 1044484
      %v441 = vsel %vm440, %v421, %v439
      %vm442 = vcmask 1045509
      %v443 = vsel %vm442, %v425, %v441
      %vm444 = vcmask 1046534
      %v445 = vsel %vm444, %v429, %v443
      %vm446 = vcmask 1047559
      %v447 = vsel %vm446, %v433, %v445
      %v450 = vsel %vm299, %v393, 0
      %452 = vmatprep.subr.mxu0 0.0
      %453 = vmatpush1.msra.mxu0 %v447
      %454 = vmatprep.subr.mxu0 0.0
      %455 = vmatpush1.msra.mxu0 0.0
      %456 = vmatprep.subr.mxu0 0.0
      %457 = vmatpush1.msra.mxu0 0.0
      %458 = vmatprep.subr.mxu0 0.0
      %459 = vmatpush1.msra.mxu0 0.0
      %460 = vmatprep.subr.mxu0 0.0
      %461 = vmatpush1.msra.mxu0 0.0
      %462 = vmatprep.subr.mxu0 0.0
      %463 = vmatpush1.msra.mxu0 0.0
      %464 = vmatprep.subr.mxu0 0.0
      %465 = vmatpush1.msra.mxu0 0.0
      %466 = vmatprep.subr.mxu0 0.0
      %467 = vmatpush1.msra.mxu0 0.0
      %468 = vmatprep.subr.mxu0 0.0
      %469 = vmatpush1.msra.mxu0 0.0
      %470 = vmatprep.subr.mxu0 0.0
      %471 = vmatpush1.msra.mxu0 0.0
      %472 = vmatprep.subr.mxu0 0.0
      %473 = vmatpush1.msra.mxu0 0.0
      %474 = vmatprep.subr.mxu0 0.0
      %475 = vmatpush1.msra.mxu0 0.0
      %476 = vmatprep.subr.mxu0 0.0
      %477 = vmatpush1.msra.mxu0 0.0
      %478 = vmatprep.subr.mxu0 0.0
      %479 = vmatpush1.msra.mxu0 0.0
      %480 = vmatprep.subr.mxu0 0.0
      %481 = vmatpush1.msra.mxu0 0.0
      %482 = vmatprep.subr.mxu0 0.0
      %483 = vmatpush1.msra.mxu0 0.0
      %484 = vmatprep.subr.mxu0 0.0
      %485 = vmatpush1.msra.mxu0 0.0
      %486 = vmatprep.subr.mxu0 0.0
      %487 = vmatpush1.msra.mxu0 0.0
      %488 = vmatprep.subr.mxu0 0.0
      %489 = vmatpush1.msra.mxu0 0.0
      %490 = vmatprep.subr.mxu0 0.0
      %491 = vmatpush1.msra.mxu0 0.0
      %492 = vmatprep.subr.mxu0 0.0
      %493 = vmatpush1.msra.mxu0 0.0
      %494 = vmatprep.subr.mxu0 0.0
      %495 = vmatpush1.msra.mxu0 0.0
      %496 = vmatprep.subr.mxu0 0.0
      %497 = vmatpush1.msra.mxu0 0.0
      %498 = vmatprep.subr.mxu0 0.0
      %499 = vmatpush1.msra.mxu0 0.0
      %500 = vmatprep.subr.mxu0 0.0
      %501 = vmatpush1.msra.mxu0 0.0
      %502 = vmatprep.subr.mxu0 0.0
      %503 = vmatpush1.msra.mxu0 0.0
      %504 = vmatprep.subr.mxu0 0.0
      %505 = vmatpush1.msra.mxu0 0.0
      %506 = vmatprep.subr.mxu0 0.0
      %507 = vmatpush1.msra.mxu0 0.0
      %508 = vmatprep.subr.mxu0 0.0
      %509 = vmatpush1.msra.mxu0 0.0
      %510 = vmatprep.subr.mxu0 0.0
      %511 = vmatpush1.msra.mxu0 0.0
      %512 = vmatprep.subr.mxu0 0.0
      %513 = vmatpush1.msra.mxu0 0.0
      %514 = vmatprep.subr.mxu0 0.0
      %515 = vmatpush1.msra.mxu0 0.0
      %516 = vmatprep.mubr.f32.mxu0 0.0
      %517 = vmatmul.mubr.f32.gmra.mrb[0].mxu0 %v450
      %v518 = vpop.f32.mrb[0].mxu0
      %v519 = vadd.f32 0.0, %v518
      %v520 = vpop.f32.mrb[0].mxu0
      %521 = vdwg.mxu0
      %v530 = vlaneseq
      %v531 = vshrl.u32 %v530, 7
      %v532 = vsub.s32 %v297, %v531
      %v533 = vrot.slane %v336, %v532
      %v534 = vlaneseq
      %v535 = vshrl.u32 %v534, 7
      %v536 = vsub.s32 %v297, %v535
      %v537 = vrot.slane %v339, %v536
      %v538 = vlaneseq
      %v539 = vshrl.u32 %v538, 7
      %v540 = vsub.s32 %v297, %v539
      %v541 = vrot.slane %v342, %v540
      %v542 = vlaneseq
      %v543 = vshrl.u32 %v542, 7
      %v544 = vsub.s32 %v297, %v543
      %v545 = vrot.slane %v345, %v544
      %v546 = vlaneseq
      %v547 = vshrl.u32 %v546, 7
      %v548 = vsub.s32 %v297, %v547
      %v549 = vrot.slane %v348, %v548
      %v550 = vlaneseq
      %v551 = vshrl.u32 %v550, 7
      %v552 = vsub.s32 %v297, %v551
      %v553 = vrot.slane %v351, %v552
      %v554 = vlaneseq
      %v555 = vshrl.u32 %v554, 7
      %v556 = vsub.s32 %v297, %v555
      %v557 = vrot.slane %v354, %v556
      %v558 = vlaneseq
      %v559 = vshrl.u32 %v558, 7
      %v560 = vsub.s32 %v297, %v559
      %v561 = vrot.slane %v357, %v560
      %v562 = vsel %vm434, %v537, %v533
      %v563 = vsel %vm436, %v541, %v562
      %v564 = vsel %vm438, %v545, %v563
      %v565 = vsel %vm440, %v549, %v564
      %v566 = vsel %vm442, %v553, %v565
      %v567 = vsel %vm444, %v557, %v566
      %v568 = vsel %vm446, %v561, %v567
      %v571 = vsel %vm299, %v392, 0
      %573 = vmatprep.subr.mxu0 0.0
      %574 = vmatpush1.msra.mxu0 %v568
      %575 = vmatprep.subr.mxu0 0.0
      %576 = vmatpush1.msra.mxu0 0.0
      %577 = vmatprep.subr.mxu0 0.0
      %578 = vmatpush1.msra.mxu0 0.0
      %579 = vmatprep.subr.mxu0 0.0
      %580 = vmatpush1.msra.mxu0 0.0
      %581 = vmatprep.subr.mxu0 0.0
      %582 = vmatpush1.msra.mxu0 0.0
      %583 = vmatprep.subr.mxu0 0.0
      %584 = vmatpush1.msra.mxu0 0.0
      %585 = vmatprep.subr.mxu0 0.0
      %586 = vmatpush1.msra.mxu0 0.0
      %587 = vmatprep.subr.mxu0 0.0
      %588 = vmatpush1.msra.mxu0 0.0
      %589 = vmatprep.subr.mxu0 0.0
      %590 = vmatpush1.msra.mxu0 0.0
      %591 = vmatprep.subr.mxu0 0.0
      %592 = vmatpush1.msra.mxu0 0.0
      %593 = vmatprep.subr.mxu0 0.0
      %594 = vmatpush1.msra.mxu0 0.0
      %595 = vmatprep.subr.mxu0 0.0
      %596 = vmatpush1.msra.mxu0 0.0
      %597 = vmatprep.subr.mxu0 0.0
      %598 = vmatpush1.msra.mxu0 0.0
      %599 = vmatprep.subr.mxu0 0.0
      %600 = vmatpush1.msra.mxu0 0.0
      %601 = vmatprep.subr.mxu0 0.0
      %602 = vmatpush1.msra.mxu0 0.0
      %603 = vmatprep.subr.mxu0 0.0
      %604 = vmatpush1.msra.mxu0 0.0
      %605 = vmatprep.subr.mxu0 0.0
      %606 = vmatpush1.msra.mxu0 0.0
      %607 = vmatprep.subr.mxu0 0.0
      %608 = vmatpush1.msra.mxu0 0.0
      %609 = vmatprep.subr.mxu0 0.0
      %610 = vmatpush1.msra.mxu0 0.0
      %611 = vmatprep.subr.mxu0 0.0
      %612 = vmatpush1.msra.mxu0 0.0
      %613 = vmatprep.subr.mxu0 0.0
      %614 = vmatpush1.msra.mxu0 0.0
      %615 = vmatprep.subr.mxu0 0.0
      %616 = vmatpush1.msra.mxu0 0.0
      %617 = vmatprep.subr.mxu0 0.0
      %618 = vmatpush1.msra.mxu0 0.0
      %619 = vmatprep.subr.mxu0 0.0
      %620 = vmatpush1.msra.mxu0 0.0
      %621 = vmatprep.subr.mxu0 0.0
      %622 = vmatpush1.msra.mxu0 0.0
      %623 = vmatprep.subr.mxu0 0.0
      %624 = vmatpush1.msra.mxu0 0.0
      %625 = vmatprep.subr.mxu0 0.0
      %626 = vmatpush1.msra.mxu0 0.0
      %627 = vmatprep.subr.mxu0 0.0
      %628 = vmatpush1.msra.mxu0 0.0
      %629 = vmatprep.subr.mxu0 0.0
      %630 = vmatpush1.msra.mxu0 0.0
      %631 = vmatprep.subr.mxu0 0.0
      %632 = vmatpush1.msra.mxu0 0.0
      %633 = vmatprep.subr.mxu0 0.0
      %634 = vmatpush1.msra.mxu0 0.0
      %635 = vmatprep.subr.mxu0 0.0
      %636 = vmatpush1.msra.mxu0 0.0
      %637 = vmatprep.mubr.f32.mxu0 0.0
      %638 = vmatmul.mubr.f32.gmra.mrb[0].mxu0 %v571
      %v639 = vpop.f32.mrb[0].mxu0
      %v640 = vadd.f32 %v519, %v639
      %v641 = vpop.f32.mrb[0].mxu0
      %642 = vdwg.mxu0
      %v643 = vld [vmem:[%s4] sm:$0xff]
      %645 = vset.pattern.permute.xlu0 0
      %646 = vperm.xlu0 %645, %v643
      %v647 = vpop.permute.xlu0 %646
      %v649 = vadd.f32 %v640, %v647
      %650 = vst.msk [vmem:[%s281] sm:$0xff] %vm299, %v649
      %p651 = scmp.lt.s32.totalorder %s20, 1
      %s652 = scalar_select %p651, %s20, 1
      %p653 = scmp.lt.s32.totalorder %s21, 0
      %s654 = scalar_select %p653, %s21, 0
      %s655 = sadd.s32 %s654, %s652
      %s656 = smul.addr %s655, 8
      %s657 = scalar_lea.vmem %s5, %s656
      // Predicated region
      $region41: #{ppgn_phi_forward.17} parent=39 // pred_check
        %p658 = pneg %p167
      $region42: #{ppgn_phi_forward.17} parent=39 // pred_check_branch
        %660 = sbr.rel (%p658) target = $region44
      $region43: #{ppgn_phi_forward.17} parent=39 // pred_region
        _
      $region44: #{ppgn_phi_forward.17} parent=39 // pred_fallthru
        _
    $region40: #{ppgn_phi_forward.17} parent=5 // pred_fallthru
      _
    %p661 = scmp.le.s32.totalorder 2, %s11
    // Predicated region
    $region45: #{ppgn_phi_forward.17} parent=5 // pred_check
      %p662 = pneg %p661
    $region46: #{ppgn_phi_forward.17} parent=5 // pred_check_branch
      %664 = sbr.rel (%p662) target = $region48
    $region47: #{ppgn_phi_forward.17} parent=5 // pred_region
      %s665 = ssub.s32 %s11, 2
      // Predicated region
      $region49: #{ppgn_phi_forward.17} parent=47 // pred_check
        %p666 = pneg %p173
      $region50: #{ppgn_phi_forward.17} parent=47 // pred_check_branch
        %668 = sbr.rel (%p666) target = $region52
      $region51: #{ppgn_phi_forward.17} parent=47 // pred_region
        %p669 = scmp.lt.s32.totalorder %s22, 1
        %s670 = scalar_select %p669, %s22, 1
        %p671 = scmp.lt.s32.totalorder %s23, 0
        %s672 = scalar_select %p671, %s23, 0
        %s673 = sadd.s32 %s672, %s670
        %s674 = smul.addr %s673, 8
        %s675 = scalar_lea.vmem %s5, %s674
      $region52: #{ppgn_phi_forward.17} parent=47 // pred_fallthru
        _
    $region48: #{ppgn_phi_forward.17} parent=5 // pred_fallthru
      _
  $region6: #{ppgn_phi_forward.17} parent=0 // loop_footer
    %s15 = sadd.s32 1, %s11
  $region7: #{ppgn_phi_forward.17} parent=0 // loop_footer_branch
    %10 = sbr.rel target = $region3
  $region8: #{ppgn_phi_forward.17} parent=0 // loop_exit
    _

</llo_original>
